<compile_context>
chip_gen: v6e
topology: v6e:2x2x1
jax: 0.10.0
libtpu: 0.0.40
codegen_flags: <defaults>
</compile_context>

<pallas_src>
import jax
import jax.numpy as jnp
import numpy as np
from jax.experimental import pallas as pl
from jax.experimental.pallas import tpu as pltpu

_LANE = 128


def _round_up(x, m):
    return ((x + m - 1) // m) * m


def _pick_tile_h(h, target=8):
    for th in range(min(h, target), 0, -1):
        if h % th == 0:
            return th
    return 1


# --------------------------- kernel 1: conv + stats ---------------------------
def _conv_stats_kernel(x_ref, w_ref, z_ref, st_ref):
    # x_ref : (1, H+2, W+2, Ca)  bf16  padded input image (resident across row tiles)
    # w_ref : (9, Ca, Cp)        bf16  3x3 weights laid out as (ky*3+kx, cin, cout)
    # z_ref : (1, TH, W, Cp)     f32   pre-BN conv output tile
    # st_ref: (1, 1, 2, Cp)      f32   per-tile [sum, sum_sq] over the TH*W rows
    r = pl.program_id(1)
    _, th, w, cp = z_ref.shape
    ca = x_ref.shape[-1]

    # Row tile plus 2-row halo (input is pre-padded, so always in bounds).
    xt = x_ref[0, pl.ds(r * th, th + 2), :, :]              # (TH+2, W+2, Ca)

    acc = None
    for k in range(9):                                       # unrolled 3x3 taps
        ky, kx = divmod(k, 3)
        win = xt[ky:ky + th, kx:kx + w, :].reshape(th * w, ca)
        part = jnp.dot(win, w_ref[k], preferred_element_type=jnp.float32)
        acc = part if acc is None else acc + part            # (TH*W, Cp) f32

    z_ref[0] = acc.reshape(th, w, cp)
    # Per-tile BN partial moments, reduced on the already-resident f32 tile.
    st_ref[0, 0, 0:1, :] = jnp.sum(acc, axis=0, keepdims=True)
    st_ref[0, 0, 1:2, :] = jnp.sum(acc * acc, axis=0, keepdims=True)


# ------------------------- kernel 2: BN-apply + ReLU --------------------------
def _bn_relu_kernel(z_ref, sc_ref, sh_ref, y_ref):
    sc = sc_ref[...].reshape(1, 1, 1, -1)
    sh = sh_ref[...].reshape(1, 1, 1, -1)
    y = z_ref[...] * sc + sh                                 # folded BN affine
    y_ref[...] = jnp.maximum(y, 0.0).astype(y_ref.dtype)


# ------------------------------- layer wrapper --------------------------------
def _conv_bn_relu_layer(a, w, gamma, beta, eps, out_dtype):
    """Conv2d(3x3, pad=1, no bias) + train-mode BatchNorm2d + ReLU.

    a: (N, H, W, Ca) activation; its channel dim may already be lane-padded.
    w: (3, 3, Cin, Cout) with Cin <= Ca (padded input channels of `a` are zero).
    Returns (N, H, W, Cp) in `out_dtype`, Cp = round_up(Cout, 128); channels
    >= Cout are zero.
    """
    n, h, wdt, ca = a.shape
    _, _, cin, cout = w.shape
    cp = _round_up(cout, _LANE)

    # Zero-pad weights to the padded channel counts; bf16 MXU operands.
    w_p = jnp.zeros((3, 3, ca, cp), jnp.float32).at[:, :, :cin, :cout].set(w)
    w9 = w_p.reshape(9, ca, cp).astype(jnp.bfloat16)
    g_p = jnp.zeros((cp,), jnp.float32).at[:cout].set(gamma)
    bt_p = jnp.zeros((cp,), jnp.float32).at[:cout].set(beta)

    # Spatial zero padding for the 3x3 halo (single cheap copy, no 9x im2col).
    a_pad = jnp.pad(a.astype(jnp.bfloat16), ((0, 0), (1, 1), (1, 1), (0, 0)))

    th = _pick_tile_h(h)
    rblocks = h // th

    z, stats = pl.pallas_call(
        _conv_stats_kernel,
        out_shape=(
            jax.ShapeDtypeStruct((n, h, wdt, cp), jnp.float32),
            jax.ShapeDtypeStruct((n, rblocks, 2, cp), jnp.float32),
        ),
        grid_spec=pltpu.PrefetchScalarGridSpec(
            num_scalar_prefetch=0,
            grid=(n, rblocks),
            in_specs=[
                # Whole padded image resident across the row-tile axis.
                pl.BlockSpec((1, h + 2, wdt + 2, ca), lambda ni, ri: (ni, 0, 0, 0)),
                # Small weight tensor, constant block.
                pl.BlockSpec((9, ca, cp), lambda ni, ri: (0, 0, 0)),
            ],
            out_specs=[
                pl.BlockSpec((1, th, wdt, cp), lambda ni, ri: (ni, ri, 0, 0)),
                pl.BlockSpec((1, 1, 2, cp), lambda ni, ri: (ni, ri, 0, 0)),
            ],
        ),
        compiler_params=pltpu.CompilerParams(
            dimension_semantics=("parallel", "parallel")),
    )(a_pad, w9)

    # Tiny host-side finalize of two-phase BatchNorm (train mode, biased var).
    m = n * h * wdt
    moments = jnp.sum(stats, axis=(0, 1))                   # (2, Cp)
    mean = moments[0] / m
    var = jnp.maximum(moments[1] / m - mean * mean, 0.0)
    scale = g_p * jax.lax.rsqrt(var + eps)                   # BN affine folded
    shift = bt_p - mean * scale

    y = pl.pallas_call(
        _bn_relu_kernel,
        out_shape=jax.ShapeDtypeStruct((n, h, wdt, cp), out_dtype),
        grid_spec=pltpu.PrefetchScalarGridSpec(
            num_scalar_prefetch=0,
            grid=(n, rblocks),
            in_specs=[
                pl.BlockSpec((1, th, wdt, cp), lambda ni, ri: (ni, ri, 0, 0)),
                pl.BlockSpec((1, cp), lambda ni, ri: (0, 0)),
                pl.BlockSpec((1, cp), lambda ni, ri: (0, 0)),
            ],
            out_specs=pl.BlockSpec((1, th, wdt, cp), lambda ni, ri: (ni, ri, 0, 0)),
        ),
        compiler_params=pltpu.CompilerParams(
            dimension_semantics=("parallel", "parallel")),
    )(z, scale.reshape(1, cp), shift.reshape(1, cp))
    return y


def double_conv(x_nchw, params, eps=1e-5):
    """DoubleConv forward. x_nchw: (N, Cin, H, W) -> (N, Cout, H, W).

    params = (w1, b1, g1, bt1, w2, b2, g2, bt2).  Conv biases b1/b2 are accepted
    but unused: train-mode BatchNorm's mean subtraction cancels them exactly.
    """
    (w1, _b1, g1, bt1, w2, _b2, g2, bt2) = params
    cout = w2.shape[-1]
    x = jnp.transpose(x_nchw, (0, 2, 3, 1))                  # NCHW -> NHWC
    h1 = _conv_bn_relu_layer(x, w1, g1, bt1, eps, out_dtype=jnp.bfloat16)
    y2 = _conv_bn_relu_layer(h1, w2, g2, bt2, eps, out_dtype=jnp.float32)
    y2 = y2[..., :cout]                                      # drop lane padding
    return jnp.transpose(y2, (0, 3, 1, 2))                   # NHWC -> NCHW


# ----------------------------- pure-JAX reference ----------------------------
def _ref_conv_bn_relu(x_nhwc, w, b, gamma, beta, eps=1e-5):
    # Mirrors the kernel's mixed precision policy: bf16 conv operands with f32
    # accumulation, f32 BatchNorm math (biased variance, train mode).
    xb = x_nhwc.astype(jnp.bfloat16).astype(jnp.float32)
    wb = w.astype(jnp.bfloat16).astype(jnp.float32)
    z = jax.lax.conv_general_dilated(
        xb, wb, window_strides=(1, 1), padding="SAME",
        dimension_numbers=("NHWC", "HWIO", "NHWC"),
        precision=jax.lax.Precision.HIGHEST)
    z = z + b.reshape(1, 1, 1, -1)        # cancelled by BN; kept for fidelity
    mean = jnp.mean(z, axis=(0, 1, 2))
    var = jnp.maximum(jnp.mean(z * z, axis=(0, 1, 2)) - mean * mean, 0.0)
    y = (z - mean) * jax.lax.rsqrt(var + eps) * gamma + beta
    return jnp.maximum(y, 0.0)


def _ref_double_conv(x_nchw, params, eps=1e-5):
    (w1, b1, g1, bt1, w2, b2, g2, bt2) = params
    x = jnp.transpose(x_nchw, (0, 2, 3, 1))
    h = _ref_conv_bn_relu(x, w1, b1, g1, bt1, eps)
    y = _ref_conv_bn_relu(h, w2, b2, g2, bt2, eps)
    return jnp.transpose(y, (0, 3, 1, 2))


if __name__ == "__main__":
    N, Cin, Cout, H, W = 2, 4, 8, 16, 16

    key = jax.random.PRNGKey(0)
    ks = jax.random.split(key, 9)
    x = jax.random.normal(ks[0], (N, Cin, H, W), jnp.float32)

    # Weights in (ky, kx, cin, cout) layout (PyTorch (cout, cin, ky, kx) transposed).
    w1 = 0.1 * jax.random.normal(ks[1], (3, 3, Cin, Cout), jnp.float32)
    b1 = 0.1 * jax.random.normal(ks[2], (Cout,), jnp.float32)
    g1 = 1.0 + 0.1 * jax.random.normal(ks[3], (Cout,), jnp.float32)
    bt1 = 0.1 * jax.random.normal(ks[4], (Cout,), jnp.float32)
    w2 = 0.1 * jax.random.normal(ks[5], (3, 3, Cout, Cout), jnp.float32)
    b2 = 0.1 * jax.random.normal(ks[6], (Cout,), jnp.float32)
    g2 = 1.0 + 0.1 * jax.random.normal(ks[7], (Cout,), jnp.float32)
    bt2 = 0.1 * jax.random.normal(ks[8], (Cout,), jnp.float32)
    params = (w1, b1, g1, bt1, w2, b2, g2, bt2)

    fwd = jax.jit(double_conv)
    y = jax.block_until_ready(fwd(x, params))

    y_ref = jax.block_until_ready(_ref_double_conv(x, params))
    np.testing.assert_allclose(np.asarray(y), np.asarray(y_ref),
                               rtol=5e-3, atol=5e-3)
    assert y.shape == (N, Cout, H, W)

    print("KERNEL_OK")
</pallas_src>

<mosaic_0001>
module attributes {stable_mosaic.version = 11 : i64} {
  func.func @_conv_stats_kernel(%arg0: i32, %arg1: i32, %arg2: memref<1x18x18x4xbf16, #tpu.memory_space<vmem>>, %arg3: memref<9x4x128xbf16, #tpu.memory_space<vmem>>, %arg4: memref<1x8x16x128xf32, #tpu.memory_space<vmem>>, %arg5: memref<1x1x2x128xf32, #tpu.memory_space<vmem>>) attributes {dimension_semantics = [#tpu.dimension_semantics<parallel>, #tpu.dimension_semantics<parallel>], iteration_bounds = array<i64: 2, 2>, scalar_prefetch = 0 : i64, scratch_operands = 0 : i64, tpu.core_type = #tpu.core_type<tc>, window_params = [{transform_indices = @transform_0, window_bounds = array<i64: 1, 18, 18, 4>}, {pipeline_mode = #tpu.pipeline_mode<synchronous>, transform_indices = @transform_1, window_bounds = array<i64: 9, 4, 128>}, {transform_indices = @transform_2, window_bounds = array<i64: 1, 8, 16, 128>}, {transform_indices = @transform_3, window_bounds = array<i64: 1, 1, 2, 128>}]} {
    %c8_i32 = arith.constant 8 : i32
    %0 = arith.muli %arg1, %c8_i32 : i32
    %c0 = arith.constant 0 : index
    %1 = arith.index_cast %0 : i32 to index
    %c0_0 = arith.constant 0 : index
    %c0_1 = arith.constant 0 : index
    %2 = vector.load %arg2[%c0, %1, %c0_0, %c0_1] : memref<1x18x18x4xbf16, #tpu.memory_space<vmem>>, vector<1x10x18x4xbf16>
    %3 = vector.shape_cast %2 : vector<1x10x18x4xbf16> to vector<10x18x4xbf16>
    %4 = vector.extract_strided_slice %3 {offsets = [0, 0, 0], sizes = [8, 16, 4], strides = [1, 1, 1]} : vector<10x18x4xbf16> to vector<8x16x4xbf16>
    %5 = vector.shape_cast %4 : vector<8x16x4xbf16> to vector<128x4xbf16>
    %c0_2 = arith.constant 0 : index
    %c0_3 = arith.constant 0 : index
    %c0_4 = arith.constant 0 : index
    %6 = vector.load %arg3[%c0_2, %c0_3, %c0_4] : memref<9x4x128xbf16, #tpu.memory_space<vmem>>, vector<1x4x128xbf16>
    %7 = vector.shape_cast %6 : vector<1x4x128xbf16> to vector<4x128xbf16>
    %cst = arith.constant dense<0.000000e+00> : vector<128x128xf32>
    %8 = tpu.matmul %5, %7, %cst {dimension_numbers = #tpu.dot_dimension_numbers<[1], [0], [0], [1], [0, 0, 1, 1], [], []>} : vector<128x4xbf16>, vector<4x128xbf16>, vector<128x128xf32> -> vector<128x128xf32>
    %9 = vector.extract_strided_slice %3 {offsets = [0, 1, 0], sizes = [8, 16, 4], strides = [1, 1, 1]} : vector<10x18x4xbf16> to vector<8x16x4xbf16>
    %10 = vector.shape_cast %9 : vector<8x16x4xbf16> to vector<128x4xbf16>
    %c1 = arith.constant 1 : index
    %c0_5 = arith.constant 0 : index
    %c0_6 = arith.constant 0 : index
    %11 = vector.load %arg3[%c1, %c0_5, %c0_6] : memref<9x4x128xbf16, #tpu.memory_space<vmem>>, vector<1x4x128xbf16>
    %12 = vector.shape_cast %11 : vector<1x4x128xbf16> to vector<4x128xbf16>
    %cst_7 = arith.constant dense<0.000000e+00> : vector<128x128xf32>
    %13 = tpu.matmul %10, %12, %cst_7 {dimension_numbers = #tpu.dot_dimension_numbers<[1], [0], [0], [1], [0, 0, 1, 1], [], []>} : vector<128x4xbf16>, vector<4x128xbf16>, vector<128x128xf32> -> vector<128x128xf32>
    %14 = arith.addf %8, %13 : vector<128x128xf32>
    %15 = vector.extract_strided_slice %3 {offsets = [0, 2, 0], sizes = [8, 16, 4], strides = [1, 1, 1]} : vector<10x18x4xbf16> to vector<8x16x4xbf16>
    %16 = vector.shape_cast %15 : vector<8x16x4xbf16> to vector<128x4xbf16>
    %c2 = arith.constant 2 : index
    %c0_8 = arith.constant 0 : index
    %c0_9 = arith.constant 0 : index
    %17 = vector.load %arg3[%c2, %c0_8, %c0_9] : memref<9x4x128xbf16, #tpu.memory_space<vmem>>, vector<1x4x128xbf16>
    %18 = vector.shape_cast %17 : vector<1x4x128xbf16> to vector<4x128xbf16>
    %cst_10 = arith.constant dense<0.000000e+00> : vector<128x128xf32>
    %19 = tpu.matmul %16, %18, %cst_10 {dimension_numbers = #tpu.dot_dimension_numbers<[1], [0], [0], [1], [0, 0, 1, 1], [], []>} : vector<128x4xbf16>, vector<4x128xbf16>, vector<128x128xf32> -> vector<128x128xf32>
    %20 = arith.addf %14, %19 : vector<128x128xf32>
    %21 = vector.extract_strided_slice %3 {offsets = [1, 0, 0], sizes = [8, 16, 4], strides = [1, 1, 1]} : vector<10x18x4xbf16> to vector<8x16x4xbf16>
    %22 = vector.shape_cast %21 : vector<8x16x4xbf16> to vector<128x4xbf16>
    %c3 = arith.constant 3 : index
    %c0_11 = arith.constant 0 : index
    %c0_12 = arith.constant 0 : index
    %23 = vector.load %arg3[%c3, %c0_11, %c0_12] : memref<9x4x128xbf16, #tpu.memory_space<vmem>>, vector<1x4x128xbf16>
    %24 = vector.shape_cast %23 : vector<1x4x128xbf16> to vector<4x128xbf16>
    %cst_13 = arith.constant dense<0.000000e+00> : vector<128x128xf32>
    %25 = tpu.matmul %22, %24, %cst_13 {dimension_numbers = #tpu.dot_dimension_numbers<[1], [0], [0], [1], [0, 0, 1, 1], [], []>} : vector<128x4xbf16>, vector<4x128xbf16>, vector<128x128xf32> -> vector<128x128xf32>
    %26 = arith.addf %20, %25 : vector<128x128xf32>
    %27 = vector.extract_strided_slice %3 {offsets = [1, 1, 0], sizes = [8, 16, 4], strides = [1, 1, 1]} : vector<10x18x4xbf16> to vector<8x16x4xbf16>
    %28 = vector.shape_cast %27 : vector<8x16x4xbf16> to vector<128x4xbf16>
    %c4 = arith.constant 4 : index
    %c0_14 = arith.constant 0 : index
    %c0_15 = arith.constant 0 : index
    %29 = vector.load %arg3[%c4, %c0_14, %c0_15] : memref<9x4x128xbf16, #tpu.memory_space<vmem>>, vector<1x4x128xbf16>
    %30 = vector.shape_cast %29 : vector<1x4x128xbf16> to vector<4x128xbf16>
    %cst_16 = arith.constant dense<0.000000e+00> : vector<128x128xf32>
    %31 = tpu.matmul %28, %30, %cst_16 {dimension_numbers = #tpu.dot_dimension_numbers<[1], [0], [0], [1], [0, 0, 1, 1], [], []>} : vector<128x4xbf16>, vector<4x128xbf16>, vector<128x128xf32> -> vector<128x128xf32>
    %32 = arith.addf %26, %31 : vector<128x128xf32>
    %33 = vector.extract_strided_slice %3 {offsets = [1, 2, 0], sizes = [8, 16, 4], strides = [1, 1, 1]} : vector<10x18x4xbf16> to vector<8x16x4xbf16>
    %34 = vector.shape_cast %33 : vector<8x16x4xbf16> to vector<128x4xbf16>
    %c5 = arith.constant 5 : index
    %c0_17 = arith.constant 0 : index
    %c0_18 = arith.constant 0 : index
    %35 = vector.load %arg3[%c5, %c0_17, %c0_18] : memref<9x4x128xbf16, #tpu.memory_space<vmem>>, vector<1x4x128xbf16>
    %36 = vector.shape_cast %35 : vector<1x4x128xbf16> to vector<4x128xbf16>
    %cst_19 = arith.constant dense<0.000000e+00> : vector<128x128xf32>
    %37 = tpu.matmul %34, %36, %cst_19 {dimension_numbers = #tpu.dot_dimension_numbers<[1], [0], [0], [1], [0, 0, 1, 1], [], []>} : vector<128x4xbf16>, vector<4x128xbf16>, vector<128x128xf32> -> vector<128x128xf32>
    %38 = arith.addf %32, %37 : vector<128x128xf32>
    %39 = vector.extract_strided_slice %3 {offsets = [2, 0, 0], sizes = [8, 16, 4], strides = [1, 1, 1]} : vector<10x18x4xbf16> to vector<8x16x4xbf16>
    %40 = vector.shape_cast %39 : vector<8x16x4xbf16> to vector<128x4xbf16>
    %c6 = arith.constant 6 : index
    %c0_20 = arith.constant 0 : index
    %c0_21 = arith.constant 0 : index
    %41 = vector.load %arg3[%c6, %c0_20, %c0_21] : memref<9x4x128xbf16, #tpu.memory_space<vmem>>, vector<1x4x128xbf16>
    %42 = vector.shape_cast %41 : vector<1x4x128xbf16> to vector<4x128xbf16>
    %cst_22 = arith.constant dense<0.000000e+00> : vector<128x128xf32>
    %43 = tpu.matmul %40, %42, %cst_22 {dimension_numbers = #tpu.dot_dimension_numbers<[1], [0], [0], [1], [0, 0, 1, 1], [], []>} : vector<128x4xbf16>, vector<4x128xbf16>, vector<128x128xf32> -> vector<128x128xf32>
    %44 = arith.addf %38, %43 : vector<128x128xf32>
    %45 = vector.extract_strided_slice %3 {offsets = [2, 1, 0], sizes = [8, 16, 4], strides = [1, 1, 1]} : vector<10x18x4xbf16> to vector<8x16x4xbf16>
    %46 = vector.shape_cast %45 : vector<8x16x4xbf16> to vector<128x4xbf16>
    %c7 = arith.constant 7 : index
    %c0_23 = arith.constant 0 : index
    %c0_24 = arith.constant 0 : index
    %47 = vector.load %arg3[%c7, %c0_23, %c0_24] : memref<9x4x128xbf16, #tpu.memory_space<vmem>>, vector<1x4x128xbf16>
    %48 = vector.shape_cast %47 : vector<1x4x128xbf16> to vector<4x128xbf16>
    %cst_25 = arith.constant dense<0.000000e+00> : vector<128x128xf32>
    %49 = tpu.matmul %46, %48, %cst_25 {dimension_numbers = #tpu.dot_dimension_numbers<[1], [0], [0], [1], [0, 0, 1, 1], [], []>} : vector<128x4xbf16>, vector<4x128xbf16>, vector<128x128xf32> -> vector<128x128xf32>
    %50 = arith.addf %44, %49 : vector<128x128xf32>
    %51 = vector.extract_strided_slice %3 {offsets = [2, 2, 0], sizes = [8, 16, 4], strides = [1, 1, 1]} : vector<10x18x4xbf16> to vector<8x16x4xbf16>
    %52 = vector.shape_cast %51 : vector<8x16x4xbf16> to vector<128x4xbf16>
    %c8 = arith.constant 8 : index
    %c0_26 = arith.constant 0 : index
    %c0_27 = arith.constant 0 : index
    %53 = vector.load %arg3[%c8, %c0_26, %c0_27] : memref<9x4x128xbf16, #tpu.memory_space<vmem>>, vector<1x4x128xbf16>
    %54 = vector.shape_cast %53 : vector<1x4x128xbf16> to vector<4x128xbf16>
    %cst_28 = arith.constant dense<0.000000e+00> : vector<128x128xf32>
    %55 = tpu.matmul %52, %54, %cst_28 {dimension_numbers = #tpu.dot_dimension_numbers<[1], [0], [0], [1], [0, 0, 1, 1], [], []>} : vector<128x4xbf16>, vector<4x128xbf16>, vector<128x128xf32> -> vector<128x128xf32>
    %56 = arith.addf %50, %55 : vector<128x128xf32>
    %57 = vector.shape_cast %56 : vector<128x128xf32> to vector<8x16x128xf32>
    %c0_29 = arith.constant 0 : index
    %c0_30 = arith.constant 0 : index
    %c0_31 = arith.constant 0 : index
    %c0_32 = arith.constant 0 : index
    %58 = vector.load %arg4[%c0_29, %c0_30, %c0_31, %c0_32] : memref<1x8x16x128xf32, #tpu.memory_space<vmem>>, vector<1x8x16x128xf32>
    %59 = vector.shape_cast %58 : vector<1x8x16x128xf32> to vector<8x16x128xf32>
    %60 = vector.shape_cast %57 : vector<8x16x128xf32> to vector<1x8x16x128xf32>
    tpu.vector_store %arg4[%c0_29, %c0_30, %c0_31, %c0_32], %60 {strides = array<i32>} : memref<1x8x16x128xf32, #tpu.memory_space<vmem>>, vector<1x8x16x128xf32>,
    %cst_33 = arith.constant dense<0.000000e+00> : vector<128xf32>
    %61 = vector.multi_reduction <add>, %56, %cst_33 [0] : vector<128x128xf32> to vector<128xf32>
    %62 = vector.shape_cast %61 : vector<128xf32> to vector<1x128xf32>
    %c0_34 = arith.constant 0 : index
    %c0_35 = arith.constant 0 : index
    %c0_36 = arith.constant 0 : index
    %c0_37 = arith.constant 0 : index
    %63 = vector.load %arg5[%c0_34, %c0_35, %c0_36, %c0_37] : memref<1x1x2x128xf32, #tpu.memory_space<vmem>>, vector<1x1x1x128xf32>
    %64 = vector.shape_cast %63 : vector<1x1x1x128xf32> to vector<1x128xf32>
    %65 = vector.shape_cast %62 : vector<1x128xf32> to vector<1x1x1x128xf32>
    tpu.vector_store %arg5[%c0_34, %c0_35, %c0_36, %c0_37], %65 {strides = array<i32>} : memref<1x1x2x128xf32, #tpu.memory_space<vmem>>, vector<1x1x1x128xf32>,
    %66 = arith.mulf %56, %56 : vector<128x128xf32>
    %cst_38 = arith.constant dense<0.000000e+00> : vector<128xf32>
    %67 = vector.multi_reduction <add>, %66, %cst_38 [0] : vector<128x128xf32> to vector<128xf32>
    %68 = vector.shape_cast %67 : vector<128xf32> to vector<1x128xf32>
    %c0_39 = arith.constant 0 : index
    %c0_40 = arith.constant 0 : index
    %c1_41 = arith.constant 1 : index
    %c0_42 = arith.constant 0 : index
    %69 = vector.load %arg5[%c0_39, %c0_40, %c1_41, %c0_42] : memref<1x1x2x128xf32, #tpu.memory_space<vmem>>, vector<1x1x1x128xf32>
    %70 = vector.shape_cast %69 : vector<1x1x1x128xf32> to vector<1x128xf32>
    %71 = vector.shape_cast %68 : vector<1x128xf32> to vector<1x1x1x128xf32>
    tpu.vector_store %arg5[%c0_39, %c0_40, %c1_41, %c0_42], %71 {strides = array<i32>} : memref<1x1x2x128xf32, #tpu.memory_space<vmem>>, vector<1x1x1x128xf32>,
    return
  }
  func.func @transform_0(%arg0: i32, %arg1: i32) -> (i32, i32, i32, i32) {
    %c0_i32 = arith.constant 0 : i32
    %c0_i32_0 = arith.constant 0 : i32
    %c0_i32_1 = arith.constant 0 : i32
    %c0_i32_2 = arith.constant 0 : i32
    return %arg0, %c0_i32, %c0_i32_0, %c0_i32_1 : i32, i32, i32, i32
  }
  func.func @transform_1(%arg0: i32, %arg1: i32) -> (i32, i32, i32) {
    %c0_i32 = arith.constant 0 : i32
    %c0_i32_0 = arith.constant 0 : i32
    %c0_i32_1 = arith.constant 0 : i32
    %c0_i32_2 = arith.constant 0 : i32
    return %c0_i32, %c0_i32_0, %c0_i32_1 : i32, i32, i32
  }
  func.func @transform_2(%arg0: i32, %arg1: i32) -> (i32, i32, i32, i32) {
    %c0_i32 = arith.constant 0 : i32
    %c0_i32_0 = arith.constant 0 : i32
    %c0_i32_1 = arith.constant 0 : i32
    return %arg0, %arg1, %c0_i32, %c0_i32_0 : i32, i32, i32, i32
  }
  func.func @transform_3(%arg0: i32, %arg1: i32) -> (i32, i32, i32, i32) {
    %c0_i32 = arith.constant 0 : i32
    %c0_i32_0 = arith.constant 0 : i32
    %c0_i32_1 = arith.constant 0 : i32
    return %arg0, %arg1, %c0_i32, %c0_i32_0 : i32, i32, i32, i32
  }
}

module attributes {stable_mosaic.version = 11 : i64} {
  func.func @_bn_relu_kernel(%arg0: i32, %arg1: i32, %arg2: memref<1x8x16x128xf32, #tpu.memory_space<vmem>>, %arg3: memref<1x128xf32, #tpu.memory_space<vmem>>, %arg4: memref<1x128xf32, #tpu.memory_space<vmem>>, %arg5: memref<1x8x16x128xbf16, #tpu.memory_space<vmem>>) attributes {dimension_semantics = [#tpu.dimension_semantics<parallel>, #tpu.dimension_semantics<parallel>], iteration_bounds = array<i64: 2, 2>, scalar_prefetch = 0 : i64, scratch_operands = 0 : i64, tpu.core_type = #tpu.core_type<tc>, window_params = [{transform_indices = @transform_0, window_bounds = array<i64: 1, 8, 16, 128>}, {pipeline_mode = #tpu.pipeline_mode<synchronous>, transform_indices = @transform_1, window_bounds = array<i64: 1, 128>}, {pipeline_mode = #tpu.pipeline_mode<synchronous>, transform_indices = @transform_2, window_bounds = array<i64: 1, 128>}, {transform_indices = @transform_3, window_bounds = array<i64: 1, 8, 16, 128>}]} {
    %c0 = arith.constant 0 : index
    %c0_0 = arith.constant 0 : index
    %0 = vector.load %arg3[%c0, %c0_0] : memref<1x128xf32, #tpu.memory_space<vmem>>, vector<1x128xf32>
    %1 = vector.shape_cast %0 : vector<1x128xf32> to vector<1x1x1x128xf32>
    %c0_1 = arith.constant 0 : index
    %c0_2 = arith.constant 0 : index
    %2 = vector.load %arg4[%c0_1, %c0_2] : memref<1x128xf32, #tpu.memory_space<vmem>>, vector<1x128xf32>
    %3 = vector.shape_cast %2 : vector<1x128xf32> to vector<1x1x1x128xf32>
    %c0_3 = arith.constant 0 : index
    %c0_4 = arith.constant 0 : index
    %c0_5 = arith.constant 0 : index
    %c0_6 = arith.constant 0 : index
    %4 = vector.load %arg2[%c0_3, %c0_4, %c0_5, %c0_6] : memref<1x8x16x128xf32, #tpu.memory_space<vmem>>, vector<1x8x16x128xf32>
    %5 = vector.broadcast %1 : vector<1x1x1x128xf32> to vector<1x8x16x128xf32>
    %6 = arith.mulf %4, %5 : vector<1x8x16x128xf32>
    %7 = vector.broadcast %3 : vector<1x1x1x128xf32> to vector<1x8x16x128xf32>
    %8 = arith.addf %6, %7 : vector<1x8x16x128xf32>
    %cst = arith.constant 0.000000e+00 : f32
    %9 = vector.broadcast %cst : f32 to vector<1x8x16x128xf32>
    %10 = arith.maximumf %8, %9 : vector<1x8x16x128xf32>
    %11 = arith.truncf %10 : vector<1x8x16x128xf32> to vector<1x8x16x128xbf16>
    %c0_7 = arith.constant 0 : index
    %c0_8 = arith.constant 0 : index
    %c0_9 = arith.constant 0 : index
    %c0_10 = arith.constant 0 : index
    %12 = vector.load %arg5[%c0_7, %c0_8, %c0_9, %c0_10] : memref<1x8x16x128xbf16, #tpu.memory_space<vmem>>, vector<1x8x16x128xbf16>
    tpu.vector_store %arg5[%c0_7, %c0_8, %c0_9, %c0_10], %11 {strides = array<i32>} : memref<1x8x16x128xbf16, #tpu.memory_space<vmem>>, vector<1x8x16x128xbf16>,
    return
  }
  func.func @transform_0(%arg0: i32, %arg1: i32) -> (i32, i32, i32, i32) {
    %c0_i32 = arith.constant 0 : i32
    %c0_i32_0 = arith.constant 0 : i32
    %c0_i32_1 = arith.constant 0 : i32
    return %arg0, %arg1, %c0_i32, %c0_i32_0 : i32, i32, i32, i32
  }
  func.func @transform_1(%arg0: i32, %arg1: i32) -> (i32, i32) {
    %c0_i32 = arith.constant 0 : i32
    %c0_i32_0 = arith.constant 0 : i32
    %c0_i32_1 = arith.constant 0 : i32
    return %c0_i32, %c0_i32_0 : i32, i32
  }
  func.func @transform_2(%arg0: i32, %arg1: i32) -> (i32, i32) {
    %c0_i32 = arith.constant 0 : i32
    %c0_i32_0 = arith.constant 0 : i32
    %c0_i32_1 = arith.constant 0 : i32
    return %c0_i32, %c0_i32_0 : i32, i32
  }
  func.func @transform_3(%arg0: i32, %arg1: i32) -> (i32, i32, i32, i32) {
    %c0_i32 = arith.constant 0 : i32
    %c0_i32_0 = arith.constant 0 : i32
    %c0_i32_1 = arith.constant 0 : i32
    return %arg0, %arg1, %c0_i32, %c0_i32_0 : i32, i32, i32, i32
  }
}

module attributes {stable_mosaic.version = 11 : i64} {
  func.func @_bn_relu_kernel(%arg0: i32, %arg1: i32, %arg2: memref<1x8x16x128xf32, #tpu.memory_space<vmem>>, %arg3: memref<1x128xf32, #tpu.memory_space<vmem>>, %arg4: memref<1x128xf32, #tpu.memory_space<vmem>>, %arg5: memref<1x8x16x128xf32, #tpu.memory_space<vmem>>) attributes {dimension_semantics = [#tpu.dimension_semantics<parallel>, #tpu.dimension_semantics<parallel>], iteration_bounds = array<i64: 2, 2>, scalar_prefetch = 0 : i64, scratch_operands = 0 : i64, tpu.core_type = #tpu.core_type<tc>, window_params = [{transform_indices = @transform_0, window_bounds = array<i64: 1, 8, 16, 128>}, {pipeline_mode = #tpu.pipeline_mode<synchronous>, transform_indices = @transform_1, window_bounds = array<i64: 1, 128>}, {pipeline_mode = #tpu.pipeline_mode<synchronous>, transform_indices = @transform_2, window_bounds = array<i64: 1, 128>}, {transform_indices = @transform_3, window_bounds = array<i64: 1, 8, 16, 128>}]} {
    %c0 = arith.constant 0 : index
    %c0_0 = arith.constant 0 : index
    %0 = vector.load %arg3[%c0, %c0_0] : memref<1x128xf32, #tpu.memory_space<vmem>>, vector<1x128xf32>
    %1 = vector.shape_cast %0 : vector<1x128xf32> to vector<1x1x1x128xf32>
    %c0_1 = arith.constant 0 : index
    %c0_2 = arith.constant 0 : index
    %2 = vector.load %arg4[%c0_1, %c0_2] : memref<1x128xf32, #tpu.memory_space<vmem>>, vector<1x128xf32>
    %3 = vector.shape_cast %2 : vector<1x128xf32> to vector<1x1x1x128xf32>
    %c0_3 = arith.constant 0 : index
    %c0_4 = arith.constant 0 : index
    %c0_5 = arith.constant 0 : index
    %c0_6 = arith.constant 0 : index
    %4 = vector.load %arg2[%c0_3, %c0_4, %c0_5, %c0_6] : memref<1x8x16x128xf32, #tpu.memory_space<vmem>>, vector<1x8x16x128xf32>
    %5 = vector.broadcast %1 : vector<1x1x1x128xf32> to vector<1x8x16x128xf32>
    %6 = arith.mulf %4, %5 : vector<1x8x16x128xf32>
    %7 = vector.broadcast %3 : vector<1x1x1x128xf32> to vector<1x8x16x128xf32>
    %8 = arith.addf %6, %7 : vector<1x8x16x128xf32>
    %cst = arith.constant 0.000000e+00 : f32
    %9 = vector.broadcast %cst : f32 to vector<1x8x16x128xf32>
    %10 = arith.maximumf %8, %9 : vector<1x8x16x128xf32>
    %c0_7 = arith.constant 0 : index
    %c0_8 = arith.constant 0 : index
    %c0_9 = arith.constant 0 : index
    %c0_10 = arith.constant 0 : index
    %11 = vector.load %arg5[%c0_7, %c0_8, %c0_9, %c0_10] : memref<1x8x16x128xf32, #tpu.memory_space<vmem>>, vector<1x8x16x128xf32>
    tpu.vector_store %arg5[%c0_7, %c0_8, %c0_9, %c0_10], %10 {strides = array<i32>} : memref<1x8x16x128xf32, #tpu.memory_space<vmem>>, vector<1x8x16x128xf32>,
    return
  }
  func.func @transform_0(%arg0: i32, %arg1: i32) -> (i32, i32, i32, i32) {
    %c0_i32 = arith.constant 0 : i32
    %c0_i32_0 = arith.constant 0 : i32
    %c0_i32_1 = arith.constant 0 : i32
    return %arg0, %arg1, %c0_i32, %c0_i32_0 : i32, i32, i32, i32
  }
  func.func @transform_1(%arg0: i32, %arg1: i32) -> (i32, i32) {
    %c0_i32 = arith.constant 0 : i32
    %c0_i32_0 = arith.constant 0 : i32
    %c0_i32_1 = arith.constant 0 : i32
    return %c0_i32, %c0_i32_0 : i32, i32
  }
  func.func @transform_2(%arg0: i32, %arg1: i32) -> (i32, i32) {
    %c0_i32 = arith.constant 0 : i32
    %c0_i32_0 = arith.constant 0 : i32
    %c0_i32_1 = arith.constant 0 : i32
    return %c0_i32, %c0_i32_0 : i32, i32
  }
  func.func @transform_3(%arg0: i32, %arg1: i32) -> (i32, i32, i32, i32) {
    %c0_i32 = arith.constant 0 : i32
    %c0_i32_0 = arith.constant 0 : i32
    %c0_i32_1 = arith.constant 0 : i32
    return %arg0, %arg1, %c0_i32, %c0_i32_0 : i32, i32, i32, i32
  }
}

module attributes {stable_mosaic.version = 11 : i64} {
  func.func @_conv_stats_kernel(%arg0: i32, %arg1: i32, %arg2: memref<1x18x18x128xbf16, #tpu.memory_space<vmem>>, %arg3: memref<9x128x128xbf16, #tpu.memory_space<vmem>>, %arg4: memref<1x8x16x128xf32, #tpu.memory_space<vmem>>, %arg5: memref<1x1x2x128xf32, #tpu.memory_space<vmem>>) attributes {dimension_semantics = [#tpu.dimension_semantics<parallel>, #tpu.dimension_semantics<parallel>], iteration_bounds = array<i64: 2, 2>, scalar_prefetch = 0 : i64, scratch_operands = 0 : i64, tpu.core_type = #tpu.core_type<tc>, window_params = [{transform_indices = @transform_0, window_bounds = array<i64: 1, 18, 18, 128>}, {pipeline_mode = #tpu.pipeline_mode<synchronous>, transform_indices = @transform_1, window_bounds = array<i64: 9, 128, 128>}, {transform_indices = @transform_2, window_bounds = array<i64: 1, 8, 16, 128>}, {transform_indices = @transform_3, window_bounds = array<i64: 1, 1, 2, 128>}]} {
    %c8_i32 = arith.constant 8 : i32
    %0 = arith.muli %arg1, %c8_i32 : i32
    %c0 = arith.constant 0 : index
    %1 = arith.index_cast %0 : i32 to index
    %c0_0 = arith.constant 0 : index
    %c0_1 = arith.constant 0 : index
    %2 = vector.load %arg2[%c0, %1, %c0_0, %c0_1] : memref<1x18x18x128xbf16, #tpu.memory_space<vmem>>, vector<1x10x18x128xbf16>
    %3 = vector.shape_cast %2 : vector<1x10x18x128xbf16> to vector<10x18x128xbf16>
    %4 = vector.extract_strided_slice %3 {offsets = [0, 0, 0], sizes = [8, 16, 128], strides = [1, 1, 1]} : vector<10x18x128xbf16> to vector<8x16x128xbf16>
    %5 = vector.shape_cast %4 : vector<8x16x128xbf16> to vector<128x128xbf16>
    %c0_2 = arith.constant 0 : index
    %c0_3 = arith.constant 0 : index
    %c0_4 = arith.constant 0 : index
    %6 = vector.load %arg3[%c0_2, %c0_3, %c0_4] : memref<9x128x128xbf16, #tpu.memory_space<vmem>>, vector<1x128x128xbf16>
    %7 = vector.shape_cast %6 : vector<1x128x128xbf16> to vector<128x128xbf16>
    %cst = arith.constant dense<0.000000e+00> : vector<128x128xf32>
    %8 = tpu.matmul %5, %7, %cst {dimension_numbers = #tpu.dot_dimension_numbers<[1], [0], [0], [1], [0, 0, 1, 1], [], []>} : vector<128x128xbf16>, vector<128x128xbf16>, vector<128x128xf32> -> vector<128x128xf32>
    %9 = vector.extract_strided_slice %3 {offsets = [0, 1, 0], sizes = [8, 16, 128], strides = [1, 1, 1]} : vector<10x18x128xbf16> to vector<8x16x128xbf16>
    %10 = vector.shape_cast %9 : vector<8x16x128xbf16> to vector<128x128xbf16>
    %c1 = arith.constant 1 : index
    %c0_5 = arith.constant 0 : index
    %c0_6 = arith.constant 0 : index
    %11 = vector.load %arg3[%c1, %c0_5, %c0_6] : memref<9x128x128xbf16, #tpu.memory_space<vmem>>, vector<1x128x128xbf16>
    %12 = vector.shape_cast %11 : vector<1x128x128xbf16> to vector<128x128xbf16>
    %cst_7 = arith.constant dense<0.000000e+00> : vector<128x128xf32>
    %13 = tpu.matmul %10, %12, %cst_7 {dimension_numbers = #tpu.dot_dimension_numbers<[1], [0], [0], [1], [0, 0, 1, 1], [], []>} : vector<128x128xbf16>, vector<128x128xbf16>, vector<128x128xf32> -> vector<128x128xf32>
    %14 = arith.addf %8, %13 : vector<128x128xf32>
    %15 = vector.extract_strided_slice %3 {offsets = [0, 2, 0], sizes = [8, 16, 128], strides = [1, 1, 1]} : vector<10x18x128xbf16> to vector<8x16x128xbf16>
    %16 = vector.shape_cast %15 : vector<8x16x128xbf16> to vector<128x128xbf16>
    %c2 = arith.constant 2 : index
    %c0_8 = arith.constant 0 : index
    %c0_9 = arith.constant 0 : index
    %17 = vector.load %arg3[%c2, %c0_8, %c0_9] : memref<9x128x128xbf16, #tpu.memory_space<vmem>>, vector<1x128x128xbf16>
    %18 = vector.shape_cast %17 : vector<1x128x128xbf16> to vector<128x128xbf16>
    %cst_10 = arith.constant dense<0.000000e+00> : vector<128x128xf32>
    %19 = tpu.matmul %16, %18, %cst_10 {dimension_numbers = #tpu.dot_dimension_numbers<[1], [0], [0], [1], [0, 0, 1, 1], [], []>} : vector<128x128xbf16>, vector<128x128xbf16>, vector<128x128xf32> -> vector<128x128xf32>
    %20 = arith.addf %14, %19 : vector<128x128xf32>
    %21 = vector.extract_strided_slice %3 {offsets = [1, 0, 0], sizes = [8, 16, 128], strides = [1, 1, 1]} : vector<10x18x128xbf16> to vector<8x16x128xbf16>
    %22 = vector.shape_cast %21 : vector<8x16x128xbf16> to vector<128x128xbf16>
    %c3 = arith.constant 3 : index
    %c0_11 = arith.constant 0 : index
    %c0_12 = arith.constant 0 : index
    %23 = vector.load %arg3[%c3, %c0_11, %c0_12] : memref<9x128x128xbf16, #tpu.memory_space<vmem>>, vector<1x128x128xbf16>
    %24 = vector.shape_cast %23 : vector<1x128x128xbf16> to vector<128x128xbf16>
    %cst_13 = arith.constant dense<0.000000e+00> : vector<128x128xf32>
    %25 = tpu.matmul %22, %24, %cst_13 {dimension_numbers = #tpu.dot_dimension_numbers<[1], [0], [0], [1], [0, 0, 1, 1], [], []>} : vector<128x128xbf16>, vector<128x128xbf16>, vector<128x128xf32> -> vector<128x128xf32>
    %26 = arith.addf %20, %25 : vector<128x128xf32>
    %27 = vector.extract_strided_slice %3 {offsets = [1, 1, 0], sizes = [8, 16, 128], strides = [1, 1, 1]} : vector<10x18x128xbf16> to vector<8x16x128xbf16>
    %28 = vector.shape_cast %27 : vector<8x16x128xbf16> to vector<128x128xbf16>
    %c4 = arith.constant 4 : index
    %c0_14 = arith.constant 0 : index
    %c0_15 = arith.constant 0 : index
    %29 = vector.load %arg3[%c4, %c0_14, %c0_15] : memref<9x128x128xbf16, #tpu.memory_space<vmem>>, vector<1x128x128xbf16>
    %30 = vector.shape_cast %29 : vector<1x128x128xbf16> to vector<128x128xbf16>
    %cst_16 = arith.constant dense<0.000000e+00> : vector<128x128xf32>
    %31 = tpu.matmul %28, %30, %cst_16 {dimension_numbers = #tpu.dot_dimension_numbers<[1], [0], [0], [1], [0, 0, 1, 1], [], []>} : vector<128x128xbf16>, vector<128x128xbf16>, vector<128x128xf32> -> vector<128x128xf32>
    %32 = arith.addf %26, %31 : vector<128x128xf32>
    %33 = vector.extract_strided_slice %3 {offsets = [1, 2, 0], sizes = [8, 16, 128], strides = [1, 1, 1]} : vector<10x18x128xbf16> to vector<8x16x128xbf16>
    %34 = vector.shape_cast %33 : vector<8x16x128xbf16> to vector<128x128xbf16>
    %c5 = arith.constant 5 : index
    %c0_17 = arith.constant 0 : index
    %c0_18 = arith.constant 0 : index
    %35 = vector.load %arg3[%c5, %c0_17, %c0_18] : memref<9x128x128xbf16, #tpu.memory_space<vmem>>, vector<1x128x128xbf16>
    %36 = vector.shape_cast %35 : vector<1x128x128xbf16> to vector<128x128xbf16>
    %cst_19 = arith.constant dense<0.000000e+00> : vector<128x128xf32>
    %37 = tpu.matmul %34, %36, %cst_19 {dimension_numbers = #tpu.dot_dimension_numbers<[1], [0], [0], [1], [0, 0, 1, 1], [], []>} : vector<128x128xbf16>, vector<128x128xbf16>, vector<128x128xf32> -> vector<128x128xf32>
    %38 = arith.addf %32, %37 : vector<128x128xf32>
    %39 = vector.extract_strided_slice %3 {offsets = [2, 0, 0], sizes = [8, 16, 128], strides = [1, 1, 1]} : vector<10x18x128xbf16> to vector<8x16x128xbf16>
    %40 = vector.shape_cast %39 : vector<8x16x128xbf16> to vector<128x128xbf16>
    %c6 = arith.constant 6 : index
    %c0_20 = arith.constant 0 : index
    %c0_21 = arith.constant 0 : index
    %41 = vector.load %arg3[%c6, %c0_20, %c0_21] : memref<9x128x128xbf16, #tpu.memory_space<vmem>>, vector<1x128x128xbf16>
    %42 = vector.shape_cast %41 : vector<1x128x128xbf16> to vector<128x128xbf16>
    %cst_22 = arith.constant dense<0.000000e+00> : vector<128x128xf32>
    %43 = tpu.matmul %40, %42, %cst_22 {dimension_numbers = #tpu.dot_dimension_numbers<[1], [0], [0], [1], [0, 0, 1, 1], [], []>} : vector<128x128xbf16>, vector<128x128xbf16>, vector<128x128xf32> -> vector<128x128xf32>
    %44 = arith.addf %38, %43 : vector<128x128xf32>
    %45 = vector.extract_strided_slice %3 {offsets = [2, 1, 0], sizes = [8, 16, 128], strides = [1, 1, 1]} : vector<10x18x128xbf16> to vector<8x16x128xbf16>
    %46 = vector.shape_cast %45 : vector<8x16x128xbf16> to vector<128x128xbf16>
    %c7 = arith.constant 7 : index
    %c0_23 = arith.constant 0 : index
    %c0_24 = arith.constant 0 : index
    %47 = vector.load %arg3[%c7, %c0_23, %c0_24] : memref<9x128x128xbf16, #tpu.memory_space<vmem>>, vector<1x128x128xbf16>
    %48 = vector.shape_cast %47 : vector<1x128x128xbf16> to vector<128x128xbf16>
    %cst_25 = arith.constant dense<0.000000e+00> : vector<128x128xf32>
    %49 = tpu.matmul %46, %48, %cst_25 {dimension_numbers = #tpu.dot_dimension_numbers<[1], [0], [0], [1], [0, 0, 1, 1], [], []>} : vector<128x128xbf16>, vector<128x128xbf16>, vector<128x128xf32> -> vector<128x128xf32>
    %50 = arith.addf %44, %49 : vector<128x128xf32>
    %51 = vector.extract_strided_slice %3 {offsets = [2, 2, 0], sizes = [8, 16, 128], strides = [1, 1, 1]} : vector<10x18x128xbf16> to vector<8x16x128xbf16>
    %52 = vector.shape_cast %51 : vector<8x16x128xbf16> to vector<128x128xbf16>
    %c8 = arith.constant 8 : index
    %c0_26 = arith.constant 0 : index
    %c0_27 = arith.constant 0 : index
    %53 = vector.load %arg3[%c8, %c0_26, %c0_27] : memref<9x128x128xbf16, #tpu.memory_space<vmem>>, vector<1x128x128xbf16>
    %54 = vector.shape_cast %53 : vector<1x128x128xbf16> to vector<128x128xbf16>
    %cst_28 = arith.constant dense<0.000000e+00> : vector<128x128xf32>
    %55 = tpu.matmul %52, %54, %cst_28 {dimension_numbers = #tpu.dot_dimension_numbers<[1], [0], [0], [1], [0, 0, 1, 1], [], []>} : vector<128x128xbf16>, vector<128x128xbf16>, vector<128x128xf32> -> vector<128x128xf32>
    %56 = arith.addf %50, %55 : vector<128x128xf32>
    %57 = vector.shape_cast %56 : vector<128x128xf32> to vector<8x16x128xf32>
    %c0_29 = arith.constant 0 : index
    %c0_30 = arith.constant 0 : index
    %c0_31 = arith.constant 0 : index
    %c0_32 = arith.constant 0 : index
    %58 = vector.load %arg4[%c0_29, %c0_30, %c0_31, %c0_32] : memref<1x8x16x128xf32, #tpu.memory_space<vmem>>, vector<1x8x16x128xf32>
    %59 = vector.shape_cast %58 : vector<1x8x16x128xf32> to vector<8x16x128xf32>
    %60 = vector.shape_cast %57 : vector<8x16x128xf32> to vector<1x8x16x128xf32>
    tpu.vector_store %arg4[%c0_29, %c0_30, %c0_31, %c0_32], %60 {strides = array<i32>} : memref<1x8x16x128xf32, #tpu.memory_space<vmem>>, vector<1x8x16x128xf32>,
    %cst_33 = arith.constant dense<0.000000e+00> : vector<128xf32>
    %61 = vector.multi_reduction <add>, %56, %cst_33 [0] : vector<128x128xf32> to vector<128xf32>
    %62 = vector.shape_cast %61 : vector<128xf32> to vector<1x128xf32>
    %c0_34 = arith.constant 0 : index
    %c0_35 = arith.constant 0 : index
    %c0_36 = arith.constant 0 : index
    %c0_37 = arith.constant 0 : index
    %63 = vector.load %arg5[%c0_34, %c0_35, %c0_36, %c0_37] : memref<1x1x2x128xf32, #tpu.memory_space<vmem>>, vector<1x1x1x128xf32>
    %64 = vector.shape_cast %63 : vector<1x1x1x128xf32> to vector<1x128xf32>
    %65 = vector.shape_cast %62 : vector<1x128xf32> to vector<1x1x1x128xf32>
    tpu.vector_store %arg5[%c0_34, %c0_35, %c0_36, %c0_37], %65 {strides = array<i32>} : memref<1x1x2x128xf32, #tpu.memory_space<vmem>>, vector<1x1x1x128xf32>,
    %66 = arith.mulf %56, %56 : vector<128x128xf32>
    %cst_38 = arith.constant dense<0.000000e+00> : vector<128xf32>
    %67 = vector.multi_reduction <add>, %66, %cst_38 [0] : vector<128x128xf32> to vector<128xf32>
    %68 = vector.shape_cast %67 : vector<128xf32> to vector<1x128xf32>
    %c0_39 = arith.constant 0 : index
    %c0_40 = arith.constant 0 : index
    %c1_41 = arith.constant 1 : index
    %c0_42 = arith.constant 0 : index
    %69 = vector.load %arg5[%c0_39, %c0_40, %c1_41, %c0_42] : memref<1x1x2x128xf32, #tpu.memory_space<vmem>>, vector<1x1x1x128xf32>
    %70 = vector.shape_cast %69 : vector<1x1x1x128xf32> to vector<1x128xf32>
    %71 = vector.shape_cast %68 : vector<1x128xf32> to vector<1x1x1x128xf32>
    tpu.vector_store %arg5[%c0_39, %c0_40, %c1_41, %c0_42], %71 {strides = array<i32>} : memref<1x1x2x128xf32, #tpu.memory_space<vmem>>, vector<1x1x1x128xf32>,
    return
  }
  func.func @transform_0(%arg0: i32, %arg1: i32) -> (i32, i32, i32, i32) {
    %c0_i32 = arith.constant 0 : i32
    %c0_i32_0 = arith.constant 0 : i32
    %c0_i32_1 = arith.constant 0 : i32
    %c0_i32_2 = arith.constant 0 : i32
    return %arg0, %c0_i32, %c0_i32_0, %c0_i32_1 : i32, i32, i32, i32
  }
  func.func @transform_1(%arg0: i32, %arg1: i32) -> (i32, i32, i32) {
    %c0_i32 = arith.constant 0 : i32
    %c0_i32_0 = arith.constant 0 : i32
    %c0_i32_1 = arith.constant 0 : i32
    %c0_i32_2 = arith.constant 0 : i32
    return %c0_i32, %c0_i32_0, %c0_i32_1 : i32, i32, i32
  }
  func.func @transform_2(%arg0: i32, %arg1: i32) -> (i32, i32, i32, i32) {
    %c0_i32 = arith.constant 0 : i32
    %c0_i32_0 = arith.constant 0 : i32
    %c0_i32_1 = arith.constant 0 : i32
    return %arg0, %arg1, %c0_i32, %c0_i32_0 : i32, i32, i32, i32
  }
  func.func @transform_3(%arg0: i32, %arg1: i32) -> (i32, i32, i32, i32) {
    %c0_i32 = arith.constant 0 : i32
    %c0_i32_0 = arith.constant 0 : i32
    %c0_i32_1 = arith.constant 0 : i32
    return %arg0, %arg1, %c0_i32, %c0_i32_0 : i32, i32, i32, i32
  }
}

</mosaic_0001>

<llo_original>
// kernel: double_conv.7
$region0: #{double_conv.7}
  #allocation0 [shape = 'u32[]', space=smem, size = 0x4, offset = 0x4, fixed_abs, tag = 'smem constant byte address 0x4 - core index']
  #allocation1 [shape = 'u32[144,128]{1,0:T(1,128)}', space=vmem, size = 0x12000, scoped, tag = 'internal scratch']
  %s0 = inlined_call_operand.vmem [shape: f32[2,16,16,128], index: 0, kind: input, shape index: {}]
  %s1 = inlined_call_operand.vmem [shape: f32[1,128], index: 1, kind: input, shape index: {}]
  %s2 = inlined_call_operand.vmem [shape: f32[1,128], index: 2, kind: input, shape index: {}]
  %s3 = inlined_call_operand.vmem [shape: f32[2,16,16,128], index: 3, kind: output, shape index: {}]
  %s4 = sld [smem:[#allocation0]]
  $region45: #{double_conv.7} parent=0
    _
  %s6 = ssub.s32 1, %s4
  %s7 = scalar_select 0, %s6, %s4
  loop: start=0, step=1, limit=6
  $region2: #{double_conv.7} parent=0 // loop_pre_header
    _
  $region3: #{double_conv.7} parent=0 // loop_header
    %s9 = sphi 0, %s13
    %p10 = scmp.ge.s32.totalorder %s9, 6
    %s16 = sphi 0, %s28
    %s17 = sphi 0, %s24
    %s18 = sphi 0, %s16
    %s19 = sphi 0, %s17
    %s20 = sphi 0, %s18
    %s21 = sphi 0, %s19
    %s33 = sphi 0, %s35
    %s36 = sphi 0, %s33
    %s37 = sphi 0, %s36
    %s53 = sphi 0, %s37
    %s57 = sphi 0, %s57
    %s59 = sphi 0, %s57
    %s60 = sphi 0, %s59
    %s74 = sphi 0, %s60
    %s78 = sphi 0, %s78
    %s80 = sphi 0, %s78
    %s81 = sphi 0, %s80
    %s95 = sphi 0, %s81
    %s103 = sphi 0, %s105
    %s106 = sphi 0, %s103
    %s107 = sphi 0, %s106
    %s123 = sphi 0, %s107
  $region4: #{double_conv.7} parent=0 // loop_header_branch
    %12 = sbr.rel (%p10) target = $region8
  $region5: #{double_conv.7} parent=0 // loop_body
    %s14 = ssub.s32 %s9, 1
    %s15 = ssub.s32 %s9, 2
    %s22 = sadd.s32 1, %s17
    %p23 = scmp.ge.s32.totalorder %s22, 2
    %s24 = scalar_select %p23, 0, %s22
    %s25 = sadd.s32 1, %s16
    %s26 = scalar_select %p23, %s25, %s16
    %p27 = scmp.ge.s32.totalorder %s26, 2
    %s28 = scalar_select %p27, 0, %s26
    %s29 = ssub.s32 %s16, %s28
    %s30 = ssub.s32 %s17, %s24
    %s31 = sor.u32 %s29, %s30
    %p32 = scmp.eq.s32.totalorder %s31, 0
    %s34 = sadd.s32 %s33, 1
    %s35 = scalar_select %p32, %s33, %s34
    %p38 = pneg %p32
    %p39 = scmp.eq.s32.totalorder %s9, 3
    %p40 = por %p38, %p39
    %p41 = scmp.ne.s32.totalorder %s33, %s36
    %p42 = scmp.eq.s32.totalorder %s9, 0
    %p43 = por %p41, %p42
    %p44 = scmp.ne.s32.totalorder %s33, %s36
    %p45 = scmp.eq.s32.totalorder %s14, 3
    %p46 = por %p44, %p45
    %p47 = scmp.ne.s32.totalorder %s36, %s37
    %p48 = scmp.eq.s32.totalorder %s14, 0
    %p49 = por %p47, %p48
    %p50 = scmp.ne.s32.totalorder %s36, %s37
    %p51 = scmp.eq.s32.totalorder %s15, 3
    %p52 = por %p50, %p51
    %p54 = scmp.ne.s32.totalorder %s37, %s53
    %p55 = scmp.eq.s32.totalorder %s15, 0
    %p56 = por %p54, %p55
    %s58 = sadd.s32 %s57, 1
    %p61 = scmp.eq.s32.totalorder %s9, 3
    %p62 = scmp.ne.s32.totalorder %s57, %s59
    %p63 = scmp.eq.s32.totalorder %s9, 0
    %p64 = por %p62, %p63
    %p65 = scmp.ne.s32.totalorder %s57, %s59
    %p66 = scmp.eq.s32.totalorder %s14, 3
    %p67 = por %p65, %p66
    %p68 = scmp.ne.s32.totalorder %s59, %s60
    %p69 = scmp.eq.s32.totalorder %s14, 0
    %p70 = por %p68, %p69
    %p71 = scmp.ne.s32.totalorder %s59, %s60
    %p72 = scmp.eq.s32.totalorder %s15, 3
    %p73 = por %p71, %p72
    %p75 = scmp.ne.s32.totalorder %s60, %s74
    %p76 = scmp.eq.s32.totalorder %s15, 0
    %p77 = por %p75, %p76
    %s79 = sadd.s32 %s78, 1
    %p82 = scmp.eq.s32.totalorder %s9, 3
    %p83 = scmp.ne.s32.totalorder %s78, %s80
    %p84 = scmp.eq.s32.totalorder %s9, 0
    %p85 = por %p83, %p84
    %p86 = scmp.ne.s32.totalorder %s78, %s80
    %p87 = scmp.eq.s32.totalorder %s14, 3
    %p88 = por %p86, %p87
    %p89 = scmp.ne.s32.totalorder %s80, %s81
    %p90 = scmp.eq.s32.totalorder %s14, 0
    %p91 = por %p89, %p90
    %p92 = scmp.ne.s32.totalorder %s80, %s81
    %p93 = scmp.eq.s32.totalorder %s15, 3
    %p94 = por %p92, %p93
    %p96 = scmp.ne.s32.totalorder %s81, %s95
    %p97 = scmp.eq.s32.totalorder %s15, 0
    %p98 = por %p96, %p97
    %s99 = ssub.s32 %s16, %s28
    %s100 = ssub.s32 %s17, %s24
    %s101 = sor.u32 %s99, %s100
    %p102 = scmp.eq.s32.totalorder %s101, 0
    %s104 = sadd.s32 %s103, 1
    %s105 = scalar_select %p102, %s103, %s104
    %p108 = pneg %p102
    %p109 = scmp.eq.s32.totalorder %s9, 3
    %p110 = por %p108, %p109
    %p111 = scmp.ne.s32.totalorder %s103, %s106
    %p112 = scmp.eq.s32.totalorder %s9, 0
    %p113 = por %p111, %p112
    %p114 = scmp.ne.s32.totalorder %s103, %s106
    %p115 = scmp.eq.s32.totalorder %s14, 3
    %p116 = por %p114, %p115
    %p117 = scmp.ne.s32.totalorder %s106, %s107
    %p118 = scmp.eq.s32.totalorder %s14, 0
    %p119 = por %p117, %p118
    %p120 = scmp.ne.s32.totalorder %s106, %s107
    %p121 = scmp.eq.s32.totalorder %s15, 3
    %p122 = por %p120, %p121
    %p124 = scmp.ne.s32.totalorder %s107, %s123
    %p125 = scmp.eq.s32.totalorder %s15, 0
    %p126 = por %p124, %p125
    %p127 = scmp.le.s32.totalorder 1, %s9
    %p128 = scmp.lt.s32.totalorder %s9, 5
    %p129 = pnand %p127, %p128
    %p130 = pneg %p129
    // Predicated region
    $region9: #{double_conv.7} parent=5 // pred_check
      _
    $region10: #{double_conv.7} parent=5 // pred_check_branch
      %132 = sbr.rel (%p129) target = $region12
    $region11: #{double_conv.7} parent=5 // pred_region
      %s133 = ssub.s32 %s9, 1
      // Predicated region
      $region13: #{double_conv.7} parent=11 // pred_check
        %p134 = pneg %p70
      $region14: #{double_conv.7} parent=11 // pred_check_branch
        %136 = sbr.rel (%p134) target = $region16
      $region15: #{double_conv.7} parent=11 // pred_region
        _
      $region16: #{double_conv.7} parent=11 // pred_fallthru
        _
      // Predicated region
      $region17: #{double_conv.7} parent=11 // pred_check
        %p137 = pneg %p91
      $region18: #{double_conv.7} parent=11 // pred_check_branch
        %139 = sbr.rel (%p137) target = $region20
      $region19: #{double_conv.7} parent=11 // pred_region
        _
      $region20: #{double_conv.7} parent=11 // pred_fallthru
        _
    $region12: #{double_conv.7} parent=5 // pred_fallthru
      _
    %p140 = scmp.lt.s32.totalorder %s9, 4
    // Predicated region
    $region21: #{double_conv.7} parent=5 // pred_check
      %p141 = pneg %p140
    $region22: #{double_conv.7} parent=5 // pred_check_branch
      %143 = sbr.rel (%p141) target = $region24
    $region23: #{double_conv.7} parent=5 // pred_region
      // Predicated region
      $region25: #{double_conv.7} parent=23 // pred_check
        %p144 = pneg %p43
      $region26: #{double_conv.7} parent=23 // pred_check_branch
        %146 = sbr.rel (%p144) target = $region28
      $region27: #{double_conv.7} parent=23 // pred_region
        %s147 = smul.u32 8, %s17
        %p148 = scmp.lt.s32.totalorder %s16, 1
        %s149 = scalar_select %p148, %s16, 1
        %p150 = scmp.lt.s32.totalorder %s147, 15
        %s151 = scalar_select %p150, %s147, 15
        %s152 = smul.addr %s151, 2
        %s153 = smul.addr %s149, 32
        %s154 = sadd.s32 %s152, %s153
        %s155 = smul.addr %s154, 8
        %s156 = scalar_lea.vmem %s0, %s155
        %s157 = smul.u32 8, %s17
      $region28: #{double_conv.7} parent=23 // pred_fallthru
        _
    $region24: #{double_conv.7} parent=5 // pred_fallthru
      _
    %p158 = scmp.le.s32.totalorder 1, %s9
    %p159 = scmp.lt.s32.totalorder %s9, 5
    %p160 = pnand %p158, %p159
    %p161 = pneg %p160
    // Predicated region
    $region29: #{double_conv.7} parent=5 // pred_check
      _
    $region30: #{double_conv.7} parent=5 // pred_check_branch
      %163 = sbr.rel (%p160) target = $region32
    $region31: #{double_conv.7} parent=5 // pred_region
      %s164 = ssub.s32 %s9, 1
      %s165 = smul.u32 8, %s19
      %p166 = scmp.lt.s32.totalorder %s18, 1
      %s167 = scalar_select %p166, %s18, 1
      %p168 = scmp.lt.s32.totalorder %s165, 15
      %s169 = scalar_select %p168, %s165, 15
      %s170 = smul.addr %s169, 2
      %s171 = smul.addr %s167, 32
      %s172 = sadd.s32 %s170, %s171
      %s173 = smul.addr %s172, 8
      %s174 = scalar_lea.vmem %s0, %s173
      %p175 = pneg %p49
      %p176 = pneg %p46
      %p177 = pneg %p70
      %p178 = pneg %p67
      %p179 = pneg %p91
      %p180 = pneg %p88
      %p181 = pneg %p119
      %p182 = pneg %p116
      %s183 = smul.u32 8, %s19
      %p184 = scmp.lt.s32.totalorder %s18, 1
      %s185 = scalar_select %p184, %s18, 1
      %p186 = scmp.lt.s32.totalorder %s183, 15
      %s187 = scalar_select %p186, %s183, 15
      %s188 = smul.addr %s187, 2
      %s189 = smul.addr %s185, 32
      %s190 = sadd.s32 %s188, %s189
      %s191 = smul.addr %s190, 8
      %s192 = scalar_lea.vmem %s3, %s191
      %s193 = smul.u32 8, %s19
      %p194 = scmp.lt.s32.totalorder %s18, 1
      %s195 = scalar_select %p194, %s18, 1
      %p196 = scmp.lt.s32.totalorder %s193, 15
      %s197 = scalar_select %p196, %s193, 15
      %s198 = smul.addr %s197, 2
      %s199 = smul.addr %s195, 32
      %s200 = sadd.s32 %s198, %s199
      %s201 = smul.addr %s200, 8
      %s202 = scalar_lea.vmem %s0, %s201
      %s203 = smul.u32 8, %s19
      %s204 = smul.u32 8, %s19
      %p205 = scmp.lt.s32.totalorder %s18, 1
      %s206 = scalar_select %p205, %s18, 1
      %p207 = scmp.lt.s32.totalorder %s204, 15
      %s208 = scalar_select %p207, %s204, 15
      %s209 = smul.addr %s208, 2
      %s210 = smul.addr %s206, 32
      %s211 = sadd.s32 %s209, %s210
      %s212 = smul.addr %s211, 8
      %s213 = scalar_lea.vmem %s3, %s212
      %s214 = smul.u32 8, %s19
      %v215 = vld [vmem:[%s1] sm:$0x1]
      %v216 = vld [vmem:[%s2] sm:$0x1]
      %v217 = vld [vmem:[%s202] sm:$0xff]
      %v218 = vld [vmem:[%s202 + $0x8] sm:$0xff]
      %v219 = vld [vmem:[%s202 + $0x10] sm:$0xff]
      %v220 = vld [vmem:[%s202 + $0x18] sm:$0xff]
      %v221 = vld [vmem:[%s202 + $0x20] sm:$0xff]
      %v222 = vld [vmem:[%s202 + $0x28] sm:$0xff]
      %v223 = vld [vmem:[%s202 + $0x30] sm:$0xff]
      %v224 = vld [vmem:[%s202 + $0x38] sm:$0xff]
      %v225 = vld [vmem:[%s202 + $0x40] sm:$0xff]
      %v226 = vld [vmem:[%s202 + $0x48] sm:$0xff]
      %v227 = vld [vmem:[%s202 + $0x50] sm:$0xff]
      %v228 = vld [vmem:[%s202 + $0x58] sm:$0xff]
      %v229 = vld [vmem:[%s202 + $0x60] sm:$0xff]
      %v230 = vld [vmem:[%s202 + $0x68] sm:$0xff]
      %v231 = vld [vmem:[%s202 + $0x70] sm:$0xff]
      %v232 = vld [vmem:[%s202 + $0x78] sm:$0xff]
      %v234 = vlaneseq
      %v235 = vshrl.u32 %v234, 7
      %v236 = vsub.s32 0, %v235
      %v237 = vrot.slane %v215, %v236
      %v239 = vmul.f32 %v217, %v237
      %v240 = vmul.f32 %v218, %v237
      %v241 = vmul.f32 %v219, %v237
      %v242 = vmul.f32 %v220, %v237
      %v243 = vmul.f32 %v221, %v237
      %v244 = vmul.f32 %v222, %v237
      %v245 = vmul.f32 %v223, %v237
      %v246 = vmul.f32 %v224, %v237
      %v247 = vmul.f32 %v225, %v237
      %v248 = vmul.f32 %v226, %v237
      %v249 = vmul.f32 %v227, %v237
      %v250 = vmul.f32 %v228, %v237
      %v251 = vmul.f32 %v229, %v237
      %v252 = vmul.f32 %v230, %v237
      %v253 = vmul.f32 %v231, %v237
      %v254 = vmul.f32 %v232, %v237
      %v256 = vlaneseq
      %v257 = vshrl.u32 %v256, 7
      %v258 = vsub.s32 0, %v257
      %v259 = vrot.slane %v216, %v258
      %v261 = vadd.f32 %v239, %v259
      %v262 = vadd.f32 %v240, %v259
      %v263 = vadd.f32 %v241, %v259
      %v264 = vadd.f32 %v242, %v259
      %v265 = vadd.f32 %v243, %v259
      %v266 = vadd.f32 %v244, %v259
      %v267 = vadd.f32 %v245, %v259
      %v268 = vadd.f32 %v246, %v259
      %v269 = vadd.f32 %v247, %v259
      %v270 = vadd.f32 %v248, %v259
      %v271 = vadd.f32 %v249, %v259
      %v272 = vadd.f32 %v250, %v259
      %v273 = vadd.f32 %v251, %v259
      %v274 = vadd.f32 %v252, %v259
      %v275 = vadd.f32 %v253, %v259
      %v276 = vadd.f32 %v254, %v259
      %v277 = vmax.f32 %v261, 0.0
      %v278 = vmax.f32 %v262, 0.0
      %v279 = vmax.f32 %v263, 0.0
      %v280 = vmax.f32 %v264, 0.0
      %v281 = vmax.f32 %v265, 0.0
      %v282 = vmax.f32 %v266, 0.0
      %v283 = vmax.f32 %v267, 0.0
      %v284 = vmax.f32 %v268, 0.0
      %v285 = vmax.f32 %v269, 0.0
      %v286 = vmax.f32 %v270, 0.0
      %v287 = vmax.f32 %v271, 0.0
      %v288 = vmax.f32 %v272, 0.0
      %v289 = vmax.f32 %v273, 0.0
      %v290 = vmax.f32 %v274, 0.0
      %v291 = vmax.f32 %v275, 0.0
      %v292 = vmax.f32 %v276, 0.0
      %293 = vst [vmem:[%s213] sm:$0xff] %v277
      %294 = vst [vmem:[%s213 + $0x8] sm:$0xff] %v278
      %295 = vst [vmem:[%s213 + $0x10] sm:$0xff] %v279
      %296 = vst [vmem:[%s213 + $0x18] sm:$0xff] %v280
      %297 = vst [vmem:[%s213 + $0x20] sm:$0xff] %v281
      %298 = vst [vmem:[%s213 + $0x28] sm:$0xff] %v282
      %299 = vst [vmem:[%s213 + $0x30] sm:$0xff] %v283
      %300 = vst [vmem:[%s213 + $0x38] sm:$0xff] %v284
      %301 = vst [vmem:[%s213 + $0x40] sm:$0xff] %v285
      %302 = vst [vmem:[%s213 + $0x48] sm:$0xff] %v286
      %303 = vst [vmem:[%s213 + $0x50] sm:$0xff] %v287
      %304 = vst [vmem:[%s213 + $0x58] sm:$0xff] %v288
      %305 = vst [vmem:[%s213 + $0x60] sm:$0xff] %v289
      %306 = vst [vmem:[%s213 + $0x68] sm:$0xff] %v290
      %307 = vst [vmem:[%s213 + $0x70] sm:$0xff] %v291
      %308 = vst [vmem:[%s213 + $0x78] sm:$0xff] %v292
      %s309 = smul.u32 8, %s19
      %p310 = scmp.lt.s32.totalorder %s18, 1
      %s311 = scalar_select %p310, %s18, 1
      %p312 = scmp.lt.s32.totalorder %s309, 15
      %s313 = scalar_select %p312, %s309, 15
      %s314 = smul.addr %s313, 2
      %s315 = smul.addr %s311, 32
      %s316 = sadd.s32 %s314, %s315
      %s317 = smul.addr %s316, 8
      %s318 = scalar_lea.vmem %s3, %s317
      // Predicated region
      $region33: #{double_conv.7} parent=31 // pred_check
        %p319 = pneg %p116
      $region34: #{double_conv.7} parent=31 // pred_check_branch
        %321 = sbr.rel (%p319) target = $region36
      $region35: #{double_conv.7} parent=31 // pred_region
        %s322 = smul.u32 8, %s19
      $region36: #{double_conv.7} parent=31 // pred_fallthru
        _
    $region32: #{double_conv.7} parent=5 // pred_fallthru
      _
    %p323 = scmp.le.s32.totalorder 2, %s9
    // Predicated region
    $region37: #{double_conv.7} parent=5 // pred_check
      %p324 = pneg %p323
    $region38: #{double_conv.7} parent=5 // pred_check_branch
      %326 = sbr.rel (%p324) target = $region40
    $region39: #{double_conv.7} parent=5 // pred_region
      %s327 = ssub.s32 %s9, 2
      // Predicated region
      $region41: #{double_conv.7} parent=39 // pred_check
        %p328 = pneg %p122
      $region42: #{double_conv.7} parent=39 // pred_check_branch
        %330 = sbr.rel (%p328) target = $region44
      $region43: #{double_conv.7} parent=39 // pred_region
        %s331 = smul.u32 8, %s21
        %p332 = scmp.lt.s32.totalorder %s20, 1
        %s333 = scalar_select %p332, %s20, 1
        %p334 = scmp.lt.s32.totalorder %s331, 15
        %s335 = scalar_select %p334, %s331, 15
        %s336 = smul.addr %s335, 2
        %s337 = smul.addr %s333, 32
        %s338 = sadd.s32 %s336, %s337
        %s339 = smul.addr %s338, 8
        %s340 = scalar_lea.vmem %s3, %s339
      $region44: #{double_conv.7} parent=39 // pred_fallthru
        _
    $region40: #{double_conv.7} parent=5 // pred_fallthru
      _
  $region6: #{double_conv.7} parent=0 // loop_footer
    %s13 = sadd.s32 1, %s9
  $region7: #{double_conv.7} parent=0 // loop_footer_branch
    %8 = sbr.rel target = $region3
  $region8: #{double_conv.7} parent=0 // loop_exit
    _

// kernel: double_conv.5
$region0: #{double_conv.5}
  #allocation0 [shape = 'u32[]', space=smem, size = 0x4, offset = 0x4, fixed_abs, tag = 'smem constant byte address 0x4 - core index']
  #allocation1 [shape = 'u32[144,128]{1,0:T(1,128)}', space=vmem, size = 0x12000, scoped, tag = 'internal scratch']
  %s0 = inlined_call_operand.vmem [shape: f32[2,16,16,128], index: 0, kind: input, shape index: {}]
  %s1 = inlined_call_operand.vmem [shape: f32[1,128], index: 1, kind: input, shape index: {}]
  %s2 = inlined_call_operand.vmem [shape: f32[1,128], index: 2, kind: input, shape index: {}]
  %s3 = inlined_call_operand.vmem [shape: bf16[2,16,16,128], index: 3, kind: output, shape index: {}]
  %s4 = sld [smem:[#allocation0]]
  $region45: #{double_conv.5} parent=0
    _
  %s6 = ssub.s32 1, %s4
  %s7 = scalar_select 0, %s6, %s4
  loop: start=0, step=1, limit=6
  $region2: #{double_conv.5} parent=0 // loop_pre_header
    _
  $region3: #{double_conv.5} parent=0 // loop_header
    %s9 = sphi 0, %s13
    %p10 = scmp.ge.s32.totalorder %s9, 6
    %s16 = sphi 0, %s28
    %s17 = sphi 0, %s24
    %s18 = sphi 0, %s16
    %s19 = sphi 0, %s17
    %s20 = sphi 0, %s18
    %s21 = sphi 0, %s19
    %s33 = sphi 0, %s35
    %s36 = sphi 0, %s33
    %s37 = sphi 0, %s36
    %s53 = sphi 0, %s37
    %s57 = sphi 0, %s57
    %s59 = sphi 0, %s57
    %s60 = sphi 0, %s59
    %s74 = sphi 0, %s60
    %s78 = sphi 0, %s78
    %s80 = sphi 0, %s78
    %s81 = sphi 0, %s80
    %s95 = sphi 0, %s81
    %s103 = sphi 0, %s105
    %s106 = sphi 0, %s103
    %s107 = sphi 0, %s106
    %s123 = sphi 0, %s107
  $region4: #{double_conv.5} parent=0 // loop_header_branch
    %12 = sbr.rel (%p10) target = $region8
  $region5: #{double_conv.5} parent=0 // loop_body
    %s14 = ssub.s32 %s9, 1
    %s15 = ssub.s32 %s9, 2
    %s22 = sadd.s32 1, %s17
    %p23 = scmp.ge.s32.totalorder %s22, 2
    %s24 = scalar_select %p23, 0, %s22
    %s25 = sadd.s32 1, %s16
    %s26 = scalar_select %p23, %s25, %s16
    %p27 = scmp.ge.s32.totalorder %s26, 2
    %s28 = scalar_select %p27, 0, %s26
    %s29 = ssub.s32 %s16, %s28
    %s30 = ssub.s32 %s17, %s24
    %s31 = sor.u32 %s29, %s30
    %p32 = scmp.eq.s32.totalorder %s31, 0
    %s34 = sadd.s32 %s33, 1
    %s35 = scalar_select %p32, %s33, %s34
    %p38 = pneg %p32
    %p39 = scmp.eq.s32.totalorder %s9, 3
    %p40 = por %p38, %p39
    %p41 = scmp.ne.s32.totalorder %s33, %s36
    %p42 = scmp.eq.s32.totalorder %s9, 0
    %p43 = por %p41, %p42
    %p44 = scmp.ne.s32.totalorder %s33, %s36
    %p45 = scmp.eq.s32.totalorder %s14, 3
    %p46 = por %p44, %p45
    %p47 = scmp.ne.s32.totalorder %s36, %s37
    %p48 = scmp.eq.s32.totalorder %s14, 0
    %p49 = por %p47, %p48
    %p50 = scmp.ne.s32.totalorder %s36, %s37
    %p51 = scmp.eq.s32.totalorder %s15, 3
    %p52 = por %p50, %p51
    %p54 = scmp.ne.s32.totalorder %s37, %s53
    %p55 = scmp.eq.s32.totalorder %s15, 0
    %p56 = por %p54, %p55
    %s58 = sadd.s32 %s57, 1
    %p61 = scmp.eq.s32.totalorder %s9, 3
    %p62 = scmp.ne.s32.totalorder %s57, %s59
    %p63 = scmp.eq.s32.totalorder %s9, 0
    %p64 = por %p62, %p63
    %p65 = scmp.ne.s32.totalorder %s57, %s59
    %p66 = scmp.eq.s32.totalorder %s14, 3
    %p67 = por %p65, %p66
    %p68 = scmp.ne.s32.totalorder %s59, %s60
    %p69 = scmp.eq.s32.totalorder %s14, 0
    %p70 = por %p68, %p69
    %p71 = scmp.ne.s32.totalorder %s59, %s60
    %p72 = scmp.eq.s32.totalorder %s15, 3
    %p73 = por %p71, %p72
    %p75 = scmp.ne.s32.totalorder %s60, %s74
    %p76 = scmp.eq.s32.totalorder %s15, 0
    %p77 = por %p75, %p76
    %s79 = sadd.s32 %s78, 1
    %p82 = scmp.eq.s32.totalorder %s9, 3
    %p83 = scmp.ne.s32.totalorder %s78, %s80
    %p84 = scmp.eq.s32.totalorder %s9, 0
    %p85 = por %p83, %p84
    %p86 = scmp.ne.s32.totalorder %s78, %s80
    %p87 = scmp.eq.s32.totalorder %s14, 3
    %p88 = por %p86, %p87
    %p89 = scmp.ne.s32.totalorder %s80, %s81
    %p90 = scmp.eq.s32.totalorder %s14, 0
    %p91 = por %p89, %p90
    %p92 = scmp.ne.s32.totalorder %s80, %s81
    %p93 = scmp.eq.s32.totalorder %s15, 3
    %p94 = por %p92, %p93
    %p96 = scmp.ne.s32.totalorder %s81, %s95
    %p97 = scmp.eq.s32.totalorder %s15, 0
    %p98 = por %p96, %p97
    %s99 = ssub.s32 %s16, %s28
    %s100 = ssub.s32 %s17, %s24
    %s101 = sor.u32 %s99, %s100
    %p102 = scmp.eq.s32.totalorder %s101, 0
    %s104 = sadd.s32 %s103, 1
    %s105 = scalar_select %p102, %s103, %s104
    %p108 = pneg %p102
    %p109 = scmp.eq.s32.totalorder %s9, 3
    %p110 = por %p108, %p109
    %p111 = scmp.ne.s32.totalorder %s103, %s106
    %p112 = scmp.eq.s32.totalorder %s9, 0
    %p113 = por %p111, %p112
    %p114 = scmp.ne.s32.totalorder %s103, %s106
    %p115 = scmp.eq.s32.totalorder %s14, 3
    %p116 = por %p114, %p115
    %p117 = scmp.ne.s32.totalorder %s106, %s107
    %p118 = scmp.eq.s32.totalorder %s14, 0
    %p119 = por %p117, %p118
    %p120 = scmp.ne.s32.totalorder %s106, %s107
    %p121 = scmp.eq.s32.totalorder %s15, 3
    %p122 = por %p120, %p121
    %p124 = scmp.ne.s32.totalorder %s107, %s123
    %p125 = scmp.eq.s32.totalorder %s15, 0
    %p126 = por %p124, %p125
    %p127 = scmp.le.s32.totalorder 1, %s9
    %p128 = scmp.lt.s32.totalorder %s9, 5
    %p129 = pnand %p127, %p128
    %p130 = pneg %p129
    // Predicated region
    $region9: #{double_conv.5} parent=5 // pred_check
      _
    $region10: #{double_conv.5} parent=5 // pred_check_branch
      %132 = sbr.rel (%p129) target = $region12
    $region11: #{double_conv.5} parent=5 // pred_region
      %s133 = ssub.s32 %s9, 1
      // Predicated region
      $region13: #{double_conv.5} parent=11 // pred_check
        %p134 = pneg %p70
      $region14: #{double_conv.5} parent=11 // pred_check_branch
        %136 = sbr.rel (%p134) target = $region16
      $region15: #{double_conv.5} parent=11 // pred_region
        _
      $region16: #{double_conv.5} parent=11 // pred_fallthru
        _
      // Predicated region
      $region17: #{double_conv.5} parent=11 // pred_check
        %p137 = pneg %p91
      $region18: #{double_conv.5} parent=11 // pred_check_branch
        %139 = sbr.rel (%p137) target = $region20
      $region19: #{double_conv.5} parent=11 // pred_region
        _
      $region20: #{double_conv.5} parent=11 // pred_fallthru
        _
    $region12: #{double_conv.5} parent=5 // pred_fallthru
      _
    %p140 = scmp.lt.s32.totalorder %s9, 4
    // Predicated region
    $region21: #{double_conv.5} parent=5 // pred_check
      %p141 = pneg %p140
    $region22: #{double_conv.5} parent=5 // pred_check_branch
      %143 = sbr.rel (%p141) target = $region24
    $region23: #{double_conv.5} parent=5 // pred_region
      // Predicated region
      $region25: #{double_conv.5} parent=23 // pred_check
        %p144 = pneg %p43
      $region26: #{double_conv.5} parent=23 // pred_check_branch
        %146 = sbr.rel (%p144) target = $region28
      $region27: #{double_conv.5} parent=23 // pred_region
        %s147 = smul.u32 8, %s17
        %p148 = scmp.lt.s32.totalorder %s16, 1
        %s149 = scalar_select %p148, %s16, 1
        %p150 = scmp.lt.s32.totalorder %s147, 15
        %s151 = scalar_select %p150, %s147, 15
        %s152 = smul.addr %s151, 2
        %s153 = smul.addr %s149, 32
        %s154 = sadd.s32 %s152, %s153
        %s155 = smul.addr %s154, 8
        %s156 = scalar_lea.vmem %s0, %s155
        %s157 = smul.u32 8, %s17
      $region28: #{double_conv.5} parent=23 // pred_fallthru
        _
    $region24: #{double_conv.5} parent=5 // pred_fallthru
      _
    %p158 = scmp.le.s32.totalorder 1, %s9
    %p159 = scmp.lt.s32.totalorder %s9, 5
    %p160 = pnand %p158, %p159
    %p161 = pneg %p160
    // Predicated region
    $region29: #{double_conv.5} parent=5 // pred_check
      _
    $region30: #{double_conv.5} parent=5 // pred_check_branch
      %163 = sbr.rel (%p160) target = $region32
    $region31: #{double_conv.5} parent=5 // pred_region
      %s164 = ssub.s32 %s9, 1
      %s165 = smul.u32 8, %s19
      %p166 = scmp.lt.s32.totalorder %s18, 1
      %s167 = scalar_select %p166, %s18, 1
      %p168 = scmp.lt.s32.totalorder %s165, 15
      %s169 = scalar_select %p168, %s165, 15
      %s170 = smul.addr %s169, 2
      %s171 = smul.addr %s167, 32
      %s172 = sadd.s32 %s170, %s171
      %s173 = smul.addr %s172, 8
      %s174 = scalar_lea.vmem %s0, %s173
      %p175 = pneg %p49
      %p176 = pneg %p46
      %p177 = pneg %p70
      %p178 = pneg %p67
      %p179 = pneg %p91
      %p180 = pneg %p88
      %p181 = pneg %p119
      %p182 = pneg %p116
      %s183 = smul.u32 8, %s19
      %p184 = scmp.lt.s32.totalorder %s18, 1
      %s185 = scalar_select %p184, %s18, 1
      %p186 = scmp.lt.s32.totalorder %s183, 15
      %s187 = scalar_select %p186, %s183, 15
      %s188 = smul.addr %s187, 2
      %s189 = smul.addr %s185, 32
      %s190 = sadd.s32 %s188, %s189
      %s191 = smul.addr %s190, 4
      %s192 = scalar_lea.vmem %s3, %s191
      %s193 = smul.u32 8, %s19
      %p194 = scmp.lt.s32.totalorder %s18, 1
      %s195 = scalar_select %p194, %s18, 1
      %p196 = scmp.lt.s32.totalorder %s193, 15
      %s197 = scalar_select %p196, %s193, 15
      %s198 = smul.addr %s197, 2
      %s199 = smul.addr %s195, 32
      %s200 = sadd.s32 %s198, %s199
      %s201 = smul.addr %s200, 8
      %s202 = scalar_lea.vmem %s0, %s201
      %s203 = smul.u32 8, %s19
      %s204 = smul.u32 8, %s19
      %p205 = scmp.lt.s32.totalorder %s18, 1
      %s206 = scalar_select %p205, %s18, 1
      %p207 = scmp.lt.s32.totalorder %s204, 15
      %s208 = scalar_select %p207, %s204, 15
      %s209 = smul.addr %s208, 2
      %s210 = smul.addr %s206, 32
      %s211 = sadd.s32 %s209, %s210
      %s212 = smul.addr %s211, 4
      %s213 = scalar_lea.vmem %s3, %s212
      %s214 = smul.u32 8, %s19
      %v215 = vld [vmem:[%s1] sm:$0x1]
      %v216 = vld [vmem:[%s2] sm:$0x1]
      %v217 = vld [vmem:[%s202] sm:$0xff]
      %v218 = vld [vmem:[%s202 + $0x8] sm:$0xff]
      %v219 = vld [vmem:[%s202 + $0x10] sm:$0xff]
      %v220 = vld [vmem:[%s202 + $0x18] sm:$0xff]
      %v221 = vld [vmem:[%s202 + $0x20] sm:$0xff]
      %v222 = vld [vmem:[%s202 + $0x28] sm:$0xff]
      %v223 = vld [vmem:[%s202 + $0x30] sm:$0xff]
      %v224 = vld [vmem:[%s202 + $0x38] sm:$0xff]
      %v225 = vld [vmem:[%s202 + $0x40] sm:$0xff]
      %v226 = vld [vmem:[%s202 + $0x48] sm:$0xff]
      %v227 = vld [vmem:[%s202 + $0x50] sm:$0xff]
      %v228 = vld [vmem:[%s202 + $0x58] sm:$0xff]
      %v229 = vld [vmem:[%s202 + $0x60] sm:$0xff]
      %v230 = vld [vmem:[%s202 + $0x68] sm:$0xff]
      %v231 = vld [vmem:[%s202 + $0x70] sm:$0xff]
      %v232 = vld [vmem:[%s202 + $0x78] sm:$0xff]
      %v234 = vlaneseq
      %v235 = vshrl.u32 %v234, 7
      %v236 = vsub.s32 0, %v235
      %v237 = vrot.slane %v215, %v236
      %v239 = vmul.f32 %v217, %v237
      %v240 = vmul.f32 %v218, %v237
      %v241 = vmul.f32 %v219, %v237
      %v242 = vmul.f32 %v220, %v237
      %v243 = vmul.f32 %v221, %v237
      %v244 = vmul.f32 %v222, %v237
      %v245 = vmul.f32 %v223, %v237
      %v246 = vmul.f32 %v224, %v237
      %v247 = vmul.f32 %v225, %v237
      %v248 = vmul.f32 %v226, %v237
      %v249 = vmul.f32 %v227, %v237
      %v250 = vmul.f32 %v228, %v237
      %v251 = vmul.f32 %v229, %v237
      %v252 = vmul.f32 %v230, %v237
      %v253 = vmul.f32 %v231, %v237
      %v254 = vmul.f32 %v232, %v237
      %v256 = vlaneseq
      %v257 = vshrl.u32 %v256, 7
      %v258 = vsub.s32 0, %v257
      %v259 = vrot.slane %v216, %v258
      %v261 = vadd.f32 %v239, %v259
      %v262 = vadd.f32 %v240, %v259
      %v263 = vadd.f32 %v241, %v259
      %v264 = vadd.f32 %v242, %v259
      %v265 = vadd.f32 %v243, %v259
      %v266 = vadd.f32 %v244, %v259
      %v267 = vadd.f32 %v245, %v259
      %v268 = vadd.f32 %v246, %v259
      %v269 = vadd.f32 %v247, %v259
      %v270 = vadd.f32 %v248, %v259
      %v271 = vadd.f32 %v249, %v259
      %v272 = vadd.f32 %v250, %v259
      %v273 = vadd.f32 %v251, %v259
      %v274 = vadd.f32 %v252, %v259
      %v275 = vadd.f32 %v253, %v259
      %v276 = vadd.f32 %v254, %v259
      %v277 = vmax.f32 %v261, 0.0
      %v278 = vmax.f32 %v262, 0.0
      %v279 = vmax.f32 %v263, 0.0
      %v280 = vmax.f32 %v264, 0.0
      %v281 = vmax.f32 %v265, 0.0
      %v282 = vmax.f32 %v266, 0.0
      %v283 = vmax.f32 %v267, 0.0
      %v284 = vmax.f32 %v268, 0.0
      %v285 = vmax.f32 %v269, 0.0
      %v286 = vmax.f32 %v270, 0.0
      %v287 = vmax.f32 %v271, 0.0
      %v288 = vmax.f32 %v272, 0.0
      %v289 = vmax.f32 %v273, 0.0
      %v290 = vmax.f32 %v274, 0.0
      %v291 = vmax.f32 %v275, 0.0
      %v292 = vmax.f32 %v276, 0.0
      %v293 = vpack.c.bf16 %v278, %v277
      %v294 = vpack.c.bf16 %v280, %v279
      %v295 = vpack.c.bf16 %v282, %v281
      %v296 = vpack.c.bf16 %v284, %v283
      %v297 = vpack.c.bf16 %v286, %v285
      %v298 = vpack.c.bf16 %v288, %v287
      %v299 = vpack.c.bf16 %v290, %v289
      %v300 = vpack.c.bf16 %v292, %v291
      %v309 = vunpack.c.l.b16 %v293
      %v310 = vunpack.c.h.b16 %v293
      %v311 = vunpack.c.l.b16 %v294
      %v312 = vunpack.c.h.b16 %v294
      %v313 = vunpack.c.l.b16 %v295
      %v314 = vunpack.c.h.b16 %v295
      %v315 = vunpack.c.l.b16 %v296
      %v316 = vunpack.c.h.b16 %v296
      %v317 = vunpack.c.l.b16 %v297
      %v318 = vunpack.c.h.b16 %v297
      %v319 = vunpack.c.l.b16 %v298
      %v320 = vunpack.c.h.b16 %v298
      %v321 = vunpack.c.l.b16 %v299
      %v322 = vunpack.c.h.b16 %v299
      %v323 = vunpack.c.l.b16 %v300
      %v324 = vunpack.c.h.b16 %v300
      %v325 = vpack.c.b16 %v309, %v309
      %v326 = vpack.c.b16 %v310, %v310
      %v327 = vpack.c.b16 %v311, %v311
      %v328 = vpack.c.b16 %v312, %v312
      %v329 = vpack.c.b16 %v313, %v313
      %v330 = vpack.c.b16 %v314, %v314
      %v331 = vpack.c.b16 %v315, %v315
      %v332 = vpack.c.b16 %v316, %v316
      %v333 = vpack.c.b16 %v317, %v317
      %v334 = vpack.c.b16 %v318, %v318
      %v335 = vpack.c.b16 %v319, %v319
      %v336 = vpack.c.b16 %v320, %v320
      %v337 = vpack.c.b16 %v321, %v321
      %v338 = vpack.c.b16 %v322, %v322
      %v339 = vpack.c.b16 %v323, %v323
      %v340 = vpack.c.b16 %v324, %v324
      %357 = vst [vmem:[%s213] sm:$0xf] %v325
      %358 = vst [vmem:[%s213 + $0x4] sm:$0xf] %v326
      %359 = vst [vmem:[%s213 + $0x8] sm:$0xf] %v327
      %360 = vst [vmem:[%s213 + $0xc] sm:$0xf] %v328
      %361 = vst [vmem:[%s213 + $0x10] sm:$0xf] %v329
      %362 = vst [vmem:[%s213 + $0x14] sm:$0xf] %v330
      %363 = vst [vmem:[%s213 + $0x18] sm:$0xf] %v331
      %364 = vst [vmem:[%s213 + $0x1c] sm:$0xf] %v332
      %365 = vst [vmem:[%s213 + $0x20] sm:$0xf] %v333
      %366 = vst [vmem:[%s213 + $0x24] sm:$0xf] %v334
      %367 = vst [vmem:[%s213 + $0x28] sm:$0xf] %v335
      %368 = vst [vmem:[%s213 + $0x2c] sm:$0xf] %v336
      %369 = vst [vmem:[%s213 + $0x30] sm:$0xf] %v337
      %370 = vst [vmem:[%s213 + $0x34] sm:$0xf] %v338
      %371 = vst [vmem:[%s213 + $0x38] sm:$0xf] %v339
      %372 = vst [vmem:[%s213 + $0x3c] sm:$0xf] %v340
      %s373 = smul.u32 8, %s19
      %p374 = scmp.lt.s32.totalorder %s18, 1
      %s375 = scalar_select %p374, %s18, 1
      %p376 = scmp.lt.s32.totalorder %s373, 15
      %s377 = scalar_select %p376, %s373, 15
      %s378 = smul.addr %s377, 2
      %s379 = smul.addr %s375, 32
      %s380 = sadd.s32 %s378, %s379
      %s381 = smul.addr %s380, 4
      %s382 = scalar_lea.vmem %s3, %s381
      // Predicated region
      $region33: #{double_conv.5} parent=31 // pred_check
        %p383 = pneg %p116
      $region34: #{double_conv.5} parent=31 // pred_check_branch
        %385 = sbr.rel (%p383) target = $region36
      $region35: #{double_conv.5} parent=31 // pred_region
        %s386 = smul.u32 8, %s19
      $region36: #{double_conv.5} parent=31 // pred_fallthru
        _
    $region32: #{double_conv.5} parent=5 // pred_fallthru
      _
    %p387 = scmp.le.s32.totalorder 2, %s9
    // Predicated region
    $region37: #{double_conv.5} parent=5 // pred_check
      %p388 = pneg %p387
    $region38: #{double_conv.5} parent=5 // pred_check_branch
      %390 = sbr.rel (%p388) target = $region40
    $region39: #{double_conv.5} parent=5 // pred_region
      %s391 = ssub.s32 %s9, 2
      // Predicated region
      $region41: #{double_conv.5} parent=39 // pred_check
        %p392 = pneg %p122
      $region42: #{double_conv.5} parent=39 // pred_check_branch
        %394 = sbr.rel (%p392) target = $region44
      $region43: #{double_conv.5} parent=39 // pred_region
        %s395 = smul.u32 8, %s21
        %p396 = scmp.lt.s32.totalorder %s20, 1
        %s397 = scalar_select %p396, %s20, 1
        %p398 = scmp.lt.s32.totalorder %s395, 15
        %s399 = scalar_select %p398, %s395, 15
        %s400 = smul.addr %s399, 2
        %s401 = smul.addr %s397, 32
        %s402 = sadd.s32 %s400, %s401
        %s403 = smul.addr %s402, 4
        %s404 = scalar_lea.vmem %s3, %s403
      $region44: #{double_conv.5} parent=39 // pred_fallthru
        _
    $region40: #{double_conv.5} parent=5 // pred_fallthru
      _
  $region6: #{double_conv.5} parent=0 // loop_footer
    %s13 = sadd.s32 1, %s9
  $region7: #{double_conv.5} parent=0 // loop_footer_branch
    %8 = sbr.rel target = $region3
  $region8: #{double_conv.5} parent=0 // loop_exit
    _

// kernel: double_conv.4
$region0: #{double_conv.4}
  #allocation0 [shape = 'u32[]', space=smem, size = 0x4, offset = 0x4, fixed_abs, tag = 'smem constant byte address 0x4 - core index']
  #allocation1 [shape = 'u32[144,128]{1,0:T(1,128)}', space=vmem, size = 0x12000, scoped, tag = 'internal scratch']
  %s0 = inlined_call_operand.vmem [shape: bf16[2,18,18,4], index: 0, kind: input, shape index: {}]
  %s1 = inlined_call_operand.vmem [shape: bf16[9,4,128], index: 1, kind: input, shape index: {}]
  %s2 = inlined_call_operand.vmem [shape: f32[2,16,16,128], index: 2, kind: output, shape index: {0}]
  %s3 = inlined_call_operand.vmem [shape: f32[2,2,2,128], index: 3, kind: output, shape index: {1}]
  %4 = xla_tuple %s2, %s3
  %s5 = sld [smem:[#allocation0]]
  $region49: #{double_conv.4} parent=0
    _
  %s7 = ssub.s32 1, %s5
  %s8 = scalar_select 0, %s7, %s5
  loop: start=0, step=1, limit=6
  $region2: #{double_conv.4} parent=0 // loop_pre_header
    _
  $region3: #{double_conv.4} parent=0 // loop_header
    %s10 = sphi 0, %s14
    %p11 = scmp.ge.s32.totalorder %s10, 6
    %s17 = sphi 0, %s29
    %s18 = sphi 0, %s25
    %s19 = sphi 0, %s17
    %s20 = sphi 0, %s18
    %s21 = sphi 0, %s19
    %s22 = sphi 0, %s20
    %s32 = sphi 0, %s34
    %s35 = sphi 0, %s32
    %s36 = sphi 0, %s35
    %s52 = sphi 0, %s36
    %s56 = sphi 0, %s56
    %s58 = sphi 0, %s56
    %s59 = sphi 0, %s58
    %s73 = sphi 0, %s59
    %s81 = sphi 0, %s83
    %s84 = sphi 0, %s81
    %s85 = sphi 0, %s84
    %s101 = sphi 0, %s85
    %s109 = sphi 0, %s111
    %s112 = sphi 0, %s109
    %s113 = sphi 0, %s112
    %s129 = sphi 0, %s113
  $region4: #{double_conv.4} parent=0 // loop_header_branch
    %13 = sbr.rel (%p11) target = $region8
  $region5: #{double_conv.4} parent=0 // loop_body
    %s15 = ssub.s32 %s10, 1
    %s16 = ssub.s32 %s10, 2
    %s23 = sadd.s32 1, %s18
    %p24 = scmp.ge.s32.totalorder %s23, 2
    %s25 = scalar_select %p24, 0, %s23
    %s26 = sadd.s32 1, %s17
    %s27 = scalar_select %p24, %s26, %s17
    %p28 = scmp.ge.s32.totalorder %s27, 2
    %s29 = scalar_select %p28, 0, %s27
    %s30 = ssub.s32 %s17, %s29
    %p31 = scmp.eq.s32.totalorder %s30, 0
    %s33 = sadd.s32 %s32, 1
    %s34 = scalar_select %p31, %s32, %s33
    %p37 = pneg %p31
    %p38 = scmp.eq.s32.totalorder %s10, 3
    %p39 = por %p37, %p38
    %p40 = scmp.ne.s32.totalorder %s32, %s35
    %p41 = scmp.eq.s32.totalorder %s10, 0
    %p42 = por %p40, %p41
    %p43 = scmp.ne.s32.totalorder %s32, %s35
    %p44 = scmp.eq.s32.totalorder %s15, 3
    %p45 = por %p43, %p44
    %p46 = scmp.ne.s32.totalorder %s35, %s36
    %p47 = scmp.eq.s32.totalorder %s15, 0
    %p48 = por %p46, %p47
    %p49 = scmp.ne.s32.totalorder %s35, %s36
    %p50 = scmp.eq.s32.totalorder %s16, 3
    %p51 = por %p49, %p50
    %p53 = scmp.ne.s32.totalorder %s36, %s52
    %p54 = scmp.eq.s32.totalorder %s16, 0
    %p55 = por %p53, %p54
    %s57 = sadd.s32 %s56, 1
    %p60 = scmp.eq.s32.totalorder %s10, 3
    %p61 = scmp.ne.s32.totalorder %s56, %s58
    %p62 = scmp.eq.s32.totalorder %s10, 0
    %p63 = por %p61, %p62
    %p64 = scmp.ne.s32.totalorder %s56, %s58
    %p65 = scmp.eq.s32.totalorder %s15, 3
    %p66 = por %p64, %p65
    %p67 = scmp.ne.s32.totalorder %s58, %s59
    %p68 = scmp.eq.s32.totalorder %s15, 0
    %p69 = por %p67, %p68
    %p70 = scmp.ne.s32.totalorder %s58, %s59
    %p71 = scmp.eq.s32.totalorder %s16, 3
    %p72 = por %p70, %p71
    %p74 = scmp.ne.s32.totalorder %s59, %s73
    %p75 = scmp.eq.s32.totalorder %s16, 0
    %p76 = por %p74, %p75
    %s77 = ssub.s32 %s17, %s29
    %s78 = ssub.s32 %s18, %s25
    %s79 = sor.u32 %s77, %s78
    %p80 = scmp.eq.s32.totalorder %s79, 0
    %s82 = sadd.s32 %s81, 1
    %s83 = scalar_select %p80, %s81, %s82
    %p86 = pneg %p80
    %p87 = scmp.eq.s32.totalorder %s10, 3
    %p88 = por %p86, %p87
    %p89 = scmp.ne.s32.totalorder %s81, %s84
    %p90 = scmp.eq.s32.totalorder %s10, 0
    %p91 = por %p89, %p90
    %p92 = scmp.ne.s32.totalorder %s81, %s84
    %p93 = scmp.eq.s32.totalorder %s15, 3
    %p94 = por %p92, %p93
    %p95 = scmp.ne.s32.totalorder %s84, %s85
    %p96 = scmp.eq.s32.totalorder %s15, 0
    %p97 = por %p95, %p96
    %p98 = scmp.ne.s32.totalorder %s84, %s85
    %p99 = scmp.eq.s32.totalorder %s16, 3
    %p100 = por %p98, %p99
    %p102 = scmp.ne.s32.totalorder %s85, %s101
    %p103 = scmp.eq.s32.totalorder %s16, 0
    %p104 = por %p102, %p103
    %s105 = ssub.s32 %s17, %s29
    %s106 = ssub.s32 %s18, %s25
    %s107 = sor.u32 %s105, %s106
    %p108 = scmp.eq.s32.totalorder %s107, 0
    %s110 = sadd.s32 %s109, 1
    %s111 = scalar_select %p108, %s109, %s110
    %p114 = pneg %p108
    %p115 = scmp.eq.s32.totalorder %s10, 3
    %p116 = por %p114, %p115
    %p117 = scmp.ne.s32.totalorder %s109, %s112
    %p118 = scmp.eq.s32.totalorder %s10, 0
    %p119 = por %p117, %p118
    %p120 = scmp.ne.s32.totalorder %s109, %s112
    %p121 = scmp.eq.s32.totalorder %s15, 3
    %p122 = por %p120, %p121
    %p123 = scmp.ne.s32.totalorder %s112, %s113
    %p124 = scmp.eq.s32.totalorder %s15, 0
    %p125 = por %p123, %p124
    %p126 = scmp.ne.s32.totalorder %s112, %s113
    %p127 = scmp.eq.s32.totalorder %s16, 3
    %p128 = por %p126, %p127
    %p130 = scmp.ne.s32.totalorder %s113, %s129
    %p131 = scmp.eq.s32.totalorder %s16, 0
    %p132 = por %p130, %p131
    %p133 = scmp.le.s32.totalorder 1, %s10
    %p134 = scmp.lt.s32.totalorder %s10, 5
    %p135 = pnand %p133, %p134
    %p136 = pneg %p135
    // Predicated region
    $region9: #{double_conv.4} parent=5 // pred_check
      _
    $region10: #{double_conv.4} parent=5 // pred_check_branch
      %138 = sbr.rel (%p135) target = $region12
    $region11: #{double_conv.4} parent=5 // pred_region
      %s139 = ssub.s32 %s10, 1
      // Predicated region
      $region13: #{double_conv.4} parent=11 // pred_check
        %p140 = pneg %p69
      $region14: #{double_conv.4} parent=11 // pred_check_branch
        %142 = sbr.rel (%p140) target = $region16
      $region15: #{double_conv.4} parent=11 // pred_region
        _
      $region16: #{double_conv.4} parent=11 // pred_fallthru
        _
    $region12: #{double_conv.4} parent=5 // pred_fallthru
      _
    %p143 = scmp.lt.s32.totalorder %s10, 4
    // Predicated region
    $region17: #{double_conv.4} parent=5 // pred_check
      %p144 = pneg %p143
    $region18: #{double_conv.4} parent=5 // pred_check_branch
      %146 = sbr.rel (%p144) target = $region20
    $region19: #{double_conv.4} parent=5 // pred_region
      // Predicated region
      $region21: #{double_conv.4} parent=19 // pred_check
        %p147 = pneg %p42
      $region22: #{double_conv.4} parent=19 // pred_check_branch
        %149 = sbr.rel (%p147) target = $region24
      $region23: #{double_conv.4} parent=19 // pred_region
        %p150 = scmp.lt.s32.totalorder %s17, 1
        %s151 = scalar_select %p150, %s17, 1
        %s152 = smul.addr %s151, 54
        %s153 = smul.addr %s152, 4
        %s154 = scalar_lea.vmem %s0, %s153
      $region24: #{double_conv.4} parent=19 // pred_fallthru
        _
    $region20: #{double_conv.4} parent=5 // pred_fallthru
      _
    %p155 = scmp.le.s32.totalorder 1, %s10
    %p156 = scmp.lt.s32.totalorder %s10, 5
    %p157 = pnand %p155, %p156
    %p158 = pneg %p157
    // Predicated region
    $region25: #{double_conv.4} parent=5 // pred_check
      _
    $region26: #{double_conv.4} parent=5 // pred_check_branch
      %160 = sbr.rel (%p157) target = $region28
    $region27: #{double_conv.4} parent=5 // pred_region
      %s161 = ssub.s32 %s10, 1
      %p162 = scmp.lt.s32.totalorder %s19, 1
      %s163 = scalar_select %p162, %s19, 1
      %s164 = smul.addr %s163, 54
      %s165 = smul.addr %s164, 4
      %s166 = scalar_lea.vmem %s0, %s165
      %p167 = pneg %p48
      %p168 = pneg %p45
      %p169 = pneg %p69
      %p170 = pneg %p66
      %p171 = pneg %p97
      %p172 = pneg %p94
      %s173 = smul.u32 8, %s20
      %p174 = scmp.lt.s32.totalorder %s19, 1
      %s175 = scalar_select %p174, %s19, 1
      %p176 = scmp.lt.s32.totalorder %s173, 15
      %s177 = scalar_select %p176, %s173, 15
      %s178 = smul.addr %s177, 2
      %s179 = smul.addr %s175, 32
      %s180 = sadd.s32 %s178, %s179
      %s181 = smul.addr %s180, 8
      %s182 = scalar_lea.vmem %s2, %s181
      %p183 = pneg %p125
      %p184 = pneg %p122
      %p185 = scmp.lt.s32.totalorder %s19, 1
      %s186 = scalar_select %p185, %s19, 1
      %p187 = scmp.lt.s32.totalorder %s20, 1
      %s188 = scalar_select %p187, %s20, 1
      %s189 = smul.addr %s186, 2
      %s190 = sadd.s32 %s188, %s189
      %s191 = smul.addr %s190, 2
      %s192 = scalar_lea.vmem %s3, %s191
      %p193 = scmp.lt.s32.totalorder %s19, 1
      %s194 = scalar_select %p193, %s19, 1
      %s195 = smul.addr %s194, 54
      %s196 = smul.addr %s195, 4
      %s197 = scalar_lea.vmem %s0, %s196
      %s198 = smul.u32 8, %s20
      %p199 = scmp.lt.s32.totalorder %s19, 1
      %s200 = scalar_select %p199, %s19, 1
      %p201 = scmp.lt.s32.totalorder %s198, 15
      %s202 = scalar_select %p201, %s198, 15
      %s203 = smul.addr %s202, 2
      %s204 = smul.addr %s200, 32
      %s205 = sadd.s32 %s203, %s204
      %s206 = smul.addr %s205, 8
      %s207 = scalar_lea.vmem %s2, %s206
      %s208 = smul.u32 8, %s20
      %p209 = scmp.lt.s32.totalorder %s19, 1
      %s210 = scalar_select %p209, %s19, 1
      %p211 = scmp.lt.s32.totalorder %s20, 1
      %s212 = scalar_select %p211, %s20, 1
      %s213 = smul.addr %s210, 2
      %s214 = sadd.s32 %s212, %s213
      %s215 = smul.addr %s214, 2
      %s216 = scalar_lea.vmem %s3, %s215
      %s218 = smul.u32 %s20, 8
      %s219 = smul.u32 %s218, 3
      %s220 = smul.addr %s219, 4
      %s221 = scalar_lea.vmem %s197, %s220
      %v222 = vld [vmem:[%s221] sm:$0xf]
      %v223 = vld [vmem:[%s221 + $0x4] sm:$0xf]
      %v224 = vld [vmem:[%s221 + $0x8] sm:$0x1]
      %v225 = vld [vmem:[%s221 + $0xc] sm:$0xf]
      %v226 = vld [vmem:[%s221 + $0x10] sm:$0xf]
      %v227 = vld [vmem:[%s221 + $0x14] sm:$0x1]
      %v228 = vld [vmem:[%s221 + $0x18] sm:$0xf]
      %v229 = vld [vmem:[%s221 + $0x1c] sm:$0xf]
      %v230 = vld [vmem:[%s221 + $0x20] sm:$0x1]
      %v231 = vld [vmem:[%s221 + $0x24] sm:$0xf]
      %v232 = vld [vmem:[%s221 + $0x28] sm:$0xf]
      %v233 = vld [vmem:[%s221 + $0x2c] sm:$0x1]
      %v234 = vld [vmem:[%s221 + $0x30] sm:$0xf]
      %v235 = vld [vmem:[%s221 + $0x34] sm:$0xf]
      %v236 = vld [vmem:[%s221 + $0x38] sm:$0x1]
      %v237 = vld [vmem:[%s221 + $0x3c] sm:$0xf]
      %v238 = vld [vmem:[%s221 + $0x40] sm:$0xf]
      %v239 = vld [vmem:[%s221 + $0x44] sm:$0x1]
      %v240 = vld [vmem:[%s221 + $0x48] sm:$0xf]
      %v241 = vld [vmem:[%s221 + $0x4c] sm:$0xf]
      %v242 = vld [vmem:[%s221 + $0x50] sm:$0x1]
      %v243 = vld [vmem:[%s221 + $0x54] sm:$0xf]
      %v244 = vld [vmem:[%s221 + $0x58] sm:$0xf]
      %v245 = vld [vmem:[%s221 + $0x5c] sm:$0x1]
      %v246 = vld [vmem:[%s221 + $0x60] sm:$0xf]
      %v247 = vld [vmem:[%s221 + $0x64] sm:$0xf]
      %v248 = vld [vmem:[%s221 + $0x68] sm:$0x1]
      %v249 = vld [vmem:[%s221 + $0x6c] sm:$0xf]
      %v250 = vld [vmem:[%s221 + $0x70] sm:$0xf]
      %v251 = vld [vmem:[%s221 + $0x74] sm:$0x1]
      %v252 = vld [vmem:[%s1] sm:$0x3]
      %vm253 = vsmask.f32 3328
      %vm254 = vsmask.f32 7440
      %vm255 = vmor %vm253, %vm254
      %v257 = vshrl.u32 %v222, 16
      %v259 = vrot.slane %v257, 4
      %v260 = vshll.u32 %v222, 16
      %v262 = vrot.slane %v260, 5
      %v263 = vor.u32 %v259, %v262
      %v264 = vrot.slane %v263, 4
      %v266 = vshll.u32 %v223, 16
      %v268 = vrot.slane %v266, 5
      %v269 = vsel %vm255, %v264, %v268
      %v270 = vshrl.u32 %v223, 16
      %v272 = vrot.slane %v270, 4
      %v273 = vor.u32 %v272, %v268
      %v274 = vrot.slane %v273, 4
      %v276 = vshll.u32 %v224, 16
      %v278 = vrot.slane %v276, 5
      %v279 = vsel %vm255, %v274, %v278
      %v281 = vshrl.u32 %v225, 16
      %v283 = vrot.slane %v281, 4
      %v284 = vshll.u32 %v225, 16
      %v286 = vrot.slane %v284, 5
      %v287 = vor.u32 %v283, %v286
      %v288 = vrot.slane %v287, 4
      %v290 = vshll.u32 %v226, 16
      %v292 = vrot.slane %v290, 5
      %v293 = vsel %vm255, %v288, %v292
      %v294 = vshrl.u32 %v226, 16
      %v296 = vrot.slane %v294, 4
      %v297 = vor.u32 %v296, %v292
      %v298 = vrot.slane %v297, 4
      %v300 = vshll.u32 %v227, 16
      %v302 = vrot.slane %v300, 5
      %v303 = vsel %vm255, %v298, %v302
      %v305 = vshrl.u32 %v228, 16
      %v307 = vrot.slane %v305, 4
      %v308 = vshll.u32 %v228, 16
      %v310 = vrot.slane %v308, 5
      %v311 = vor.u32 %v307, %v310
      %v312 = vrot.slane %v311, 4
      %v314 = vshll.u32 %v229, 16
      %v316 = vrot.slane %v314, 5
      %v317 = vsel %vm255, %v312, %v316
      %v318 = vshrl.u32 %v229, 16
      %v320 = vrot.slane %v318, 4
      %v321 = vor.u32 %v320, %v316
      %v322 = vrot.slane %v321, 4
      %v324 = vshll.u32 %v230, 16
      %v326 = vrot.slane %v324, 5
      %v327 = vsel %vm255, %v322, %v326
      %v329 = vshrl.u32 %v231, 16
      %v331 = vrot.slane %v329, 4
      %v332 = vshll.u32 %v231, 16
      %v334 = vrot.slane %v332, 5
      %v335 = vor.u32 %v331, %v334
      %v336 = vrot.slane %v335, 4
      %v338 = vshll.u32 %v232, 16
      %v340 = vrot.slane %v338, 5
      %v341 = vsel %vm255, %v336, %v340
      %v342 = vshrl.u32 %v232, 16
      %v344 = vrot.slane %v342, 4
      %v345 = vor.u32 %v344, %v340
      %v346 = vrot.slane %v345, 4
      %v348 = vshll.u32 %v233, 16
      %v350 = vrot.slane %v348, 5
      %v351 = vsel %vm255, %v346, %v350
      %v353 = vshrl.u32 %v234, 16
      %v355 = vrot.slane %v353, 4
      %v356 = vshll.u32 %v234, 16
      %v358 = vrot.slane %v356, 5
      %v359 = vor.u32 %v355, %v358
      %v360 = vrot.slane %v359, 4
      %v362 = vshll.u32 %v235, 16
      %v364 = vrot.slane %v362, 5
      %v365 = vsel %vm255, %v360, %v364
      %v366 = vshrl.u32 %v235, 16
      %v368 = vrot.slane %v366, 4
      %v369 = vor.u32 %v368, %v364
      %v370 = vrot.slane %v369, 4
      %v372 = vshll.u32 %v236, 16
      %v374 = vrot.slane %v372, 5
      %v375 = vsel %vm255, %v370, %v374
      %v377 = vshrl.u32 %v237, 16
      %v379 = vrot.slane %v377, 4
      %v380 = vshll.u32 %v237, 16
      %v382 = vrot.slane %v380, 5
      %v383 = vor.u32 %v379, %v382
      %v384 = vrot.slane %v383, 4
      %v386 = vshll.u32 %v238, 16
      %v388 = vrot.slane %v386, 5
      %v389 = vsel %vm255, %v384, %v388
      %v390 = vshrl.u32 %v238, 16
      %v392 = vrot.slane %v390, 4
      %v393 = vor.u32 %v392, %v388
      %v394 = vrot.slane %v393, 4
      %v396 = vshll.u32 %v239, 16
      %v398 = vrot.slane %v396, 5
      %v399 = vsel %vm255, %v394, %v398
      %v401 = vshrl.u32 %v240, 16
      %v403 = vrot.slane %v401, 4
      %v404 = vshll.u32 %v240, 16
      %v406 = vrot.slane %v404, 5
      %v407 = vor.u32 %v403, %v406
      %v408 = vrot.slane %v407, 4
      %v410 = vshll.u32 %v241, 16
      %v412 = vrot.slane %v410, 5
      %v413 = vsel %vm255, %v408, %v412
      %v414 = vshrl.u32 %v241, 16
      %v416 = vrot.slane %v414, 4
      %v417 = vor.u32 %v416, %v412
      %v418 = vrot.slane %v417, 4
      %v420 = vshll.u32 %v242, 16
      %v422 = vrot.slane %v420, 5
      %v423 = vsel %vm255, %v418, %v422
      %v425 = vshrl.u32 %v243, 16
      %v427 = vrot.slane %v425, 4
      %v428 = vshll.u32 %v243, 16
      %v430 = vrot.slane %v428, 5
      %v431 = vor.u32 %v427, %v430
      %v432 = vrot.slane %v431, 4
      %v434 = vshll.u32 %v244, 16
      %v436 = vrot.slane %v434, 5
      %v437 = vsel %vm255, %v432, %v436
      %v438 = vshrl.u32 %v244, 16
      %v440 = vrot.slane %v438, 4
      %v441 = vor.u32 %v440, %v436
      %v442 = vrot.slane %v441, 4
      %v444 = vshll.u32 %v245, 16
      %v446 = vrot.slane %v444, 5
      %v447 = vsel %vm255, %v442, %v446
      %s448 = scalar_lea.vmem %s1, 2
      %v449 = vld [vmem:[%s448] sm:$0x3]
      %v450 = vunpack.c.l.b16 %v269
      %v451 = vunpack.c.l.b16 %v279
      %v452 = vunpack.c.l.b16 %v293
      %v453 = vunpack.c.l.b16 %v303
      %v454 = vunpack.c.l.b16 %v317
      %v455 = vunpack.c.l.b16 %v327
      %v456 = vunpack.c.l.b16 %v341
      %v457 = vunpack.c.l.b16 %v351
      %v458 = vunpack.c.l.b16 %v365
      %v459 = vunpack.c.l.b16 %v375
      %v460 = vunpack.c.l.b16 %v389
      %v461 = vunpack.c.l.b16 %v399
      %v462 = vunpack.c.l.b16 %v413
      %v463 = vunpack.c.l.b16 %v423
      %v464 = vunpack.c.l.b16 %v437
      %v465 = vunpack.c.l.b16 %v447
      %v466 = vpack.c.b16 %v451, %v450
      %v467 = vpack.c.b16 %v453, %v452
      %v468 = vpack.c.b16 %v455, %v454
      %v469 = vpack.c.b16 %v457, %v456
      %v470 = vpack.c.b16 %v459, %v458
      %v471 = vpack.c.b16 %v461, %v460
      %v472 = vpack.c.b16 %v463, %v462
      %v473 = vpack.c.b16 %v465, %v464
      %vm474 = vcmask 31744
      %v476 = vsel %vm474, %v466, 0
      %v479 = vsel %vm474, %v467, 0
      %v482 = vsel %vm474, %v468, 0
      %v485 = vsel %vm474, %v469, 0
      %v488 = vsel %vm474, %v470, 0
      %v491 = vsel %vm474, %v471, 0
      %v494 = vsel %vm474, %v472, 0
      %v497 = vsel %vm474, %v473, 0
      %vm499 = vcmask 1041408
      %v501 = vsel %vm499, %v449, 0
      %503 = vmatprep.subr.bf16.mxu0 0
      %504 = vmatpush1.bf16.msra.mxu0 0
      %505 = vmatprep.subr.bf16.mxu0 0
      %506 = vmatpush1.bf16.msra.mxu0 0
      %507 = vmatprep.subr.bf16.mxu0 0
      %508 = vmatpush1.bf16.msra.mxu0 0
      %509 = vmatprep.subr.bf16.mxu0 0
      %510 = vmatpush1.bf16.msra.mxu0 0
      %511 = vmatprep.subr.bf16.mxu0 0
      %512 = vmatpush1.bf16.msra.mxu0 0
      %513 = vmatprep.subr.bf16.mxu0 0
      %514 = vmatpush1.bf16.msra.mxu0 0
      %515 = vmatprep.subr.bf16.mxu0 0
      %516 = vmatpush1.bf16.msra.mxu0 0
      %517 = vmatprep.subr.bf16.mxu0 0
      %518 = vmatpush1.bf16.msra.mxu0 %v501
      %519 = vmatprep.subr.bf16.mxu0 0
      %520 = vmatpush2.bf16.msra.mxu0 0
      %521 = vmatprep.subr.bf16.mxu0 0
      %522 = vmatpush2.bf16.msra.mxu0 0
      %523 = vmatprep.subr.bf16.mxu0 0
      %524 = vmatpush2.bf16.msra.mxu0 0
      %525 = vmatprep.subr.bf16.mxu0 0
      %526 = vmatpush2.bf16.msra.mxu0 0
      %527 = vmatprep.subr.bf16.mxu0 0
      %528 = vmatpush2.bf16.msra.mxu0 0
      %529 = vmatprep.subr.bf16.mxu0 0
      %530 = vmatpush2.bf16.msra.mxu0 0
      %531 = vmatprep.subr.bf16.mxu0 0
      %532 = vmatpush2.bf16.msra.mxu0 0
      %533 = vmatprep.subr.bf16.mxu0 0
      %534 = vmatpush2.bf16.msra.mxu0 0
      %535 = vmatprep.mubr.bf16.mxu0 0
      %536 = vmatmul.mubr.bf16.gmra.mxu0 %v476
      %v537 = vpop.f32.mrf.mxu0
      %v538 = vadd.f32 0.0, %v537
      %v539 = vpop.f32.mrf.mxu0
      %v540 = vpop.f32.mrf.mxu0
      %v541 = vadd.f32 0.0, %v540
      %v542 = vpop.f32.mrf.mxu0
      %543 = vmatprep.mubr.bf16.mxu0 0
      %544 = vmatmul.mubr.bf16.gmra.mxu0 %v479
      %v545 = vpop.f32.mrf.mxu0
      %v546 = vadd.f32 0.0, %v545
      %v547 = vpop.f32.mrf.mxu0
      %v548 = vpop.f32.mrf.mxu0
      %v549 = vadd.f32 0.0, %v548
      %v550 = vpop.f32.mrf.mxu0
      %551 = vmatprep.mubr.bf16.mxu0 0
      %552 = vmatmul.mubr.bf16.gmra.mxu0 %v482
      %v553 = vpop.f32.mrf.mxu0
      %v554 = vadd.f32 0.0, %v553
      %v555 = vpop.f32.mrf.mxu0
      %v556 = vpop.f32.mrf.mxu0
      %v557 = vadd.f32 0.0, %v556
      %v558 = vpop.f32.mrf.mxu0
      %559 = vmatprep.mubr.bf16.mxu0 0
      %560 = vmatmul.mubr.bf16.gmra.mxu0 %v485
      %v561 = vpop.f32.mrf.mxu0
      %v562 = vadd.f32 0.0, %v561
      %v563 = vpop.f32.mrf.mxu0
      %v564 = vpop.f32.mrf.mxu0
      %v565 = vadd.f32 0.0, %v564
      %v566 = vpop.f32.mrf.mxu0
      %567 = vmatprep.mubr.bf16.mxu0 0
      %568 = vmatmul.mubr.bf16.gmra.mxu0 %v488
      %v569 = vpop.f32.mrf.mxu0
      %v570 = vadd.f32 0.0, %v569
      %v571 = vpop.f32.mrf.mxu0
      %v572 = vpop.f32.mrf.mxu0
      %v573 = vadd.f32 0.0, %v572
      %v574 = vpop.f32.mrf.mxu0
      %575 = vmatprep.mubr.bf16.mxu0 0
      %576 = vmatmul.mubr.bf16.gmra.mxu0 %v491
      %v577 = vpop.f32.mrf.mxu0
      %v578 = vadd.f32 0.0, %v577
      %v579 = vpop.f32.mrf.mxu0
      %v580 = vpop.f32.mrf.mxu0
      %v581 = vadd.f32 0.0, %v580
      %v582 = vpop.f32.mrf.mxu0
      %583 = vmatprep.mubr.bf16.mxu0 0
      %584 = vmatmul.mubr.bf16.gmra.mxu0 %v494
      %v585 = vpop.f32.mrf.mxu0
      %v586 = vadd.f32 0.0, %v585
      %v587 = vpop.f32.mrf.mxu0
      %v588 = vpop.f32.mrf.mxu0
      %v589 = vadd.f32 0.0, %v588
      %v590 = vpop.f32.mrf.mxu0
      %591 = vmatprep.mubr.bf16.mxu0 0
      %592 = vmatmul.mubr.bf16.gmra.mxu0 %v497
      %v593 = vpop.f32.mrf.mxu0
      %v594 = vadd.f32 0.0, %v593
      %v595 = vpop.f32.mrf.mxu0
      %v596 = vpop.f32.mrf.mxu0
      %v597 = vadd.f32 0.0, %v596
      %v598 = vpop.f32.mrf.mxu0
      %599 = vdwg.mxu0
      %v616 = vunpack.c.l.b16 %v222
      %v617 = vunpack.c.l.b16 %v223
      %v618 = vunpack.c.l.b16 %v225
      %v619 = vunpack.c.l.b16 %v226
      %v620 = vunpack.c.l.b16 %v228
      %v621 = vunpack.c.l.b16 %v229
      %v622 = vunpack.c.l.b16 %v231
      %v623 = vunpack.c.l.b16 %v232
      %v624 = vunpack.c.l.b16 %v234
      %v625 = vunpack.c.l.b16 %v235
      %v626 = vunpack.c.l.b16 %v237
      %v627 = vunpack.c.l.b16 %v238
      %v628 = vunpack.c.l.b16 %v240
      %v629 = vunpack.c.l.b16 %v241
      %v630 = vunpack.c.l.b16 %v243
      %v631 = vunpack.c.l.b16 %v244
      %v632 = vpack.c.b16 %v617, %v616
      %v633 = vpack.c.b16 %v619, %v618
      %v634 = vpack.c.b16 %v621, %v620
      %v635 = vpack.c.b16 %v623, %v622
      %v636 = vpack.c.b16 %v625, %v624
      %v637 = vpack.c.b16 %v627, %v626
      %v638 = vpack.c.b16 %v629, %v628
      %v639 = vpack.c.b16 %v631, %v630
      %v641 = vsel %vm474, %v632, 0
      %v644 = vsel %vm474, %v633, 0
      %v647 = vsel %vm474, %v634, 0
      %v650 = vsel %vm474, %v635, 0
      %v653 = vsel %vm474, %v636, 0
      %v656 = vsel %vm474, %v637, 0
      %v659 = vsel %vm474, %v638, 0
      %v662 = vsel %vm474, %v639, 0
      %v665 = vsel %vm499, %v252, 0
      %667 = vmatprep.subr.bf16.mxu0 0
      %668 = vmatpush1.bf16.msra.mxu0 0
      %669 = vmatprep.subr.bf16.mxu0 0
      %670 = vmatpush1.bf16.msra.mxu0 0
      %671 = vmatprep.subr.bf16.mxu0 0
      %672 = vmatpush1.bf16.msra.mxu0 0
      %673 = vmatprep.subr.bf16.mxu0 0
      %674 = vmatpush1.bf16.msra.mxu0 0
      %675 = vmatprep.subr.bf16.mxu0 0
      %676 = vmatpush1.bf16.msra.mxu0 0
      %677 = vmatprep.subr.bf16.mxu0 0
      %678 = vmatpush1.bf16.msra.mxu0 0
      %679 = vmatprep.subr.bf16.mxu0 0
      %680 = vmatpush1.bf16.msra.mxu0 0
      %681 = vmatprep.subr.bf16.mxu0 0
      %682 = vmatpush1.bf16.msra.mxu0 %v665
      %683 = vmatprep.subr.bf16.mxu0 0
      %684 = vmatpush2.bf16.msra.mxu0 0
      %685 = vmatprep.subr.bf16.mxu0 0
      %686 = vmatpush2.bf16.msra.mxu0 0
      %687 = vmatprep.subr.bf16.mxu0 0
      %688 = vmatpush2.bf16.msra.mxu0 0
      %689 = vmatprep.subr.bf16.mxu0 0
      %690 = vmatpush2.bf16.msra.mxu0 0
      %691 = vmatprep.subr.bf16.mxu0 0
      %692 = vmatpush2.bf16.msra.mxu0 0
      %693 = vmatprep.subr.bf16.mxu0 0
      %694 = vmatpush2.bf16.msra.mxu0 0
      %695 = vmatprep.subr.bf16.mxu0 0
      %696 = vmatpush2.bf16.msra.mxu0 0
      %697 = vmatprep.subr.bf16.mxu0 0
      %698 = vmatpush2.bf16.msra.mxu0 0
      %699 = vmatprep.mubr.bf16.mxu0 0
      %700 = vmatmul.mubr.bf16.gmra.mxu0 %v641
      %v701 = vpop.f32.mrf.mxu0
      %v702 = vadd.f32 %v538, %v701
      %v703 = vpop.f32.mrf.mxu0
      %v704 = vpop.f32.mrf.mxu0
      %v705 = vadd.f32 %v541, %v704
      %v706 = vpop.f32.mrf.mxu0
      %707 = vmatprep.mubr.bf16.mxu0 0
      %708 = vmatmul.mubr.bf16.gmra.mxu0 %v644
      %v709 = vpop.f32.mrf.mxu0
      %v710 = vadd.f32 %v546, %v709
      %v711 = vpop.f32.mrf.mxu0
      %v712 = vpop.f32.mrf.mxu0
      %v713 = vadd.f32 %v549, %v712
      %v714 = vpop.f32.mrf.mxu0
      %715 = vmatprep.mubr.bf16.mxu0 0
      %716 = vmatmul.mubr.bf16.gmra.mxu0 %v647
      %v717 = vpop.f32.mrf.mxu0
      %v718 = vadd.f32 %v554, %v717
      %v719 = vpop.f32.mrf.mxu0
      %v720 = vpop.f32.mrf.mxu0
      %v721 = vadd.f32 %v557, %v720
      %v722 = vpop.f32.mrf.mxu0
      %723 = vmatprep.mubr.bf16.mxu0 0
      %724 = vmatmul.mubr.bf16.gmra.mxu0 %v650
      %v725 = vpop.f32.mrf.mxu0
      %v726 = vadd.f32 %v562, %v725
      %v727 = vpop.f32.mrf.mxu0
      %v728 = vpop.f32.mrf.mxu0
      %v729 = vadd.f32 %v565, %v728
      %v730 = vpop.f32.mrf.mxu0
      %731 = vmatprep.mubr.bf16.mxu0 0
      %732 = vmatmul.mubr.bf16.gmra.mxu0 %v653
      %v733 = vpop.f32.mrf.mxu0
      %v734 = vadd.f32 %v570, %v733
      %v735 = vpop.f32.mrf.mxu0
      %v736 = vpop.f32.mrf.mxu0
      %v737 = vadd.f32 %v573, %v736
      %v738 = vpop.f32.mrf.mxu0
      %739 = vmatprep.mubr.bf16.mxu0 0
      %740 = vmatmul.mubr.bf16.gmra.mxu0 %v656
      %v741 = vpop.f32.mrf.mxu0
      %v742 = vadd.f32 %v578, %v741
      %v743 = vpop.f32.mrf.mxu0
      %v744 = vpop.f32.mrf.mxu0
      %v745 = vadd.f32 %v581, %v744
      %v746 = vpop.f32.mrf.mxu0
      %747 = vmatprep.mubr.bf16.mxu0 0
      %748 = vmatmul.mubr.bf16.gmra.mxu0 %v659
      %v749 = vpop.f32.mrf.mxu0
      %v750 = vadd.f32 %v586, %v749
      %v751 = vpop.f32.mrf.mxu0
      %v752 = vpop.f32.mrf.mxu0
      %v753 = vadd.f32 %v589, %v752
      %v754 = vpop.f32.mrf.mxu0
      %755 = vmatprep.mubr.bf16.mxu0 0
      %756 = vmatmul.mubr.bf16.gmra.mxu0 %v662
      %v757 = vpop.f32.mrf.mxu0
      %v758 = vadd.f32 %v594, %v757
      %v759 = vpop.f32.mrf.mxu0
      %v760 = vpop.f32.mrf.mxu0
      %v761 = vadd.f32 %v597, %v760
      %v762 = vpop.f32.mrf.mxu0
      %763 = vdwg.mxu0
      %vm772 = vcmask 1042432
      %vm773 = vcmask 1046532
      %vm774 = vmor %vm772, %vm773
      %v775 = vrot.slane %v222, 5
      %v776 = vrot.slane %v775, 4
      %v777 = vrot.slane %v223, 5
      %v778 = vsel %vm774, %v776, %v777
      %v779 = vrot.slane %v777, 4
      %v780 = vrot.slane %v224, 5
      %v781 = vsel %vm774, %v779, %v780
      %v782 = vrot.slane %v225, 5
      %v783 = vrot.slane %v782, 4
      %v784 = vrot.slane %v226, 5
      %v785 = vsel %vm774, %v783, %v784
      %v786 = vrot.slane %v784, 4
      %v787 = vrot.slane %v227, 5
      %v788 = vsel %vm774, %v786, %v787
      %v789 = vrot.slane %v228, 5
      %v790 = vrot.slane %v789, 4
      %v791 = vrot.slane %v229, 5
      %v792 = vsel %vm774, %v790, %v791
      %v793 = vrot.slane %v791, 4
      %v794 = vrot.slane %v230, 5
      %v795 = vsel %vm774, %v793, %v794
      %v796 = vrot.slane %v231, 5
      %v797 = vrot.slane %v796, 4
      %v798 = vrot.slane %v232, 5
      %v799 = vsel %vm774, %v797, %v798
      %v800 = vrot.slane %v798, 4
      %v801 = vrot.slane %v233, 5
      %v802 = vsel %vm774, %v800, %v801
      %v803 = vrot.slane %v234, 5
      %v804 = vrot.slane %v803, 4
      %v805 = vrot.slane %v235, 5
      %v806 = vsel %vm774, %v804, %v805
      %v807 = vrot.slane %v805, 4
      %v808 = vrot.slane %v236, 5
      %v809 = vsel %vm774, %v807, %v808
      %v810 = vrot.slane %v237, 5
      %v811 = vrot.slane %v810, 4
      %v812 = vrot.slane %v238, 5
      %v813 = vsel %vm774, %v811, %v812
      %v814 = vrot.slane %v812, 4
      %v815 = vrot.slane %v239, 5
      %v816 = vsel %vm774, %v814, %v815
      %v817 = vrot.slane %v240, 5
      %v818 = vrot.slane %v817, 4
      %v819 = vrot.slane %v241, 5
      %v820 = vsel %vm774, %v818, %v819
      %v821 = vrot.slane %v819, 4
      %v822 = vrot.slane %v242, 5
      %v823 = vsel %vm774, %v821, %v822
      %v824 = vrot.slane %v243, 5
      %v825 = vrot.slane %v824, 4
      %v826 = vrot.slane %v244, 5
      %v827 = vsel %vm774, %v825, %v826
      %v828 = vrot.slane %v826, 4
      %v829 = vrot.slane %v245, 5
      %v830 = vsel %vm774, %v828, %v829
      %s831 = scalar_lea.vmem %s1, 4
      %v832 = vld [vmem:[%s831] sm:$0x3]
      %v833 = vunpack.c.l.b16 %v778
      %v834 = vunpack.c.l.b16 %v781
      %v835 = vunpack.c.l.b16 %v785
      %v836 = vunpack.c.l.b16 %v788
      %v837 = vunpack.c.l.b16 %v792
      %v838 = vunpack.c.l.b16 %v795
      %v839 = vunpack.c.l.b16 %v799
      %v840 = vunpack.c.l.b16 %v802
      %v841 = vunpack.c.l.b16 %v806
      %v842 = vunpack.c.l.b16 %v809
      %v843 = vunpack.c.l.b16 %v813
      %v844 = vunpack.c.l.b16 %v816
      %v845 = vunpack.c.l.b16 %v820
      %v846 = vunpack.c.l.b16 %v823
      %v847 = vunpack.c.l.b16 %v827
      %v848 = vunpack.c.l.b16 %v830
      %v849 = vpack.c.b16 %v834, %v833
      %v850 = vpack.c.b16 %v836, %v835
      %v851 = vpack.c.b16 %v838, %v837
      %v852 = vpack.c.b16 %v840, %v839
      %v853 = vpack.c.b16 %v842, %v841
      %v854 = vpack.c.b16 %v844, %v843
      %v855 = vpack.c.b16 %v846, %v845
      %v856 = vpack.c.b16 %v848, %v847
      %v858 = vsel %vm474, %v849, 0
      %v861 = vsel %vm474, %v850, 0
      %v864 = vsel %vm474, %v851, 0
      %v867 = vsel %vm474, %v852, 0
      %v870 = vsel %vm474, %v853, 0
      %v873 = vsel %vm474, %v854, 0
      %v876 = vsel %vm474, %v855, 0
      %v879 = vsel %vm474, %v856, 0
      %v882 = vsel %vm499, %v832, 0
      %884 = vmatprep.subr.bf16.mxu0 0
      %885 = vmatpush1.bf16.msra.mxu0 0
      %886 = vmatprep.subr.bf16.mxu0 0
      %887 = vmatpush1.bf16.msra.mxu0 0
      %888 = vmatprep.subr.bf16.mxu0 0
      %889 = vmatpush1.bf16.msra.mxu0 0
      %890 = vmatprep.subr.bf16.mxu0 0
      %891 = vmatpush1.bf16.msra.mxu0 0
      %892 = vmatprep.subr.bf16.mxu0 0
      %893 = vmatpush1.bf16.msra.mxu0 0
      %894 = vmatprep.subr.bf16.mxu0 0
      %895 = vmatpush1.bf16.msra.mxu0 0
      %896 = vmatprep.subr.bf16.mxu0 0
      %897 = vmatpush1.bf16.msra.mxu0 0
      %898 = vmatprep.subr.bf16.mxu0 0
      %899 = vmatpush1.bf16.msra.mxu0 %v882
      %900 = vmatprep.subr.bf16.mxu0 0
      %901 = vmatpush2.bf16.msra.mxu0 0
      %902 = vmatprep.subr.bf16.mxu0 0
      %903 = vmatpush2.bf16.msra.mxu0 0
      %904 = vmatprep.subr.bf16.mxu0 0
      %905 = vmatpush2.bf16.msra.mxu0 0
      %906 = vmatprep.subr.bf16.mxu0 0
      %907 = vmatpush2.bf16.msra.mxu0 0
      %908 = vmatprep.subr.bf16.mxu0 0
      %909 = vmatpush2.bf16.msra.mxu0 0
      %910 = vmatprep.subr.bf16.mxu0 0
      %911 = vmatpush2.bf16.msra.mxu0 0
      %912 = vmatprep.subr.bf16.mxu0 0
      %913 = vmatpush2.bf16.msra.mxu0 0
      %914 = vmatprep.subr.bf16.mxu0 0
      %915 = vmatpush2.bf16.msra.mxu0 0
      %916 = vmatprep.mubr.bf16.mxu0 0
      %917 = vmatmul.mubr.bf16.gmra.mxu0 %v858
      %v918 = vpop.f32.mrf.mxu0
      %v919 = vadd.f32 0.0, %v918
      %v920 = vpop.f32.mrf.mxu0
      %v921 = vpop.f32.mrf.mxu0
      %v922 = vadd.f32 0.0, %v921
      %v923 = vpop.f32.mrf.mxu0
      %924 = vmatprep.mubr.bf16.mxu0 0
      %925 = vmatmul.mubr.bf16.gmra.mxu0 %v861
      %v926 = vpop.f32.mrf.mxu0
      %v927 = vadd.f32 0.0, %v926
      %v928 = vpop.f32.mrf.mxu0
      %v929 = vpop.f32.mrf.mxu0
      %v930 = vadd.f32 0.0, %v929
      %v931 = vpop.f32.mrf.mxu0
      %932 = vmatprep.mubr.bf16.mxu0 0
      %933 = vmatmul.mubr.bf16.gmra.mxu0 %v864
      %v934 = vpop.f32.mrf.mxu0
      %v935 = vadd.f32 0.0, %v934
      %v936 = vpop.f32.mrf.mxu0
      %v937 = vpop.f32.mrf.mxu0
      %v938 = vadd.f32 0.0, %v937
      %v939 = vpop.f32.mrf.mxu0
      %940 = vmatprep.mubr.bf16.mxu0 0
      %941 = vmatmul.mubr.bf16.gmra.mxu0 %v867
      %v942 = vpop.f32.mrf.mxu0
      %v943 = vadd.f32 0.0, %v942
      %v944 = vpop.f32.mrf.mxu0
      %v945 = vpop.f32.mrf.mxu0
      %v946 = vadd.f32 0.0, %v945
      %v947 = vpop.f32.mrf.mxu0
      %948 = vmatprep.mubr.bf16.mxu0 0
      %949 = vmatmul.mubr.bf16.gmra.mxu0 %v870
      %v950 = vpop.f32.mrf.mxu0
      %v951 = vadd.f32 0.0, %v950
      %v952 = vpop.f32.mrf.mxu0
      %v953 = vpop.f32.mrf.mxu0
      %v954 = vadd.f32 0.0, %v953
      %v955 = vpop.f32.mrf.mxu0
      %956 = vmatprep.mubr.bf16.mxu0 0
      %957 = vmatmul.mubr.bf16.gmra.mxu0 %v873
      %v958 = vpop.f32.mrf.mxu0
      %v959 = vadd.f32 0.0, %v958
      %v960 = vpop.f32.mrf.mxu0
      %v961 = vpop.f32.mrf.mxu0
      %v962 = vadd.f32 0.0, %v961
      %v963 = vpop.f32.mrf.mxu0
      %964 = vmatprep.mubr.bf16.mxu0 0
      %965 = vmatmul.mubr.bf16.gmra.mxu0 %v876
      %v966 = vpop.f32.mrf.mxu0
      %v967 = vadd.f32 0.0, %v966
      %v968 = vpop.f32.mrf.mxu0
      %v969 = vpop.f32.mrf.mxu0
      %v970 = vadd.f32 0.0, %v969
      %v971 = vpop.f32.mrf.mxu0
      %972 = vmatprep.mubr.bf16.mxu0 0
      %973 = vmatmul.mubr.bf16.gmra.mxu0 %v879
      %v974 = vpop.f32.mrf.mxu0
      %v975 = vadd.f32 0.0, %v974
      %v976 = vpop.f32.mrf.mxu0
      %v977 = vpop.f32.mrf.mxu0
      %v978 = vadd.f32 0.0, %v977
      %v979 = vpop.f32.mrf.mxu0
      %980 = vdwg.mxu0
      %v981 = vadd.f32 %v702, %v919
      %v982 = vadd.f32 %v705, %v922
      %v983 = vadd.f32 %v710, %v927
      %v984 = vadd.f32 %v713, %v930
      %v985 = vadd.f32 %v718, %v935
      %v986 = vadd.f32 %v721, %v938
      %v987 = vadd.f32 %v726, %v943
      %v988 = vadd.f32 %v729, %v946
      %v989 = vadd.f32 %v734, %v951
      %v990 = vadd.f32 %v737, %v954
      %v991 = vadd.f32 %v742, %v959
      %v992 = vadd.f32 %v745, %v962
      %v993 = vadd.f32 %v750, %v967
      %v994 = vadd.f32 %v753, %v970
      %v995 = vadd.f32 %v758, %v975
      %v996 = vadd.f32 %v761, %v978
      %s997 = scalar_lea.vmem %s1, 6
      %v998 = vld [vmem:[%s997] sm:$0x3]
      %v1001 = vunpack.c.l.b16 %v246
      %v1002 = vunpack.c.l.b16 %v247
      %v1003 = vpack.c.b16 %v1002, %v1001
      %v1005 = vsel %vm474, %v1003, 0
      %v1008 = vsel %vm499, %v998, 0
      %1010 = vmatprep.subr.bf16.mxu0 0
      %1011 = vmatpush1.bf16.msra.mxu0 0
      %1012 = vmatprep.subr.bf16.mxu0 0
      %1013 = vmatpush1.bf16.msra.mxu0 0
      %1014 = vmatprep.subr.bf16.mxu0 0
      %1015 = vmatpush1.bf16.msra.mxu0 0
      %1016 = vmatprep.subr.bf16.mxu0 0
      %1017 = vmatpush1.bf16.msra.mxu0 0
      %1018 = vmatprep.subr.bf16.mxu0 0
      %1019 = vmatpush1.bf16.msra.mxu0 0
      %1020 = vmatprep.subr.bf16.mxu0 0
      %1021 = vmatpush1.bf16.msra.mxu0 0
      %1022 = vmatprep.subr.bf16.mxu0 0
      %1023 = vmatpush1.bf16.msra.mxu0 0
      %1024 = vmatprep.subr.bf16.mxu0 0
      %1025 = vmatpush1.bf16.msra.mxu0 %v1008
      %1026 = vmatprep.subr.bf16.mxu0 0
      %1027 = vmatpush2.bf16.msra.mxu0 0
      %1028 = vmatprep.subr.bf16.mxu0 0
      %1029 = vmatpush2.bf16.msra.mxu0 0
      %1030 = vmatprep.subr.bf16.mxu0 0
      %1031 = vmatpush2.bf16.msra.mxu0 0
      %1032 = vmatprep.subr.bf16.mxu0 0
      %1033 = vmatpush2.bf16.msra.mxu0 0
      %1034 = vmatprep.subr.bf16.mxu0 0
      %1035 = vmatpush2.bf16.msra.mxu0 0
      %1036 = vmatprep.subr.bf16.mxu0 0
      %1037 = vmatpush2.bf16.msra.mxu0 0
      %1038 = vmatprep.subr.bf16.mxu0 0
      %1039 = vmatpush2.bf16.msra.mxu0 0
      %1040 = vmatprep.subr.bf16.mxu0 0
      %1041 = vmatpush2.bf16.msra.mxu0 0
      %1042 = vmatprep.mubr.bf16.mxu0 0
      %1043 = vmatmul.mubr.bf16.gmra.mxu0 %v644
      %v1044 = vpop.f32.mrf.mxu0
      %v1045 = vadd.f32 0.0, %v1044
      %v1046 = vpop.f32.mrf.mxu0
      %v1047 = vpop.f32.mrf.mxu0
      %v1048 = vadd.f32 0.0, %v1047
      %v1049 = vpop.f32.mrf.mxu0
      %1050 = vmatprep.mubr.bf16.mxu0 0
      %1051 = vmatmul.mubr.bf16.gmra.mxu0 %v647
      %v1052 = vpop.f32.mrf.mxu0
      %v1053 = vadd.f32 0.0, %v1052
      %v1054 = vpop.f32.mrf.mxu0
      %v1055 = vpop.f32.mrf.mxu0
      %v1056 = vadd.f32 0.0, %v1055
      %v1057 = vpop.f32.mrf.mxu0
      %1058 = vmatprep.mubr.bf16.mxu0 0
      %1059 = vmatmul.mubr.bf16.gmra.mxu0 %v650
      %v1060 = vpop.f32.mrf.mxu0
      %v1061 = vadd.f32 0.0, %v1060
      %v1062 = vpop.f32.mrf.mxu0
      %v1063 = vpop.f32.mrf.mxu0
      %v1064 = vadd.f32 0.0, %v1063
      %v1065 = vpop.f32.mrf.mxu0
      %1066 = vmatprep.mubr.bf16.mxu0 0
      %1067 = vmatmul.mubr.bf16.gmra.mxu0 %v653
      %v1068 = vpop.f32.mrf.mxu0
      %v1069 = vadd.f32 0.0, %v1068
      %v1070 = vpop.f32.mrf.mxu0
      %v1071 = vpop.f32.mrf.mxu0
      %v1072 = vadd.f32 0.0, %v1071
      %v1073 = vpop.f32.mrf.mxu0
      %1074 = vmatprep.mubr.bf16.mxu0 0
      %1075 = vmatmul.mubr.bf16.gmra.mxu0 %v656
      %v1076 = vpop.f32.mrf.mxu0
      %v1077 = vadd.f32 0.0, %v1076
      %v1078 = vpop.f32.mrf.mxu0
      %v1079 = vpop.f32.mrf.mxu0
      %v1080 = vadd.f32 0.0, %v1079
      %v1081 = vpop.f32.mrf.mxu0
      %1082 = vmatprep.mubr.bf16.mxu0 0
      %1083 = vmatmul.mubr.bf16.gmra.mxu0 %v659
      %v1084 = vpop.f32.mrf.mxu0
      %v1085 = vadd.f32 0.0, %v1084
      %v1086 = vpop.f32.mrf.mxu0
      %v1087 = vpop.f32.mrf.mxu0
      %v1088 = vadd.f32 0.0, %v1087
      %v1089 = vpop.f32.mrf.mxu0
      %1090 = vmatprep.mubr.bf16.mxu0 0
      %1091 = vmatmul.mubr.bf16.gmra.mxu0 %v662
      %v1092 = vpop.f32.mrf.mxu0
      %v1093 = vadd.f32 0.0, %v1092
      %v1094 = vpop.f32.mrf.mxu0
      %v1095 = vpop.f32.mrf.mxu0
      %v1096 = vadd.f32 0.0, %v1095
      %v1097 = vpop.f32.mrf.mxu0
      %1098 = vmatprep.mubr.bf16.mxu0 0
      %1099 = vmatmul.mubr.bf16.gmra.mxu0 %v1005
      %v1100 = vpop.f32.mrf.mxu0
      %v1101 = vadd.f32 0.0, %v1100
      %v1102 = vpop.f32.mrf.mxu0
      %v1103 = vpop.f32.mrf.mxu0
      %v1104 = vadd.f32 0.0, %v1103
      %v1105 = vpop.f32.mrf.mxu0
      %1106 = vdwg.mxu0
      %v1107 = vadd.f32 %v981, %v1045
      %v1108 = vadd.f32 %v982, %v1048
      %v1109 = vadd.f32 %v983, %v1053
      %v1110 = vadd.f32 %v984, %v1056
      %v1111 = vadd.f32 %v985, %v1061
      %v1112 = vadd.f32 %v986, %v1064
      %v1113 = vadd.f32 %v987, %v1069
      %v1114 = vadd.f32 %v988, %v1072
      %v1115 = vadd.f32 %v989, %v1077
      %v1116 = vadd.f32 %v990, %v1080
      %v1117 = vadd.f32 %v991, %v1085
      %v1118 = vadd.f32 %v992, %v1088
      %v1119 = vadd.f32 %v993, %v1093
      %v1120 = vadd.f32 %v994, %v1096
      %v1121 = vadd.f32 %v995, %v1101
      %v1122 = vadd.f32 %v996, %v1104
      %v1124 = vshrl.u32 %v246, 16
      %v1126 = vrot.slane %v1124, 4
      %v1127 = vshll.u32 %v246, 16
      %v1129 = vrot.slane %v1127, 5
      %v1130 = vor.u32 %v1126, %v1129
      %v1131 = vrot.slane %v1130, 4
      %v1133 = vshll.u32 %v247, 16
      %v1135 = vrot.slane %v1133, 5
      %v1136 = vsel %vm255, %v1131, %v1135
      %v1137 = vshrl.u32 %v247, 16
      %v1139 = vrot.slane %v1137, 4
      %v1140 = vor.u32 %v1139, %v1135
      %v1141 = vrot.slane %v1140, 4
      %v1143 = vshll.u32 %v248, 16
      %v1145 = vrot.slane %v1143, 5
      %v1146 = vsel %vm255, %v1141, %v1145
      %s1147 = scalar_lea.vmem %s1, 8
      %v1148 = vld [vmem:[%s1147] sm:$0x3]
      %v1149 = vunpack.c.l.b16 %v1136
      %v1150 = vunpack.c.l.b16 %v1146
      %v1151 = vpack.c.b16 %v1150, %v1149
      %v1153 = vsel %vm474, %v1151, 0
      %v1156 = vsel %vm499, %v1148, 0
      %1158 = vmatprep.subr.bf16.mxu0 0
      %1159 = vmatpush1.bf16.msra.mxu0 0
      %1160 = vmatprep.subr.bf16.mxu0 0
      %1161 = vmatpush1.bf16.msra.mxu0 0
      %1162 = vmatprep.subr.bf16.mxu0 0
      %1163 = vmatpush1.bf16.msra.mxu0 0
      %1164 = vmatprep.subr.bf16.mxu0 0
      %1165 = vmatpush1.bf16.msra.mxu0 0
      %1166 = vmatprep.subr.bf16.mxu0 0
      %1167 = vmatpush1.bf16.msra.mxu0 0
      %1168 = vmatprep.subr.bf16.mxu0 0
      %1169 = vmatpush1.bf16.msra.mxu0 0
      %1170 = vmatprep.subr.bf16.mxu0 0
      %1171 = vmatpush1.bf16.msra.mxu0 0
      %1172 = vmatprep.subr.bf16.mxu0 0
      %1173 = vmatpush1.bf16.msra.mxu0 %v1156
      %1174 = vmatprep.subr.bf16.mxu0 0
      %1175 = vmatpush2.bf16.msra.mxu0 0
      %1176 = vmatprep.subr.bf16.mxu0 0
      %1177 = vmatpush2.bf16.msra.mxu0 0
      %1178 = vmatprep.subr.bf16.mxu0 0
      %1179 = vmatpush2.bf16.msra.mxu0 0
      %1180 = vmatprep.subr.bf16.mxu0 0
      %1181 = vmatpush2.bf16.msra.mxu0 0
      %1182 = vmatprep.subr.bf16.mxu0 0
      %1183 = vmatpush2.bf16.msra.mxu0 0
      %1184 = vmatprep.subr.bf16.mxu0 0
      %1185 = vmatpush2.bf16.msra.mxu0 0
      %1186 = vmatprep.subr.bf16.mxu0 0
      %1187 = vmatpush2.bf16.msra.mxu0 0
      %1188 = vmatprep.subr.bf16.mxu0 0
      %1189 = vmatpush2.bf16.msra.mxu0 0
      %1190 = vmatprep.mubr.bf16.mxu0 0
      %1191 = vmatmul.mubr.bf16.gmra.mxu0 %v479
      %v1192 = vpop.f32.mrf.mxu0
      %v1193 = vadd.f32 0.0, %v1192
      %v1194 = vpop.f32.mrf.mxu0
      %v1195 = vpop.f32.mrf.mxu0
      %v1196 = vadd.f32 0.0, %v1195
      %v1197 = vpop.f32.mrf.mxu0
      %1198 = vmatprep.mubr.bf16.mxu0 0
      %1199 = vmatmul.mubr.bf16.gmra.mxu0 %v482
      %v1200 = vpop.f32.mrf.mxu0
      %v1201 = vadd.f32 0.0, %v1200
      %v1202 = vpop.f32.mrf.mxu0
      %v1203 = vpop.f32.mrf.mxu0
      %v1204 = vadd.f32 0.0, %v1203
      %v1205 = vpop.f32.mrf.mxu0
      %1206 = vmatprep.mubr.bf16.mxu0 0
      %1207 = vmatmul.mubr.bf16.gmra.mxu0 %v485
      %v1208 = vpop.f32.mrf.mxu0
      %v1209 = vadd.f32 0.0, %v1208
      %v1210 = vpop.f32.mrf.mxu0
      %v1211 = vpop.f32.mrf.mxu0
      %v1212 = vadd.f32 0.0, %v1211
      %v1213 = vpop.f32.mrf.mxu0
      %1214 = vmatprep.mubr.bf16.mxu0 0
      %1215 = vmatmul.mubr.bf16.gmra.mxu0 %v488
      %v1216 = vpop.f32.mrf.mxu0
      %v1217 = vadd.f32 0.0, %v1216
      %v1218 = vpop.f32.mrf.mxu0
      %v1219 = vpop.f32.mrf.mxu0
      %v1220 = vadd.f32 0.0, %v1219
      %v1221 = vpop.f32.mrf.mxu0
      %1222 = vmatprep.mubr.bf16.mxu0 0
      %1223 = vmatmul.mubr.bf16.gmra.mxu0 %v491
      %v1224 = vpop.f32.mrf.mxu0
      %v1225 = vadd.f32 0.0, %v1224
      %v1226 = vpop.f32.mrf.mxu0
      %v1227 = vpop.f32.mrf.mxu0
      %v1228 = vadd.f32 0.0, %v1227
      %v1229 = vpop.f32.mrf.mxu0
      %1230 = vmatprep.mubr.bf16.mxu0 0
      %1231 = vmatmul.mubr.bf16.gmra.mxu0 %v494
      %v1232 = vpop.f32.mrf.mxu0
      %v1233 = vadd.f32 0.0, %v1232
      %v1234 = vpop.f32.mrf.mxu0
      %v1235 = vpop.f32.mrf.mxu0
      %v1236 = vadd.f32 0.0, %v1235
      %v1237 = vpop.f32.mrf.mxu0
      %1238 = vmatprep.mubr.bf16.mxu0 0
      %1239 = vmatmul.mubr.bf16.gmra.mxu0 %v497
      %v1240 = vpop.f32.mrf.mxu0
      %v1241 = vadd.f32 0.0, %v1240
      %v1242 = vpop.f32.mrf.mxu0
      %v1243 = vpop.f32.mrf.mxu0
      %v1244 = vadd.f32 0.0, %v1243
      %v1245 = vpop.f32.mrf.mxu0
      %1246 = vmatprep.mubr.bf16.mxu0 0
      %1247 = vmatmul.mubr.bf16.gmra.mxu0 %v1153
      %v1248 = vpop.f32.mrf.mxu0
      %v1249 = vadd.f32 0.0, %v1248
      %v1250 = vpop.f32.mrf.mxu0
      %v1251 = vpop.f32.mrf.mxu0
      %v1252 = vadd.f32 0.0, %v1251
      %v1253 = vpop.f32.mrf.mxu0
      %1254 = vdwg.mxu0
      %v1255 = vadd.f32 %v1107, %v1193
      %v1256 = vadd.f32 %v1108, %v1196
      %v1257 = vadd.f32 %v1109, %v1201
      %v1258 = vadd.f32 %v1110, %v1204
      %v1259 = vadd.f32 %v1111, %v1209
      %v1260 = vadd.f32 %v1112, %v1212
      %v1261 = vadd.f32 %v1113, %v1217
      %v1262 = vadd.f32 %v1114, %v1220
      %v1263 = vadd.f32 %v1115, %v1225
      %v1264 = vadd.f32 %v1116, %v1228
      %v1265 = vadd.f32 %v1117, %v1233
      %v1266 = vadd.f32 %v1118, %v1236
      %v1267 = vadd.f32 %v1119, %v1241
      %v1268 = vadd.f32 %v1120, %v1244
      %v1269 = vadd.f32 %v1121, %v1249
      %v1270 = vadd.f32 %v1122, %v1252
      %v1272 = vrot.slane %v246, 5
      %v1273 = vrot.slane %v1272, 4
      %v1274 = vrot.slane %v247, 5
      %v1275 = vsel %vm774, %v1273, %v1274
      %v1276 = vrot.slane %v1274, 4
      %v1277 = vrot.slane %v248, 5
      %v1278 = vsel %vm774, %v1276, %v1277
      %s1279 = scalar_lea.vmem %s1, 10
      %v1280 = vld [vmem:[%s1279] sm:$0x3]
      %v1281 = vunpack.c.l.b16 %v1275
      %v1282 = vunpack.c.l.b16 %v1278
      %v1283 = vpack.c.b16 %v1282, %v1281
      %v1285 = vsel %vm474, %v1283, 0
      %v1288 = vsel %vm499, %v1280, 0
      %1290 = vmatprep.subr.bf16.mxu0 0
      %1291 = vmatpush1.bf16.msra.mxu0 0
      %1292 = vmatprep.subr.bf16.mxu0 0
      %1293 = vmatpush1.bf16.msra.mxu0 0
      %1294 = vmatprep.subr.bf16.mxu0 0
      %1295 = vmatpush1.bf16.msra.mxu0 0
      %1296 = vmatprep.subr.bf16.mxu0 0
      %1297 = vmatpush1.bf16.msra.mxu0 0
      %1298 = vmatprep.subr.bf16.mxu0 0
      %1299 = vmatpush1.bf16.msra.mxu0 0
      %1300 = vmatprep.subr.bf16.mxu0 0
      %1301 = vmatpush1.bf16.msra.mxu0 0
      %1302 = vmatprep.subr.bf16.mxu0 0
      %1303 = vmatpush1.bf16.msra.mxu0 0
      %1304 = vmatprep.subr.bf16.mxu0 0
      %1305 = vmatpush1.bf16.msra.mxu0 %v1288
      %1306 = vmatprep.subr.bf16.mxu0 0
      %1307 = vmatpush2.bf16.msra.mxu0 0
      %1308 = vmatprep.subr.bf16.mxu0 0
      %1309 = vmatpush2.bf16.msra.mxu0 0
      %1310 = vmatprep.subr.bf16.mxu0 0
      %1311 = vmatpush2.bf16.msra.mxu0 0
      %1312 = vmatprep.subr.bf16.mxu0 0
      %1313 = vmatpush2.bf16.msra.mxu0 0
      %1314 = vmatprep.subr.bf16.mxu0 0
      %1315 = vmatpush2.bf16.msra.mxu0 0
      %1316 = vmatprep.subr.bf16.mxu0 0
      %1317 = vmatpush2.bf16.msra.mxu0 0
      %1318 = vmatprep.subr.bf16.mxu0 0
      %1319 = vmatpush2.bf16.msra.mxu0 0
      %1320 = vmatprep.subr.bf16.mxu0 0
      %1321 = vmatpush2.bf16.msra.mxu0 0
      %1322 = vmatprep.mubr.bf16.mxu0 0
      %1323 = vmatmul.mubr.bf16.gmra.mxu0 %v861
      %v1324 = vpop.f32.mrf.mxu0
      %v1325 = vadd.f32 0.0, %v1324
      %v1326 = vpop.f32.mrf.mxu0
      %v1327 = vpop.f32.mrf.mxu0
      %v1328 = vadd.f32 0.0, %v1327
      %v1329 = vpop.f32.mrf.mxu0
      %1330 = vmatprep.mubr.bf16.mxu0 0
      %1331 = vmatmul.mubr.bf16.gmra.mxu0 %v864
      %v1332 = vpop.f32.mrf.mxu0
      %v1333 = vadd.f32 0.0, %v1332
      %v1334 = vpop.f32.mrf.mxu0
      %v1335 = vpop.f32.mrf.mxu0
      %v1336 = vadd.f32 0.0, %v1335
      %v1337 = vpop.f32.mrf.mxu0
      %1338 = vmatprep.mubr.bf16.mxu0 0
      %1339 = vmatmul.mubr.bf16.gmra.mxu0 %v867
      %v1340 = vpop.f32.mrf.mxu0
      %v1341 = vadd.f32 0.0, %v1340
      %v1342 = vpop.f32.mrf.mxu0
      %v1343 = vpop.f32.mrf.mxu0
      %v1344 = vadd.f32 0.0, %v1343
      %v1345 = vpop.f32.mrf.mxu0
      %1346 = vmatprep.mubr.bf16.mxu0 0
      %1347 = vmatmul.mubr.bf16.gmra.mxu0 %v870
      %v1348 = vpop.f32.mrf.mxu0
      %v1349 = vadd.f32 0.0, %v1348
      %v1350 = vpop.f32.mrf.mxu0
      %v1351 = vpop.f32.mrf.mxu0
      %v1352 = vadd.f32 0.0, %v1351
      %v1353 = vpop.f32.mrf.mxu0
      %1354 = vmatprep.mubr.bf16.mxu0 0
      %1355 = vmatmul.mubr.bf16.gmra.mxu0 %v873
      %v1356 = vpop.f32.mrf.mxu0
      %v1357 = vadd.f32 0.0, %v1356
      %v1358 = vpop.f32.mrf.mxu0
      %v1359 = vpop.f32.mrf.mxu0
      %v1360 = vadd.f32 0.0, %v1359
      %v1361 = vpop.f32.mrf.mxu0
      %1362 = vmatprep.mubr.bf16.mxu0 0
      %1363 = vmatmul.mubr.bf16.gmra.mxu0 %v876
      %v1364 = vpop.f32.mrf.mxu0
      %v1365 = vadd.f32 0.0, %v1364
      %v1366 = vpop.f32.mrf.mxu0
      %v1367 = vpop.f32.mrf.mxu0
      %v1368 = vadd.f32 0.0, %v1367
      %v1369 = vpop.f32.mrf.mxu0
      %1370 = vmatprep.mubr.bf16.mxu0 0
      %1371 = vmatmul.mubr.bf16.gmra.mxu0 %v879
      %v1372 = vpop.f32.mrf.mxu0
      %v1373 = vadd.f32 0.0, %v1372
      %v1374 = vpop.f32.mrf.mxu0
      %v1375 = vpop.f32.mrf.mxu0
      %v1376 = vadd.f32 0.0, %v1375
      %v1377 = vpop.f32.mrf.mxu0
      %1378 = vmatprep.mubr.bf16.mxu0 0
      %1379 = vmatmul.mubr.bf16.gmra.mxu0 %v1285
      %v1380 = vpop.f32.mrf.mxu0
      %v1381 = vadd.f32 0.0, %v1380
      %v1382 = vpop.f32.mrf.mxu0
      %v1383 = vpop.f32.mrf.mxu0
      %v1384 = vadd.f32 0.0, %v1383
      %v1385 = vpop.f32.mrf.mxu0
      %1386 = vdwg.mxu0
      %v1387 = vadd.f32 %v1255, %v1325
      %v1388 = vadd.f32 %v1256, %v1328
      %v1389 = vadd.f32 %v1257, %v1333
      %v1390 = vadd.f32 %v1258, %v1336
      %v1391 = vadd.f32 %v1259, %v1341
      %v1392 = vadd.f32 %v1260, %v1344
      %v1393 = vadd.f32 %v1261, %v1349
      %v1394 = vadd.f32 %v1262, %v1352
      %v1395 = vadd.f32 %v1263, %v1357
      %v1396 = vadd.f32 %v1264, %v1360
      %v1397 = vadd.f32 %v1265, %v1365
      %v1398 = vadd.f32 %v1266, %v1368
      %v1399 = vadd.f32 %v1267, %v1373
      %v1400 = vadd.f32 %v1268, %v1376
      %v1401 = vadd.f32 %v1269, %v1381
      %v1402 = vadd.f32 %v1270, %v1384
      %s1403 = scalar_lea.vmem %s1, 12
      %v1404 = vld [vmem:[%s1403] sm:$0x3]
      %v1407 = vunpack.c.l.b16 %v249
      %v1408 = vunpack.c.l.b16 %v250
      %v1409 = vpack.c.b16 %v1408, %v1407
      %v1411 = vsel %vm474, %v1409, 0
      %v1414 = vsel %vm499, %v1404, 0
      %1416 = vmatprep.subr.bf16.mxu0 0
      %1417 = vmatpush1.bf16.msra.mxu0 0
      %1418 = vmatprep.subr.bf16.mxu0 0
      %1419 = vmatpush1.bf16.msra.mxu0 0
      %1420 = vmatprep.subr.bf16.mxu0 0
      %1421 = vmatpush1.bf16.msra.mxu0 0
      %1422 = vmatprep.subr.bf16.mxu0 0
      %1423 = vmatpush1.bf16.msra.mxu0 0
      %1424 = vmatprep.subr.bf16.mxu0 0
      %1425 = vmatpush1.bf16.msra.mxu0 0
      %1426 = vmatprep.subr.bf16.mxu0 0
      %1427 = vmatpush1.bf16.msra.mxu0 0
      %1428 = vmatprep.subr.bf16.mxu0 0
      %1429 = vmatpush1.bf16.msra.mxu0 0
      %1430 = vmatprep.subr.bf16.mxu0 0
      %1431 = vmatpush1.bf16.msra.mxu0 %v1414
      %1432 = vmatprep.subr.bf16.mxu0 0
      %1433 = vmatpush2.bf16.msra.mxu0 0
      %1434 = vmatprep.subr.bf16.mxu0 0
      %1435 = vmatpush2.bf16.msra.mxu0 0
      %1436 = vmatprep.subr.bf16.mxu0 0
      %1437 = vmatpush2.bf16.msra.mxu0 0
      %1438 = vmatprep.subr.bf16.mxu0 0
      %1439 = vmatpush2.bf16.msra.mxu0 0
      %1440 = vmatprep.subr.bf16.mxu0 0
      %1441 = vmatpush2.bf16.msra.mxu0 0
      %1442 = vmatprep.subr.bf16.mxu0 0
      %1443 = vmatpush2.bf16.msra.mxu0 0
      %1444 = vmatprep.subr.bf16.mxu0 0
      %1445 = vmatpush2.bf16.msra.mxu0 0
      %1446 = vmatprep.subr.bf16.mxu0 0
      %1447 = vmatpush2.bf16.msra.mxu0 0
      %1448 = vmatprep.mubr.bf16.mxu0 0
      %1449 = vmatmul.mubr.bf16.gmra.mxu0 %v647
      %v1450 = vpop.f32.mrf.mxu0
      %v1451 = vadd.f32 0.0, %v1450
      %v1452 = vpop.f32.mrf.mxu0
      %v1453 = vpop.f32.mrf.mxu0
      %v1454 = vadd.f32 0.0, %v1453
      %v1455 = vpop.f32.mrf.mxu0
      %1456 = vmatprep.mubr.bf16.mxu0 0
      %1457 = vmatmul.mubr.bf16.gmra.mxu0 %v650
      %v1458 = vpop.f32.mrf.mxu0
      %v1459 = vadd.f32 0.0, %v1458
      %v1460 = vpop.f32.mrf.mxu0
      %v1461 = vpop.f32.mrf.mxu0
      %v1462 = vadd.f32 0.0, %v1461
      %v1463 = vpop.f32.mrf.mxu0
      %1464 = vmatprep.mubr.bf16.mxu0 0
      %1465 = vmatmul.mubr.bf16.gmra.mxu0 %v653
      %v1466 = vpop.f32.mrf.mxu0
      %v1467 = vadd.f32 0.0, %v1466
      %v1468 = vpop.f32.mrf.mxu0
      %v1469 = vpop.f32.mrf.mxu0
      %v1470 = vadd.f32 0.0, %v1469
      %v1471 = vpop.f32.mrf.mxu0
      %1472 = vmatprep.mubr.bf16.mxu0 0
      %1473 = vmatmul.mubr.bf16.gmra.mxu0 %v656
      %v1474 = vpop.f32.mrf.mxu0
      %v1475 = vadd.f32 0.0, %v1474
      %v1476 = vpop.f32.mrf.mxu0
      %v1477 = vpop.f32.mrf.mxu0
      %v1478 = vadd.f32 0.0, %v1477
      %v1479 = vpop.f32.mrf.mxu0
      %1480 = vmatprep.mubr.bf16.mxu0 0
      %1481 = vmatmul.mubr.bf16.gmra.mxu0 %v659
      %v1482 = vpop.f32.mrf.mxu0
      %v1483 = vadd.f32 0.0, %v1482
      %v1484 = vpop.f32.mrf.mxu0
      %v1485 = vpop.f32.mrf.mxu0
      %v1486 = vadd.f32 0.0, %v1485
      %v1487 = vpop.f32.mrf.mxu0
      %1488 = vmatprep.mubr.bf16.mxu0 0
      %1489 = vmatmul.mubr.bf16.gmra.mxu0 %v662
      %v1490 = vpop.f32.mrf.mxu0
      %v1491 = vadd.f32 0.0, %v1490
      %v1492 = vpop.f32.mrf.mxu0
      %v1493 = vpop.f32.mrf.mxu0
      %v1494 = vadd.f32 0.0, %v1493
      %v1495 = vpop.f32.mrf.mxu0
      %1496 = vmatprep.mubr.bf16.mxu0 0
      %1497 = vmatmul.mubr.bf16.gmra.mxu0 %v1005
      %v1498 = vpop.f32.mrf.mxu0
      %v1499 = vadd.f32 0.0, %v1498
      %v1500 = vpop.f32.mrf.mxu0
      %v1501 = vpop.f32.mrf.mxu0
      %v1502 = vadd.f32 0.0, %v1501
      %v1503 = vpop.f32.mrf.mxu0
      %1504 = vmatprep.mubr.bf16.mxu0 0
      %1505 = vmatmul.mubr.bf16.gmra.mxu0 %v1411
      %v1506 = vpop.f32.mrf.mxu0
      %v1507 = vadd.f32 0.0, %v1506
      %v1508 = vpop.f32.mrf.mxu0
      %v1509 = vpop.f32.mrf.mxu0
      %v1510 = vadd.f32 0.0, %v1509
      %v1511 = vpop.f32.mrf.mxu0
      %1512 = vdwg.mxu0
      %v1513 = vadd.f32 %v1387, %v1451
      %v1514 = vadd.f32 %v1388, %v1454
      %v1515 = vadd.f32 %v1389, %v1459
      %v1516 = vadd.f32 %v1390, %v1462
      %v1517 = vadd.f32 %v1391, %v1467
      %v1518 = vadd.f32 %v1392, %v1470
      %v1519 = vadd.f32 %v1393, %v1475
      %v1520 = vadd.f32 %v1394, %v1478
      %v1521 = vadd.f32 %v1395, %v1483
      %v1522 = vadd.f32 %v1396, %v1486
      %v1523 = vadd.f32 %v1397, %v1491
      %v1524 = vadd.f32 %v1398, %v1494
      %v1525 = vadd.f32 %v1399, %v1499
      %v1526 = vadd.f32 %v1400, %v1502
      %v1527 = vadd.f32 %v1401, %v1507
      %v1528 = vadd.f32 %v1402, %v1510
      %v1530 = vshrl.u32 %v249, 16
      %v1532 = vrot.slane %v1530, 4
      %v1533 = vshll.u32 %v249, 16
      %v1535 = vrot.slane %v1533, 5
      %v1536 = vor.u32 %v1532, %v1535
      %v1537 = vrot.slane %v1536, 4
      %v1539 = vshll.u32 %v250, 16
      %v1541 = vrot.slane %v1539, 5
      %v1542 = vsel %vm255, %v1537, %v1541
      %v1543 = vshrl.u32 %v250, 16
      %v1545 = vrot.slane %v1543, 4
      %v1546 = vor.u32 %v1545, %v1541
      %v1547 = vrot.slane %v1546, 4
      %v1549 = vshll.u32 %v251, 16
      %v1551 = vrot.slane %v1549, 5
      %v1552 = vsel %vm255, %v1547, %v1551
      %s1553 = scalar_lea.vmem %s1, 14
      %v1554 = vld [vmem:[%s1553] sm:$0x3]
      %v1555 = vunpack.c.l.b16 %v1542
      %v1556 = vunpack.c.l.b16 %v1552
      %v1557 = vpack.c.b16 %v1556, %v1555
      %v1559 = vsel %vm474, %v1557, 0
      %v1562 = vsel %vm499, %v1554, 0
      %1564 = vmatprep.subr.bf16.mxu0 0
      %1565 = vmatpush1.bf16.msra.mxu0 0
      %1566 = vmatprep.subr.bf16.mxu0 0
      %1567 = vmatpush1.bf16.msra.mxu0 0
      %1568 = vmatprep.subr.bf16.mxu0 0
      %1569 = vmatpush1.bf16.msra.mxu0 0
      %1570 = vmatprep.subr.bf16.mxu0 0
      %1571 = vmatpush1.bf16.msra.mxu0 0
      %1572 = vmatprep.subr.bf16.mxu0 0
      %1573 = vmatpush1.bf16.msra.mxu0 0
      %1574 = vmatprep.subr.bf16.mxu0 0
      %1575 = vmatpush1.bf16.msra.mxu0 0
      %1576 = vmatprep.subr.bf16.mxu0 0
      %1577 = vmatpush1.bf16.msra.mxu0 0
      %1578 = vmatprep.subr.bf16.mxu0 0
      %1579 = vmatpush1.bf16.msra.mxu0 %v1562
      %1580 = vmatprep.subr.bf16.mxu0 0
      %1581 = vmatpush2.bf16.msra.mxu0 0
      %1582 = vmatprep.subr.bf16.mxu0 0
      %1583 = vmatpush2.bf16.msra.mxu0 0
      %1584 = vmatprep.subr.bf16.mxu0 0
      %1585 = vmatpush2.bf16.msra.mxu0 0
      %1586 = vmatprep.subr.bf16.mxu0 0
      %1587 = vmatpush2.bf16.msra.mxu0 0
      %1588 = vmatprep.subr.bf16.mxu0 0
      %1589 = vmatpush2.bf16.msra.mxu0 0
      %1590 = vmatprep.subr.bf16.mxu0 0
      %1591 = vmatpush2.bf16.msra.mxu0 0
      %1592 = vmatprep.subr.bf16.mxu0 0
      %1593 = vmatpush2.bf16.msra.mxu0 0
      %1594 = vmatprep.subr.bf16.mxu0 0
      %1595 = vmatpush2.bf16.msra.mxu0 0
      %1596 = vmatprep.mubr.bf16.mxu0 0
      %1597 = vmatmul.mubr.bf16.gmra.mxu0 %v482
      %v1598 = vpop.f32.mrf.mxu0
      %v1599 = vadd.f32 0.0, %v1598
      %v1600 = vpop.f32.mrf.mxu0
      %v1601 = vpop.f32.mrf.mxu0
      %v1602 = vadd.f32 0.0, %v1601
      %v1603 = vpop.f32.mrf.mxu0
      %1604 = vmatprep.mubr.bf16.mxu0 0
      %1605 = vmatmul.mubr.bf16.gmra.mxu0 %v485
      %v1606 = vpop.f32.mrf.mxu0
      %v1607 = vadd.f32 0.0, %v1606
      %v1608 = vpop.f32.mrf.mxu0
      %v1609 = vpop.f32.mrf.mxu0
      %v1610 = vadd.f32 0.0, %v1609
      %v1611 = vpop.f32.mrf.mxu0
      %1612 = vmatprep.mubr.bf16.mxu0 0
      %1613 = vmatmul.mubr.bf16.gmra.mxu0 %v488
      %v1614 = vpop.f32.mrf.mxu0
      %v1615 = vadd.f32 0.0, %v1614
      %v1616 = vpop.f32.mrf.mxu0
      %v1617 = vpop.f32.mrf.mxu0
      %v1618 = vadd.f32 0.0, %v1617
      %v1619 = vpop.f32.mrf.mxu0
      %1620 = vmatprep.mubr.bf16.mxu0 0
      %1621 = vmatmul.mubr.bf16.gmra.mxu0 %v491
      %v1622 = vpop.f32.mrf.mxu0
      %v1623 = vadd.f32 0.0, %v1622
      %v1624 = vpop.f32.mrf.mxu0
      %v1625 = vpop.f32.mrf.mxu0
      %v1626 = vadd.f32 0.0, %v1625
      %v1627 = vpop.f32.mrf.mxu0
      %1628 = vmatprep.mubr.bf16.mxu0 0
      %1629 = vmatmul.mubr.bf16.gmra.mxu0 %v494
      %v1630 = vpop.f32.mrf.mxu0
      %v1631 = vadd.f32 0.0, %v1630
      %v1632 = vpop.f32.mrf.mxu0
      %v1633 = vpop.f32.mrf.mxu0
      %v1634 = vadd.f32 0.0, %v1633
      %v1635 = vpop.f32.mrf.mxu0
      %1636 = vmatprep.mubr.bf16.mxu0 0
      %1637 = vmatmul.mubr.bf16.gmra.mxu0 %v497
      %v1638 = vpop.f32.mrf.mxu0
      %v1639 = vadd.f32 0.0, %v1638
      %v1640 = vpop.f32.mrf.mxu0
      %v1641 = vpop.f32.mrf.mxu0
      %v1642 = vadd.f32 0.0, %v1641
      %v1643 = vpop.f32.mrf.mxu0
      %1644 = vmatprep.mubr.bf16.mxu0 0
      %1645 = vmatmul.mubr.bf16.gmra.mxu0 %v1153
      %v1646 = vpop.f32.mrf.mxu0
      %v1647 = vadd.f32 0.0, %v1646
      %v1648 = vpop.f32.mrf.mxu0
      %v1649 = vpop.f32.mrf.mxu0
      %v1650 = vadd.f32 0.0, %v1649
      %v1651 = vpop.f32.mrf.mxu0
      %1652 = vmatprep.mubr.bf16.mxu0 0
      %1653 = vmatmul.mubr.bf16.gmra.mxu0 %v1559
      %v1654 = vpop.f32.mrf.mxu0
      %v1655 = vadd.f32 0.0, %v1654
      %v1656 = vpop.f32.mrf.mxu0
      %v1657 = vpop.f32.mrf.mxu0
      %v1658 = vadd.f32 0.0, %v1657
      %v1659 = vpop.f32.mrf.mxu0
      %1660 = vdwg.mxu0
      %v1661 = vadd.f32 %v1513, %v1599
      %v1662 = vadd.f32 %v1514, %v1602
      %v1663 = vadd.f32 %v1515, %v1607
      %v1664 = vadd.f32 %v1516, %v1610
      %v1665 = vadd.f32 %v1517, %v1615
      %v1666 = vadd.f32 %v1518, %v1618
      %v1667 = vadd.f32 %v1519, %v1623
      %v1668 = vadd.f32 %v1520, %v1626
      %v1669 = vadd.f32 %v1521, %v1631
      %v1670 = vadd.f32 %v1522, %v1634
      %v1671 = vadd.f32 %v1523, %v1639
      %v1672 = vadd.f32 %v1524, %v1642
      %v1673 = vadd.f32 %v1525, %v1647
      %v1674 = vadd.f32 %v1526, %v1650
      %v1675 = vadd.f32 %v1527, %v1655
      %v1676 = vadd.f32 %v1528, %v1658
      %v1678 = vrot.slane %v249, 5
      %v1679 = vrot.slane %v1678, 4
      %v1680 = vrot.slane %v250, 5
      %v1681 = vsel %vm774, %v1679, %v1680
      %v1682 = vrot.slane %v1680, 4
      %v1683 = vrot.slane %v251, 5
      %v1684 = vsel %vm774, %v1682, %v1683
      %s1685 = scalar_lea.vmem %s1, 16
      %v1686 = vld [vmem:[%s1685] sm:$0x3]
      %v1687 = vunpack.c.l.b16 %v1681
      %v1688 = vunpack.c.l.b16 %v1684
      %v1689 = vpack.c.b16 %v1688, %v1687
      %v1691 = vsel %vm474, %v1689, 0
      %v1694 = vsel %vm499, %v1686, 0
      %1696 = vmatprep.subr.bf16.mxu0 0
      %1697 = vmatpush1.bf16.msra.mxu0 0
      %1698 = vmatprep.subr.bf16.mxu0 0
      %1699 = vmatpush1.bf16.msra.mxu0 0
      %1700 = vmatprep.subr.bf16.mxu0 0
      %1701 = vmatpush1.bf16.msra.mxu0 0
      %1702 = vmatprep.subr.bf16.mxu0 0
      %1703 = vmatpush1.bf16.msra.mxu0 0
      %1704 = vmatprep.subr.bf16.mxu0 0
      %1705 = vmatpush1.bf16.msra.mxu0 0
      %1706 = vmatprep.subr.bf16.mxu0 0
      %1707 = vmatpush1.bf16.msra.mxu0 0
      %1708 = vmatprep.subr.bf16.mxu0 0
      %1709 = vmatpush1.bf16.msra.mxu0 0
      %1710 = vmatprep.subr.bf16.mxu0 0
      %1711 = vmatpush1.bf16.msra.mxu0 %v1694
      %1712 = vmatprep.subr.bf16.mxu0 0
      %1713 = vmatpush2.bf16.msra.mxu0 0
      %1714 = vmatprep.subr.bf16.mxu0 0
      %1715 = vmatpush2.bf16.msra.mxu0 0
      %1716 = vmatprep.subr.bf16.mxu0 0
      %1717 = vmatpush2.bf16.msra.mxu0 0
      %1718 = vmatprep.subr.bf16.mxu0 0
      %1719 = vmatpush2.bf16.msra.mxu0 0
      %1720 = vmatprep.subr.bf16.mxu0 0
      %1721 = vmatpush2.bf16.msra.mxu0 0
      %1722 = vmatprep.subr.bf16.mxu0 0
      %1723 = vmatpush2.bf16.msra.mxu0 0
      %1724 = vmatprep.subr.bf16.mxu0 0
      %1725 = vmatpush2.bf16.msra.mxu0 0
      %1726 = vmatprep.subr.bf16.mxu0 0
      %1727 = vmatpush2.bf16.msra.mxu0 0
      %1728 = vmatprep.mubr.bf16.mxu0 0
      %1729 = vmatmul.mubr.bf16.gmra.mxu0 %v864
      %v1730 = vpop.f32.mrf.mxu0
      %v1731 = vadd.f32 0.0, %v1730
      %v1732 = vpop.f32.mrf.mxu0
      %v1733 = vpop.f32.mrf.mxu0
      %v1734 = vadd.f32 0.0, %v1733
      %v1735 = vpop.f32.mrf.mxu0
      %1736 = vmatprep.mubr.bf16.mxu0 0
      %1737 = vmatmul.mubr.bf16.gmra.mxu0 %v867
      %v1738 = vpop.f32.mrf.mxu0
      %v1739 = vadd.f32 0.0, %v1738
      %v1740 = vpop.f32.mrf.mxu0
      %v1741 = vpop.f32.mrf.mxu0
      %v1742 = vadd.f32 0.0, %v1741
      %v1743 = vpop.f32.mrf.mxu0
      %1744 = vmatprep.mubr.bf16.mxu0 0
      %1745 = vmatmul.mubr.bf16.gmra.mxu0 %v870
      %v1746 = vpop.f32.mrf.mxu0
      %v1747 = vadd.f32 0.0, %v1746
      %v1748 = vpop.f32.mrf.mxu0
      %v1749 = vpop.f32.mrf.mxu0
      %v1750 = vadd.f32 0.0, %v1749
      %v1751 = vpop.f32.mrf.mxu0
      %1752 = vmatprep.mubr.bf16.mxu0 0
      %1753 = vmatmul.mubr.bf16.gmra.mxu0 %v873
      %v1754 = vpop.f32.mrf.mxu0
      %v1755 = vadd.f32 0.0, %v1754
      %v1756 = vpop.f32.mrf.mxu0
      %v1757 = vpop.f32.mrf.mxu0
      %v1758 = vadd.f32 0.0, %v1757
      %v1759 = vpop.f32.mrf.mxu0
      %1760 = vmatprep.mubr.bf16.mxu0 0
      %1761 = vmatmul.mubr.bf16.gmra.mxu0 %v876
      %v1762 = vpop.f32.mrf.mxu0
      %v1763 = vadd.f32 0.0, %v1762
      %v1764 = vpop.f32.mrf.mxu0
      %v1765 = vpop.f32.mrf.mxu0
      %v1766 = vadd.f32 0.0, %v1765
      %v1767 = vpop.f32.mrf.mxu0
      %1768 = vmatprep.mubr.bf16.mxu0 0
      %1769 = vmatmul.mubr.bf16.gmra.mxu0 %v879
      %v1770 = vpop.f32.mrf.mxu0
      %v1771 = vadd.f32 0.0, %v1770
      %v1772 = vpop.f32.mrf.mxu0
      %v1773 = vpop.f32.mrf.mxu0
      %v1774 = vadd.f32 0.0, %v1773
      %v1775 = vpop.f32.mrf.mxu0
      %1776 = vmatprep.mubr.bf16.mxu0 0
      %1777 = vmatmul.mubr.bf16.gmra.mxu0 %v1285
      %v1778 = vpop.f32.mrf.mxu0
      %v1779 = vadd.f32 0.0, %v1778
      %v1780 = vpop.f32.mrf.mxu0
      %v1781 = vpop.f32.mrf.mxu0
      %v1782 = vadd.f32 0.0, %v1781
      %v1783 = vpop.f32.mrf.mxu0
      %1784 = vmatprep.mubr.bf16.mxu0 0
      %1785 = vmatmul.mubr.bf16.gmra.mxu0 %v1691
      %v1786 = vpop.f32.mrf.mxu0
      %v1787 = vadd.f32 0.0, %v1786
      %v1788 = vpop.f32.mrf.mxu0
      %v1789 = vpop.f32.mrf.mxu0
      %v1790 = vadd.f32 0.0, %v1789
      %v1791 = vpop.f32.mrf.mxu0
      %1792 = vdwg.mxu0
      %v1793 = vadd.f32 %v1661, %v1731
      %v1794 = vadd.f32 %v1662, %v1734
      %v1795 = vadd.f32 %v1663, %v1739
      %v1796 = vadd.f32 %v1664, %v1742
      %v1797 = vadd.f32 %v1665, %v1747
      %v1798 = vadd.f32 %v1666, %v1750
      %v1799 = vadd.f32 %v1667, %v1755
      %v1800 = vadd.f32 %v1668, %v1758
      %v1801 = vadd.f32 %v1669, %v1763
      %v1802 = vadd.f32 %v1670, %v1766
      %v1803 = vadd.f32 %v1671, %v1771
      %v1804 = vadd.f32 %v1672, %v1774
      %v1805 = vadd.f32 %v1673, %v1779
      %v1806 = vadd.f32 %v1674, %v1782
      %v1807 = vadd.f32 %v1675, %v1787
      %v1808 = vadd.f32 %v1676, %v1790
      %1809 = vst [vmem:[%s207] sm:$0xff] %v1793
      %1810 = vst [vmem:[%s207 + $0x8] sm:$0xff] %v1794
      %1811 = vst [vmem:[%s207 + $0x10] sm:$0xff] %v1795
      %1812 = vst [vmem:[%s207 + $0x18] sm:$0xff] %v1796
      %1813 = vst [vmem:[%s207 + $0x20] sm:$0xff] %v1797
      %1814 = vst [vmem:[%s207 + $0x28] sm:$0xff] %v1798
      %1815 = vst [vmem:[%s207 + $0x30] sm:$0xff] %v1799
      %1816 = vst [vmem:[%s207 + $0x38] sm:$0xff] %v1800
      %1817 = vst [vmem:[%s207 + $0x40] sm:$0xff] %v1801
      %1818 = vst [vmem:[%s207 + $0x48] sm:$0xff] %v1802
      %1819 = vst [vmem:[%s207 + $0x50] sm:$0xff] %v1803
      %1820 = vst [vmem:[%s207 + $0x58] sm:$0xff] %v1804
      %1821 = vst [vmem:[%s207 + $0x60] sm:$0xff] %v1805
      %1822 = vst [vmem:[%s207 + $0x68] sm:$0xff] %v1806
      %1823 = vst [vmem:[%s207 + $0x70] sm:$0xff] %v1807
      %1824 = vst [vmem:[%s207 + $0x78] sm:$0xff] %v1808
      %v1825 = vadd.f32 %v1793, %v1794
      %v1826 = vadd.f32 %v1825, %v1795
      %v1827 = vadd.f32 %v1826, %v1796
      %v1828 = vadd.f32 %v1827, %v1797
      %v1829 = vadd.f32 %v1828, %v1798
      %v1830 = vadd.f32 %v1829, %v1799
      %v1831 = vadd.f32 %v1830, %v1800
      %v1832 = vadd.f32 %v1831, %v1801
      %v1833 = vadd.f32 %v1832, %v1802
      %v1834 = vadd.f32 %v1833, %v1803
      %v1835 = vadd.f32 %v1834, %v1804
      %v1836 = vadd.f32 %v1835, %v1805
      %v1837 = vadd.f32 %v1836, %v1806
      %v1838 = vadd.f32 %v1837, %v1807
      %v1839 = vadd.f32 %v1838, %v1808
      %v1840 = vrot.slane %v1839, 4
      %v1841 = vadd.f32 %v1839, %v1840
      %v1842 = vrot.slane %v1841, 2
      %v1843 = vadd.f32 %v1841, %v1842
      %v1844 = vrot.slane %v1843, 1
      %v1845 = vadd.f32 %v1843, %v1844
      %1846 = vst [vmem:[%s216] sm:$0x1] %v1845
      %v1847 = vmul.f32 %v1793, %v1793
      %v1848 = vmul.f32 %v1794, %v1794
      %v1849 = vmul.f32 %v1795, %v1795
      %v1850 = vmul.f32 %v1796, %v1796
      %v1851 = vmul.f32 %v1797, %v1797
      %v1852 = vmul.f32 %v1798, %v1798
      %v1853 = vmul.f32 %v1799, %v1799
      %v1854 = vmul.f32 %v1800, %v1800
      %v1855 = vmul.f32 %v1801, %v1801
      %v1856 = vmul.f32 %v1802, %v1802
      %v1857 = vmul.f32 %v1803, %v1803
      %v1858 = vmul.f32 %v1804, %v1804
      %v1859 = vmul.f32 %v1805, %v1805
      %v1860 = vmul.f32 %v1806, %v1806
      %v1861 = vmul.f32 %v1807, %v1807
      %v1862 = vmul.f32 %v1808, %v1808
      %v1863 = vadd.f32 %v1847, %v1848
      %v1864 = vadd.f32 %v1863, %v1849
      %v1865 = vadd.f32 %v1864, %v1850
      %v1866 = vadd.f32 %v1865, %v1851
      %v1867 = vadd.f32 %v1866, %v1852
      %v1868 = vadd.f32 %v1867, %v1853
      %v1869 = vadd.f32 %v1868, %v1854
      %v1870 = vadd.f32 %v1869, %v1855
      %v1871 = vadd.f32 %v1870, %v1856
      %v1872 = vadd.f32 %v1871, %v1857
      %v1873 = vadd.f32 %v1872, %v1858
      %v1874 = vadd.f32 %v1873, %v1859
      %v1875 = vadd.f32 %v1874, %v1860
      %v1876 = vadd.f32 %v1875, %v1861
      %v1877 = vadd.f32 %v1876, %v1862
      %v1878 = vrot.slane %v1877, 4
      %v1879 = vadd.f32 %v1877, %v1878
      %v1880 = vrot.slane %v1879, 2
      %v1881 = vadd.f32 %v1879, %v1880
      %v1882 = vrot.slane %v1881, 1
      %v1883 = vadd.f32 %v1881, %v1882
      %1884 = vst [vmem:[%s216 + $0x1] sm:$0x1] %v1883
      %s1885 = smul.u32 8, %s20
      %p1886 = scmp.lt.s32.totalorder %s19, 1
      %s1887 = scalar_select %p1886, %s19, 1
      %p1888 = scmp.lt.s32.totalorder %s1885, 15
      %s1889 = scalar_select %p1888, %s1885, 15
      %s1890 = smul.addr %s1889, 2
      %s1891 = smul.addr %s1887, 32
      %s1892 = sadd.s32 %s1890, %s1891
      %s1893 = smul.addr %s1892, 8
      %s1894 = scalar_lea.vmem %s2, %s1893
      %p1895 = scmp.lt.s32.totalorder %s19, 1
      %s1896 = scalar_select %p1895, %s19, 1
      %p1897 = scmp.lt.s32.totalorder %s20, 1
      %s1898 = scalar_select %p1897, %s20, 1
      %s1899 = smul.addr %s1896, 2
      %s1900 = sadd.s32 %s1898, %s1899
      %s1901 = smul.addr %s1900, 2
      %s1902 = scalar_lea.vmem %s3, %s1901
      // Predicated region
      $region29: #{double_conv.4} parent=27 // pred_check
        %p1903 = pneg %p94
      $region30: #{double_conv.4} parent=27 // pred_check_branch
        %1905 = sbr.rel (%p1903) target = $region32
      $region31: #{double_conv.4} parent=27 // pred_region
        %s1906 = smul.u32 8, %s20
      $region32: #{double_conv.4} parent=27 // pred_fallthru
        _
      // Predicated region
      $region33: #{double_conv.4} parent=27 // pred_check
        %p1907 = pneg %p122
      $region34: #{double_conv.4} parent=27 // pred_check_branch
        %1909 = sbr.rel (%p1907) target = $region36
      $region35: #{double_conv.4} parent=27 // pred_region
        _
      $region36: #{double_conv.4} parent=27 // pred_fallthru
        _
    $region28: #{double_conv.4} parent=5 // pred_fallthru
      _
    %p1910 = scmp.le.s32.totalorder 2, %s10
    // Predicated region
    $region37: #{double_conv.4} parent=5 // pred_check
      %p1911 = pneg %p1910
    $region38: #{double_conv.4} parent=5 // pred_check_branch
      %1913 = sbr.rel (%p1911) target = $region40
    $region39: #{double_conv.4} parent=5 // pred_region
      %s1914 = ssub.s32 %s10, 2
      // Predicated region
      $region41: #{double_conv.4} parent=39 // pred_check
        %p1915 = pneg %p100
      $region42: #{double_conv.4} parent=39 // pred_check_branch
        %1917 = sbr.rel (%p1915) target = $region44
      $region43: #{double_conv.4} parent=39 // pred_region
        %s1918 = smul.u32 8, %s22
        %p1919 = scmp.lt.s32.totalorder %s21, 1
        %s1920 = scalar_select %p1919, %s21, 1
        %p1921 = scmp.lt.s32.totalorder %s1918, 15
        %s1922 = scalar_select %p1921, %s1918, 15
        %s1923 = smul.addr %s1922, 2
        %s1924 = smul.addr %s1920, 32
        %s1925 = sadd.s32 %s1923, %s1924
        %s1926 = smul.addr %s1925, 8
        %s1927 = scalar_lea.vmem %s2, %s1926
      $region44: #{double_conv.4} parent=39 // pred_fallthru
        _
      // Predicated region
      $region45: #{double_conv.4} parent=39 // pred_check
        %p1928 = pneg %p128
      $region46: #{double_conv.4} parent=39 // pred_check_branch
        %1930 = sbr.rel (%p1928) target = $region48
      $region47: #{double_conv.4} parent=39 // pred_region
        %p1931 = scmp.lt.s32.totalorder %s21, 1
        %s1932 = scalar_select %p1931, %s21, 1
        %p1933 = scmp.lt.s32.totalorder %s22, 1
        %s1934 = scalar_select %p1933, %s22, 1
        %s1935 = smul.addr %s1932, 2
        %s1936 = sadd.s32 %s1934, %s1935
        %s1937 = smul.addr %s1936, 2
        %s1938 = scalar_lea.vmem %s3, %s1937
      $region48: #{double_conv.4} parent=39 // pred_fallthru
        _
    $region40: #{double_conv.4} parent=5 // pred_fallthru
      _
  $region6: #{double_conv.4} parent=0 // loop_footer
    %s14 = sadd.s32 1, %s10
  $region7: #{double_conv.4} parent=0 // loop_footer_branch
    %9 = sbr.rel target = $region3
  $region8: #{double_conv.4} parent=0 // loop_exit
    _

// kernel: double_conv.6
$region0: #{double_conv.6}
  #allocation0 [shape = 'u32[]', space=smem, size = 0x4, offset = 0x4, fixed_abs, tag = 'smem constant byte address 0x4 - core index']
  #allocation1 [shape = 'u32[144,128]{1,0:T(1,128)}', space=vmem, size = 0x12000, scoped, tag = 'internal scratch']
  %s0 = inlined_call_operand.vmem [shape: bf16[2,18,18,128], index: 0, kind: input, shape index: {}]
  %s1 = inlined_call_operand.vmem [shape: bf16[9,128,128], index: 1, kind: input, shape index: {}]
  %s2 = inlined_call_operand.vmem [shape: f32[2,16,16,128], index: 2, kind: output, shape index: {0}]
  %s3 = inlined_call_operand.vmem [shape: f32[2,2,2,128], index: 3, kind: output, shape index: {1}]
  %4 = xla_tuple %s2, %s3
  %s5 = sld [smem:[#allocation0]]
  $region49: #{double_conv.6} parent=0
    _
  %s7 = ssub.s32 1, %s5
  %s8 = scalar_select 0, %s7, %s5
  loop: start=0, step=1, limit=6
  $region2: #{double_conv.6} parent=0 // loop_pre_header
    _
  $region3: #{double_conv.6} parent=0 // loop_header
    %s10 = sphi 0, %s14
    %p11 = scmp.ge.s32.totalorder %s10, 6
    %s17 = sphi 0, %s29
    %s18 = sphi 0, %s25
    %s19 = sphi 0, %s17
    %s20 = sphi 0, %s18
    %s21 = sphi 0, %s19
    %s22 = sphi 0, %s20
    %s32 = sphi 0, %s34
    %s35 = sphi 0, %s32
    %s36 = sphi 0, %s35
    %s52 = sphi 0, %s36
    %s56 = sphi 0, %s56
    %s58 = sphi 0, %s56
    %s59 = sphi 0, %s58
    %s73 = sphi 0, %s59
    %s81 = sphi 0, %s83
    %s84 = sphi 0, %s81
    %s85 = sphi 0, %s84
    %s101 = sphi 0, %s85
    %s109 = sphi 0, %s111
    %s112 = sphi 0, %s109
    %s113 = sphi 0, %s112
    %s129 = sphi 0, %s113
  $region4: #{double_conv.6} parent=0 // loop_header_branch
    %13 = sbr.rel (%p11) target = $region8
  $region5: #{double_conv.6} parent=0 // loop_body
    %s15 = ssub.s32 %s10, 1
    %s16 = ssub.s32 %s10, 2
    %s23 = sadd.s32 1, %s18
    %p24 = scmp.ge.s32.totalorder %s23, 2
    %s25 = scalar_select %p24, 0, %s23
    %s26 = sadd.s32 1, %s17
    %s27 = scalar_select %p24, %s26, %s17
    %p28 = scmp.ge.s32.totalorder %s27, 2
    %s29 = scalar_select %p28, 0, %s27
    %s30 = ssub.s32 %s17, %s29
    %p31 = scmp.eq.s32.totalorder %s30, 0
    %s33 = sadd.s32 %s32, 1
    %s34 = scalar_select %p31, %s32, %s33
    %p37 = pneg %p31
    %p38 = scmp.eq.s32.totalorder %s10, 3
    %p39 = por %p37, %p38
    %p40 = scmp.ne.s32.totalorder %s32, %s35
    %p41 = scmp.eq.s32.totalorder %s10, 0
    %p42 = por %p40, %p41
    %p43 = scmp.ne.s32.totalorder %s32, %s35
    %p44 = scmp.eq.s32.totalorder %s15, 3
    %p45 = por %p43, %p44
    %p46 = scmp.ne.s32.totalorder %s35, %s36
    %p47 = scmp.eq.s32.totalorder %s15, 0
    %p48 = por %p46, %p47
    %p49 = scmp.ne.s32.totalorder %s35, %s36
    %p50 = scmp.eq.s32.totalorder %s16, 3
    %p51 = por %p49, %p50
    %p53 = scmp.ne.s32.totalorder %s36, %s52
    %p54 = scmp.eq.s32.totalorder %s16, 0
    %p55 = por %p53, %p54
    %s57 = sadd.s32 %s56, 1
    %p60 = scmp.eq.s32.totalorder %s10, 3
    %p61 = scmp.ne.s32.totalorder %s56, %s58
    %p62 = scmp.eq.s32.totalorder %s10, 0
    %p63 = por %p61, %p62
    %p64 = scmp.ne.s32.totalorder %s56, %s58
    %p65 = scmp.eq.s32.totalorder %s15, 3
    %p66 = por %p64, %p65
    %p67 = scmp.ne.s32.totalorder %s58, %s59
    %p68 = scmp.eq.s32.totalorder %s15, 0
    %p69 = por %p67, %p68
    %p70 = scmp.ne.s32.totalorder %s58, %s59
    %p71 = scmp.eq.s32.totalorder %s16, 3
    %p72 = por %p70, %p71
    %p74 = scmp.ne.s32.totalorder %s59, %s73
    %p75 = scmp.eq.s32.totalorder %s16, 0
    %p76 = por %p74, %p75
    %s77 = ssub.s32 %s17, %s29
    %s78 = ssub.s32 %s18, %s25
    %s79 = sor.u32 %s77, %s78
    %p80 = scmp.eq.s32.totalorder %s79, 0
    %s82 = sadd.s32 %s81, 1
    %s83 = scalar_select %p80, %s81, %s82
    %p86 = pneg %p80
    %p87 = scmp.eq.s32.totalorder %s10, 3
    %p88 = por %p86, %p87
    %p89 = scmp.ne.s32.totalorder %s81, %s84
    %p90 = scmp.eq.s32.totalorder %s10, 0
    %p91 = por %p89, %p90
    %p92 = scmp.ne.s32.totalorder %s81, %s84
    %p93 = scmp.eq.s32.totalorder %s15, 3
    %p94 = por %p92, %p93
    %p95 = scmp.ne.s32.totalorder %s84, %s85
    %p96 = scmp.eq.s32.totalorder %s15, 0
    %p97 = por %p95, %p96
    %p98 = scmp.ne.s32.totalorder %s84, %s85
    %p99 = scmp.eq.s32.totalorder %s16, 3
    %p100 = por %p98, %p99
    %p102 = scmp.ne.s32.totalorder %s85, %s101
    %p103 = scmp.eq.s32.totalorder %s16, 0
    %p104 = por %p102, %p103
    %s105 = ssub.s32 %s17, %s29
    %s106 = ssub.s32 %s18, %s25
    %s107 = sor.u32 %s105, %s106
    %p108 = scmp.eq.s32.totalorder %s107, 0
    %s110 = sadd.s32 %s109, 1
    %s111 = scalar_select %p108, %s109, %s110
    %p114 = pneg %p108
    %p115 = scmp.eq.s32.totalorder %s10, 3
    %p116 = por %p114, %p115
    %p117 = scmp.ne.s32.totalorder %s109, %s112
    %p118 = scmp.eq.s32.totalorder %s10, 0
    %p119 = por %p117, %p118
    %p120 = scmp.ne.s32.totalorder %s109, %s112
    %p121 = scmp.eq.s32.totalorder %s15, 3
    %p122 = por %p120, %p121
    %p123 = scmp.ne.s32.totalorder %s112, %s113
    %p124 = scmp.eq.s32.totalorder %s15, 0
    %p125 = por %p123, %p124
    %p126 = scmp.ne.s32.totalorder %s112, %s113
    %p127 = scmp.eq.s32.totalorder %s16, 3
    %p128 = por %p126, %p127
    %p130 = scmp.ne.s32.totalorder %s113, %s129
    %p131 = scmp.eq.s32.totalorder %s16, 0
    %p132 = por %p130, %p131
    %p133 = scmp.le.s32.totalorder 1, %s10
    %p134 = scmp.lt.s32.totalorder %s10, 5
    %p135 = pnand %p133, %p134
    %p136 = pneg %p135
    // Predicated region
    $region9: #{double_conv.6} parent=5 // pred_check
      _
    $region10: #{double_conv.6} parent=5 // pred_check_branch
      %138 = sbr.rel (%p135) target = $region12
    $region11: #{double_conv.6} parent=5 // pred_region
      %s139 = ssub.s32 %s10, 1
      // Predicated region
      $region13: #{double_conv.6} parent=11 // pred_check
        %p140 = pneg %p69
      $region14: #{double_conv.6} parent=11 // pred_check_branch
        %142 = sbr.rel (%p140) target = $region16
      $region15: #{double_conv.6} parent=11 // pred_region
        _
      $region16: #{double_conv.6} parent=11 // pred_fallthru
        _
    $region12: #{double_conv.6} parent=5 // pred_fallthru
      _
    %p143 = scmp.lt.s32.totalorder %s10, 4
    // Predicated region
    $region17: #{double_conv.6} parent=5 // pred_check
      %p144 = pneg %p143
    $region18: #{double_conv.6} parent=5 // pred_check_branch
      %146 = sbr.rel (%p144) target = $region20
    $region19: #{double_conv.6} parent=5 // pred_region
      // Predicated region
      $region21: #{double_conv.6} parent=19 // pred_check
        %p147 = pneg %p42
      $region22: #{double_conv.6} parent=19 // pred_check_branch
        %149 = sbr.rel (%p147) target = $region24
      $region23: #{double_conv.6} parent=19 // pred_region
        %p150 = scmp.lt.s32.totalorder %s17, 1
        %s151 = scalar_select %p150, %s17, 1
        %s152 = smul.addr %s151, 54
        %s153 = smul.addr %s152, 4
        %s154 = scalar_lea.vmem %s0, %s153
      $region24: #{double_conv.6} parent=19 // pred_fallthru
        _
    $region20: #{double_conv.6} parent=5 // pred_fallthru
      _
    %p155 = scmp.le.s32.totalorder 1, %s10
    %p156 = scmp.lt.s32.totalorder %s10, 5
    %p157 = pnand %p155, %p156
    %p158 = pneg %p157
    // Predicated region
    $region25: #{double_conv.6} parent=5 // pred_check
      _
    $region26: #{double_conv.6} parent=5 // pred_check_branch
      %160 = sbr.rel (%p157) target = $region28
    $region27: #{double_conv.6} parent=5 // pred_region
      %s161 = ssub.s32 %s10, 1
      %p162 = scmp.lt.s32.totalorder %s19, 1
      %s163 = scalar_select %p162, %s19, 1
      %s164 = smul.addr %s163, 54
      %s165 = smul.addr %s164, 4
      %s166 = scalar_lea.vmem %s0, %s165
      %p167 = pneg %p48
      %p168 = pneg %p45
      %p169 = pneg %p69
      %p170 = pneg %p66
      %p171 = pneg %p97
      %p172 = pneg %p94
      %s173 = smul.u32 8, %s20
      %p174 = scmp.lt.s32.totalorder %s19, 1
      %s175 = scalar_select %p174, %s19, 1
      %p176 = scmp.lt.s32.totalorder %s173, 15
      %s177 = scalar_select %p176, %s173, 15
      %s178 = smul.addr %s177, 2
      %s179 = smul.addr %s175, 32
      %s180 = sadd.s32 %s178, %s179
      %s181 = smul.addr %s180, 8
      %s182 = scalar_lea.vmem %s2, %s181
      %p183 = pneg %p125
      %p184 = pneg %p122
      %p185 = scmp.lt.s32.totalorder %s19, 1
      %s186 = scalar_select %p185, %s19, 1
      %p187 = scmp.lt.s32.totalorder %s20, 1
      %s188 = scalar_select %p187, %s20, 1
      %s189 = smul.addr %s186, 2
      %s190 = sadd.s32 %s188, %s189
      %s191 = smul.addr %s190, 2
      %s192 = scalar_lea.vmem %s3, %s191
      %p193 = scmp.lt.s32.totalorder %s19, 1
      %s194 = scalar_select %p193, %s19, 1
      %s195 = smul.addr %s194, 54
      %s196 = smul.addr %s195, 4
      %s197 = scalar_lea.vmem %s0, %s196
      %s198 = smul.u32 8, %s20
      %p199 = scmp.lt.s32.totalorder %s19, 1
      %s200 = scalar_select %p199, %s19, 1
      %p201 = scmp.lt.s32.totalorder %s198, 15
      %s202 = scalar_select %p201, %s198, 15
      %s203 = smul.addr %s202, 2
      %s204 = smul.addr %s200, 32
      %s205 = sadd.s32 %s203, %s204
      %s206 = smul.addr %s205, 8
      %s207 = scalar_lea.vmem %s2, %s206
      %s208 = smul.u32 8, %s20
      %p209 = scmp.lt.s32.totalorder %s19, 1
      %s210 = scalar_select %p209, %s19, 1
      %p211 = scmp.lt.s32.totalorder %s20, 1
      %s212 = scalar_select %p211, %s20, 1
      %s213 = smul.addr %s210, 2
      %s214 = sadd.s32 %s212, %s213
      %s215 = smul.addr %s214, 2
      %s216 = scalar_lea.vmem %s3, %s215
      %s218 = smul.u32 %s20, 8
      %s219 = smul.u32 %s218, 3
      %s220 = smul.addr %s219, 4
      %s221 = scalar_lea.vmem %s197, %s220
      %v222 = vld [vmem:[%s221] sm:$0xf]
      %v223 = vld [vmem:[%s221 + $0x4] sm:$0xf]
      %v224 = vld [vmem:[%s221 + $0x8] sm:$0x1]
      %v225 = vld [vmem:[%s221 + $0xc] sm:$0xf]
      %v226 = vld [vmem:[%s221 + $0x10] sm:$0xf]
      %v227 = vld [vmem:[%s221 + $0x14] sm:$0x1]
      %v228 = vld [vmem:[%s221 + $0x18] sm:$0xf]
      %v229 = vld [vmem:[%s221 + $0x1c] sm:$0xf]
      %v230 = vld [vmem:[%s221 + $0x20] sm:$0x1]
      %v231 = vld [vmem:[%s221 + $0x24] sm:$0xf]
      %v232 = vld [vmem:[%s221 + $0x28] sm:$0xf]
      %v233 = vld [vmem:[%s221 + $0x2c] sm:$0x1]
      %v234 = vld [vmem:[%s221 + $0x30] sm:$0xf]
      %v235 = vld [vmem:[%s221 + $0x34] sm:$0xf]
      %v236 = vld [vmem:[%s221 + $0x38] sm:$0x1]
      %v237 = vld [vmem:[%s221 + $0x3c] sm:$0xf]
      %v238 = vld [vmem:[%s221 + $0x40] sm:$0xf]
      %v239 = vld [vmem:[%s221 + $0x44] sm:$0x1]
      %v240 = vld [vmem:[%s221 + $0x48] sm:$0xf]
      %v241 = vld [vmem:[%s221 + $0x4c] sm:$0xf]
      %v242 = vld [vmem:[%s221 + $0x50] sm:$0x1]
      %v243 = vld [vmem:[%s221 + $0x54] sm:$0xf]
      %v244 = vld [vmem:[%s221 + $0x58] sm:$0xf]
      %v245 = vld [vmem:[%s221 + $0x5c] sm:$0x1]
      %v246 = vld [vmem:[%s221 + $0x60] sm:$0xf]
      %v247 = vld [vmem:[%s221 + $0x64] sm:$0xf]
      %v248 = vld [vmem:[%s221 + $0x68] sm:$0x1]
      %v249 = vld [vmem:[%s221 + $0x6c] sm:$0xf]
      %v250 = vld [vmem:[%s221 + $0x70] sm:$0xf]
      %v251 = vld [vmem:[%s221 + $0x74] sm:$0x1]
      %v252 = vld [vmem:[%s1] sm:$0xf]
      %v253 = vld [vmem:[%s1 + $0x4] sm:$0xf]
      %v254 = vld [vmem:[%s1 + $0x8] sm:$0xf]
      %v255 = vld [vmem:[%s1 + $0xc] sm:$0xf]
      %v256 = vld [vmem:[%s1 + $0x10] sm:$0xf]
      %v257 = vld [vmem:[%s1 + $0x14] sm:$0xf]
      %v258 = vld [vmem:[%s1 + $0x18] sm:$0xf]
      %v259 = vld [vmem:[%s1 + $0x1c] sm:$0xf]
      %v260 = vld [vmem:[%s1 + $0x20] sm:$0xf]
      %v261 = vld [vmem:[%s1 + $0x24] sm:$0xf]
      %v262 = vld [vmem:[%s1 + $0x28] sm:$0xf]
      %v263 = vld [vmem:[%s1 + $0x2c] sm:$0xf]
      %v264 = vld [vmem:[%s1 + $0x30] sm:$0xf]
      %v265 = vld [vmem:[%s1 + $0x34] sm:$0xf]
      %v266 = vld [vmem:[%s1 + $0x38] sm:$0xf]
      %v267 = vld [vmem:[%s1 + $0x3c] sm:$0xf]
      %vm268 = vsmask.f32 3328
      %vm269 = vsmask.f32 7440
      %vm270 = vmor %vm268, %vm269
      %v272 = vshrl.u32 %v222, 16
      %v274 = vrot.slane %v272, 4
      %v275 = vshll.u32 %v222, 16
      %v277 = vrot.slane %v275, 5
      %v278 = vor.u32 %v274, %v277
      %v279 = vrot.slane %v278, 4
      %v281 = vshll.u32 %v223, 16
      %v283 = vrot.slane %v281, 5
      %v284 = vsel %vm270, %v279, %v283
      %v285 = vshrl.u32 %v223, 16
      %v287 = vrot.slane %v285, 4
      %v288 = vor.u32 %v287, %v283
      %v289 = vrot.slane %v288, 4
      %v291 = vshll.u32 %v224, 16
      %v293 = vrot.slane %v291, 5
      %v294 = vsel %vm270, %v289, %v293
      %v296 = vshrl.u32 %v225, 16
      %v298 = vrot.slane %v296, 4
      %v299 = vshll.u32 %v225, 16
      %v301 = vrot.slane %v299, 5
      %v302 = vor.u32 %v298, %v301
      %v303 = vrot.slane %v302, 4
      %v305 = vshll.u32 %v226, 16
      %v307 = vrot.slane %v305, 5
      %v308 = vsel %vm270, %v303, %v307
      %v309 = vshrl.u32 %v226, 16
      %v311 = vrot.slane %v309, 4
      %v312 = vor.u32 %v311, %v307
      %v313 = vrot.slane %v312, 4
      %v315 = vshll.u32 %v227, 16
      %v317 = vrot.slane %v315, 5
      %v318 = vsel %vm270, %v313, %v317
      %v320 = vshrl.u32 %v228, 16
      %v322 = vrot.slane %v320, 4
      %v323 = vshll.u32 %v228, 16
      %v325 = vrot.slane %v323, 5
      %v326 = vor.u32 %v322, %v325
      %v327 = vrot.slane %v326, 4
      %v329 = vshll.u32 %v229, 16
      %v331 = vrot.slane %v329, 5
      %v332 = vsel %vm270, %v327, %v331
      %v333 = vshrl.u32 %v229, 16
      %v335 = vrot.slane %v333, 4
      %v336 = vor.u32 %v335, %v331
      %v337 = vrot.slane %v336, 4
      %v339 = vshll.u32 %v230, 16
      %v341 = vrot.slane %v339, 5
      %v342 = vsel %vm270, %v337, %v341
      %v344 = vshrl.u32 %v231, 16
      %v346 = vrot.slane %v344, 4
      %v347 = vshll.u32 %v231, 16
      %v349 = vrot.slane %v347, 5
      %v350 = vor.u32 %v346, %v349
      %v351 = vrot.slane %v350, 4
      %v353 = vshll.u32 %v232, 16
      %v355 = vrot.slane %v353, 5
      %v356 = vsel %vm270, %v351, %v355
      %v357 = vshrl.u32 %v232, 16
      %v359 = vrot.slane %v357, 4
      %v360 = vor.u32 %v359, %v355
      %v361 = vrot.slane %v360, 4
      %v363 = vshll.u32 %v233, 16
      %v365 = vrot.slane %v363, 5
      %v366 = vsel %vm270, %v361, %v365
      %v368 = vshrl.u32 %v234, 16
      %v370 = vrot.slane %v368, 4
      %v371 = vshll.u32 %v234, 16
      %v373 = vrot.slane %v371, 5
      %v374 = vor.u32 %v370, %v373
      %v375 = vrot.slane %v374, 4
      %v377 = vshll.u32 %v235, 16
      %v379 = vrot.slane %v377, 5
      %v380 = vsel %vm270, %v375, %v379
      %v381 = vshrl.u32 %v235, 16
      %v383 = vrot.slane %v381, 4
      %v384 = vor.u32 %v383, %v379
      %v385 = vrot.slane %v384, 4
      %v387 = vshll.u32 %v236, 16
      %v389 = vrot.slane %v387, 5
      %v390 = vsel %vm270, %v385, %v389
      %v392 = vshrl.u32 %v237, 16
      %v394 = vrot.slane %v392, 4
      %v395 = vshll.u32 %v237, 16
      %v397 = vrot.slane %v395, 5
      %v398 = vor.u32 %v394, %v397
      %v399 = vrot.slane %v398, 4
      %v401 = vshll.u32 %v238, 16
      %v403 = vrot.slane %v401, 5
      %v404 = vsel %vm270, %v399, %v403
      %v405 = vshrl.u32 %v238, 16
      %v407 = vrot.slane %v405, 4
      %v408 = vor.u32 %v407, %v403
      %v409 = vrot.slane %v408, 4
      %v411 = vshll.u32 %v239, 16
      %v413 = vrot.slane %v411, 5
      %v414 = vsel %vm270, %v409, %v413
      %v416 = vshrl.u32 %v240, 16
      %v418 = vrot.slane %v416, 4
      %v419 = vshll.u32 %v240, 16
      %v421 = vrot.slane %v419, 5
      %v422 = vor.u32 %v418, %v421
      %v423 = vrot.slane %v422, 4
      %v425 = vshll.u32 %v241, 16
      %v427 = vrot.slane %v425, 5
      %v428 = vsel %vm270, %v423, %v427
      %v429 = vshrl.u32 %v241, 16
      %v431 = vrot.slane %v429, 4
      %v432 = vor.u32 %v431, %v427
      %v433 = vrot.slane %v432, 4
      %v435 = vshll.u32 %v242, 16
      %v437 = vrot.slane %v435, 5
      %v438 = vsel %vm270, %v433, %v437
      %v440 = vshrl.u32 %v243, 16
      %v442 = vrot.slane %v440, 4
      %v443 = vshll.u32 %v243, 16
      %v445 = vrot.slane %v443, 5
      %v446 = vor.u32 %v442, %v445
      %v447 = vrot.slane %v446, 4
      %v449 = vshll.u32 %v244, 16
      %v451 = vrot.slane %v449, 5
      %v452 = vsel %vm270, %v447, %v451
      %v453 = vshrl.u32 %v244, 16
      %v455 = vrot.slane %v453, 4
      %v456 = vor.u32 %v455, %v451
      %v457 = vrot.slane %v456, 4
      %v459 = vshll.u32 %v245, 16
      %v461 = vrot.slane %v459, 5
      %v462 = vsel %vm270, %v457, %v461
      %s463 = scalar_lea.vmem %s1, 64
      %v464 = vld [vmem:[%s463] sm:$0xf]
      %v465 = vld [vmem:[%s463 + $0x4] sm:$0xf]
      %v466 = vld [vmem:[%s463 + $0x8] sm:$0xf]
      %v467 = vld [vmem:[%s463 + $0xc] sm:$0xf]
      %v468 = vld [vmem:[%s463 + $0x10] sm:$0xf]
      %v469 = vld [vmem:[%s463 + $0x14] sm:$0xf]
      %v470 = vld [vmem:[%s463 + $0x18] sm:$0xf]
      %v471 = vld [vmem:[%s463 + $0x1c] sm:$0xf]
      %v472 = vld [vmem:[%s463 + $0x20] sm:$0xf]
      %v473 = vld [vmem:[%s463 + $0x24] sm:$0xf]
      %v474 = vld [vmem:[%s463 + $0x28] sm:$0xf]
      %v475 = vld [vmem:[%s463 + $0x2c] sm:$0xf]
      %v476 = vld [vmem:[%s463 + $0x30] sm:$0xf]
      %v477 = vld [vmem:[%s463 + $0x34] sm:$0xf]
      %v478 = vld [vmem:[%s463 + $0x38] sm:$0xf]
      %v479 = vld [vmem:[%s463 + $0x3c] sm:$0xf]
      %v480 = vunpack.c.l.b16 %v284
      %v481 = vunpack.c.l.b16 %v294
      %v482 = vunpack.c.l.b16 %v308
      %v483 = vunpack.c.l.b16 %v318
      %v484 = vunpack.c.l.b16 %v332
      %v485 = vunpack.c.l.b16 %v342
      %v486 = vunpack.c.l.b16 %v356
      %v487 = vunpack.c.l.b16 %v366
      %v488 = vunpack.c.l.b16 %v380
      %v489 = vunpack.c.l.b16 %v390
      %v490 = vunpack.c.l.b16 %v404
      %v491 = vunpack.c.l.b16 %v414
      %v492 = vunpack.c.l.b16 %v428
      %v493 = vunpack.c.l.b16 %v438
      %v494 = vunpack.c.l.b16 %v452
      %v495 = vunpack.c.l.b16 %v462
      %v496 = vpack.c.b16 %v481, %v480
      %v497 = vpack.c.b16 %v483, %v482
      %v498 = vpack.c.b16 %v485, %v484
      %v499 = vpack.c.b16 %v487, %v486
      %v500 = vpack.c.b16 %v489, %v488
      %v501 = vpack.c.b16 %v491, %v490
      %v502 = vpack.c.b16 %v493, %v492
      %v503 = vpack.c.b16 %v495, %v494
      %v528 = vunpack.c.l.b16 %v464
      %v529 = vunpack.c.l.b16 %v465
      %v530 = vunpack.c.l.b16 %v466
      %v531 = vunpack.c.l.b16 %v467
      %v532 = vunpack.c.l.b16 %v468
      %v533 = vunpack.c.l.b16 %v469
      %v534 = vunpack.c.l.b16 %v470
      %v535 = vunpack.c.l.b16 %v471
      %v536 = vunpack.c.l.b16 %v472
      %v537 = vunpack.c.l.b16 %v473
      %v538 = vunpack.c.l.b16 %v474
      %v539 = vunpack.c.l.b16 %v475
      %v540 = vunpack.c.l.b16 %v476
      %v541 = vunpack.c.l.b16 %v477
      %v542 = vunpack.c.l.b16 %v478
      %v543 = vunpack.c.l.b16 %v479
      %v544 = vpack.c.b16 %v529, %v528
      %v545 = vpack.c.b16 %v531, %v530
      %v546 = vpack.c.b16 %v533, %v532
      %v547 = vpack.c.b16 %v535, %v534
      %v548 = vpack.c.b16 %v537, %v536
      %v549 = vpack.c.b16 %v539, %v538
      %v550 = vpack.c.b16 %v541, %v540
      %v551 = vpack.c.b16 %v543, %v542
      %560 = vmatprep.subr.bf16.mxu0 0
      %561 = vmatpush1.bf16.msra.mxu0 %v551
      %562 = vmatprep.subr.bf16.mxu0 0
      %563 = vmatpush1.bf16.msra.mxu0 %v550
      %564 = vmatprep.subr.bf16.mxu0 0
      %565 = vmatpush1.bf16.msra.mxu0 %v549
      %566 = vmatprep.subr.bf16.mxu0 0
      %567 = vmatpush1.bf16.msra.mxu0 %v548
      %568 = vmatprep.subr.bf16.mxu0 0
      %569 = vmatpush1.bf16.msra.mxu0 %v547
      %570 = vmatprep.subr.bf16.mxu0 0
      %571 = vmatpush1.bf16.msra.mxu0 %v546
      %572 = vmatprep.subr.bf16.mxu0 0
      %573 = vmatpush1.bf16.msra.mxu0 %v545
      %574 = vmatprep.subr.bf16.mxu0 0
      %575 = vmatpush1.bf16.msra.mxu0 %v544
      %576 = vmatprep.subr.bf16.mxu0 0
      %577 = vmatpush2.bf16.msra.mxu0 0
      %578 = vmatprep.subr.bf16.mxu0 0
      %579 = vmatpush2.bf16.msra.mxu0 0
      %580 = vmatprep.subr.bf16.mxu0 0
      %581 = vmatpush2.bf16.msra.mxu0 0
      %582 = vmatprep.subr.bf16.mxu0 0
      %583 = vmatpush2.bf16.msra.mxu0 0
      %584 = vmatprep.subr.bf16.mxu0 0
      %585 = vmatpush2.bf16.msra.mxu0 0
      %586 = vmatprep.subr.bf16.mxu0 0
      %587 = vmatpush2.bf16.msra.mxu0 0
      %588 = vmatprep.subr.bf16.mxu0 0
      %589 = vmatpush2.bf16.msra.mxu0 0
      %590 = vmatprep.subr.bf16.mxu0 0
      %591 = vmatpush2.bf16.msra.mxu0 0
      %592 = vmatprep.mubr.bf16.mxu0 0
      %593 = vmatmul.mubr.bf16.gmra.mxu0 %v496
      %v594 = vpop.f32.mrf.mxu0
      %v595 = vadd.f32 0.0, %v594
      %v596 = vpop.f32.mrf.mxu0
      %v597 = vpop.f32.mrf.mxu0
      %v598 = vadd.f32 0.0, %v597
      %v599 = vpop.f32.mrf.mxu0
      %600 = vmatprep.mubr.bf16.mxu0 0
      %601 = vmatmul.mubr.bf16.gmra.mxu0 %v497
      %v602 = vpop.f32.mrf.mxu0
      %v603 = vadd.f32 0.0, %v602
      %v604 = vpop.f32.mrf.mxu0
      %v605 = vpop.f32.mrf.mxu0
      %v606 = vadd.f32 0.0, %v605
      %v607 = vpop.f32.mrf.mxu0
      %608 = vmatprep.mubr.bf16.mxu0 0
      %609 = vmatmul.mubr.bf16.gmra.mxu0 %v498
      %v610 = vpop.f32.mrf.mxu0
      %v611 = vadd.f32 0.0, %v610
      %v612 = vpop.f32.mrf.mxu0
      %v613 = vpop.f32.mrf.mxu0
      %v614 = vadd.f32 0.0, %v613
      %v615 = vpop.f32.mrf.mxu0
      %616 = vmatprep.mubr.bf16.mxu0 0
      %617 = vmatmul.mubr.bf16.gmra.mxu0 %v499
      %v618 = vpop.f32.mrf.mxu0
      %v619 = vadd.f32 0.0, %v618
      %v620 = vpop.f32.mrf.mxu0
      %v621 = vpop.f32.mrf.mxu0
      %v622 = vadd.f32 0.0, %v621
      %v623 = vpop.f32.mrf.mxu0
      %624 = vmatprep.mubr.bf16.mxu0 0
      %625 = vmatmul.mubr.bf16.gmra.mxu0 %v500
      %v626 = vpop.f32.mrf.mxu0
      %v627 = vadd.f32 0.0, %v626
      %v628 = vpop.f32.mrf.mxu0
      %v629 = vpop.f32.mrf.mxu0
      %v630 = vadd.f32 0.0, %v629
      %v631 = vpop.f32.mrf.mxu0
      %632 = vmatprep.mubr.bf16.mxu0 0
      %633 = vmatmul.mubr.bf16.gmra.mxu0 %v501
      %v634 = vpop.f32.mrf.mxu0
      %v635 = vadd.f32 0.0, %v634
      %v636 = vpop.f32.mrf.mxu0
      %v637 = vpop.f32.mrf.mxu0
      %v638 = vadd.f32 0.0, %v637
      %v639 = vpop.f32.mrf.mxu0
      %640 = vmatprep.mubr.bf16.mxu0 0
      %641 = vmatmul.mubr.bf16.gmra.mxu0 %v502
      %v642 = vpop.f32.mrf.mxu0
      %v643 = vadd.f32 0.0, %v642
      %v644 = vpop.f32.mrf.mxu0
      %v645 = vpop.f32.mrf.mxu0
      %v646 = vadd.f32 0.0, %v645
      %v647 = vpop.f32.mrf.mxu0
      %648 = vmatprep.mubr.bf16.mxu0 0
      %649 = vmatmul.mubr.bf16.gmra.mxu0 %v503
      %v650 = vpop.f32.mrf.mxu0
      %v651 = vadd.f32 0.0, %v650
      %v652 = vpop.f32.mrf.mxu0
      %v653 = vpop.f32.mrf.mxu0
      %v654 = vadd.f32 0.0, %v653
      %v655 = vpop.f32.mrf.mxu0
      %656 = vdwg.mxu0
      %v673 = vunpack.c.l.b16 %v222
      %v674 = vunpack.c.l.b16 %v223
      %v675 = vunpack.c.l.b16 %v225
      %v676 = vunpack.c.l.b16 %v226
      %v677 = vunpack.c.l.b16 %v228
      %v678 = vunpack.c.l.b16 %v229
      %v679 = vunpack.c.l.b16 %v231
      %v680 = vunpack.c.l.b16 %v232
      %v681 = vunpack.c.l.b16 %v234
      %v682 = vunpack.c.l.b16 %v235
      %v683 = vunpack.c.l.b16 %v237
      %v684 = vunpack.c.l.b16 %v238
      %v685 = vunpack.c.l.b16 %v240
      %v686 = vunpack.c.l.b16 %v241
      %v687 = vunpack.c.l.b16 %v243
      %v688 = vunpack.c.l.b16 %v244
      %v689 = vpack.c.b16 %v674, %v673
      %v690 = vpack.c.b16 %v676, %v675
      %v691 = vpack.c.b16 %v678, %v677
      %v692 = vpack.c.b16 %v680, %v679
      %v693 = vpack.c.b16 %v682, %v681
      %v694 = vpack.c.b16 %v684, %v683
      %v695 = vpack.c.b16 %v686, %v685
      %v696 = vpack.c.b16 %v688, %v687
      %v721 = vunpack.c.l.b16 %v252
      %v722 = vunpack.c.l.b16 %v253
      %v723 = vunpack.c.l.b16 %v254
      %v724 = vunpack.c.l.b16 %v255
      %v725 = vunpack.c.l.b16 %v256
      %v726 = vunpack.c.l.b16 %v257
      %v727 = vunpack.c.l.b16 %v258
      %v728 = vunpack.c.l.b16 %v259
      %v729 = vunpack.c.l.b16 %v260
      %v730 = vunpack.c.l.b16 %v261
      %v731 = vunpack.c.l.b16 %v262
      %v732 = vunpack.c.l.b16 %v263
      %v733 = vunpack.c.l.b16 %v264
      %v734 = vunpack.c.l.b16 %v265
      %v735 = vunpack.c.l.b16 %v266
      %v736 = vunpack.c.l.b16 %v267
      %v737 = vpack.c.b16 %v722, %v721
      %v738 = vpack.c.b16 %v724, %v723
      %v739 = vpack.c.b16 %v726, %v725
      %v740 = vpack.c.b16 %v728, %v727
      %v741 = vpack.c.b16 %v730, %v729
      %v742 = vpack.c.b16 %v732, %v731
      %v743 = vpack.c.b16 %v734, %v733
      %v744 = vpack.c.b16 %v736, %v735
      %753 = vmatprep.subr.bf16.mxu0 0
      %754 = vmatpush1.bf16.msra.mxu0 %v744
      %755 = vmatprep.subr.bf16.mxu0 0
      %756 = vmatpush1.bf16.msra.mxu0 %v743
      %757 = vmatprep.subr.bf16.mxu0 0
      %758 = vmatpush1.bf16.msra.mxu0 %v742
      %759 = vmatprep.subr.bf16.mxu0 0
      %760 = vmatpush1.bf16.msra.mxu0 %v741
      %761 = vmatprep.subr.bf16.mxu0 0
      %762 = vmatpush1.bf16.msra.mxu0 %v740
      %763 = vmatprep.subr.bf16.mxu0 0
      %764 = vmatpush1.bf16.msra.mxu0 %v739
      %765 = vmatprep.subr.bf16.mxu0 0
      %766 = vmatpush1.bf16.msra.mxu0 %v738
      %767 = vmatprep.subr.bf16.mxu0 0
      %768 = vmatpush1.bf16.msra.mxu0 %v737
      %769 = vmatprep.subr.bf16.mxu0 0
      %770 = vmatpush2.bf16.msra.mxu0 0
      %771 = vmatprep.subr.bf16.mxu0 0
      %772 = vmatpush2.bf16.msra.mxu0 0
      %773 = vmatprep.subr.bf16.mxu0 0
      %774 = vmatpush2.bf16.msra.mxu0 0
      %775 = vmatprep.subr.bf16.mxu0 0
      %776 = vmatpush2.bf16.msra.mxu0 0
      %777 = vmatprep.subr.bf16.mxu0 0
      %778 = vmatpush2.bf16.msra.mxu0 0
      %779 = vmatprep.subr.bf16.mxu0 0
      %780 = vmatpush2.bf16.msra.mxu0 0
      %781 = vmatprep.subr.bf16.mxu0 0
      %782 = vmatpush2.bf16.msra.mxu0 0
      %783 = vmatprep.subr.bf16.mxu0 0
      %784 = vmatpush2.bf16.msra.mxu0 0
      %785 = vmatprep.mubr.bf16.mxu0 0
      %786 = vmatmul.mubr.bf16.gmra.mxu0 %v689
      %v787 = vpop.f32.mrf.mxu0
      %v788 = vadd.f32 %v595, %v787
      %v789 = vpop.f32.mrf.mxu0
      %v790 = vpop.f32.mrf.mxu0
      %v791 = vadd.f32 %v598, %v790
      %v792 = vpop.f32.mrf.mxu0
      %793 = vmatprep.mubr.bf16.mxu0 0
      %794 = vmatmul.mubr.bf16.gmra.mxu0 %v690
      %v795 = vpop.f32.mrf.mxu0
      %v796 = vadd.f32 %v603, %v795
      %v797 = vpop.f32.mrf.mxu0
      %v798 = vpop.f32.mrf.mxu0
      %v799 = vadd.f32 %v606, %v798
      %v800 = vpop.f32.mrf.mxu0
      %801 = vmatprep.mubr.bf16.mxu0 0
      %802 = vmatmul.mubr.bf16.gmra.mxu0 %v691
      %v803 = vpop.f32.mrf.mxu0
      %v804 = vadd.f32 %v611, %v803
      %v805 = vpop.f32.mrf.mxu0
      %v806 = vpop.f32.mrf.mxu0
      %v807 = vadd.f32 %v614, %v806
      %v808 = vpop.f32.mrf.mxu0
      %809 = vmatprep.mubr.bf16.mxu0 0
      %810 = vmatmul.mubr.bf16.gmra.mxu0 %v692
      %v811 = vpop.f32.mrf.mxu0
      %v812 = vadd.f32 %v619, %v811
      %v813 = vpop.f32.mrf.mxu0
      %v814 = vpop.f32.mrf.mxu0
      %v815 = vadd.f32 %v622, %v814
      %v816 = vpop.f32.mrf.mxu0
      %817 = vmatprep.mubr.bf16.mxu0 0
      %818 = vmatmul.mubr.bf16.gmra.mxu0 %v693
      %v819 = vpop.f32.mrf.mxu0
      %v820 = vadd.f32 %v627, %v819
      %v821 = vpop.f32.mrf.mxu0
      %v822 = vpop.f32.mrf.mxu0
      %v823 = vadd.f32 %v630, %v822
      %v824 = vpop.f32.mrf.mxu0
      %825 = vmatprep.mubr.bf16.mxu0 0
      %826 = vmatmul.mubr.bf16.gmra.mxu0 %v694
      %v827 = vpop.f32.mrf.mxu0
      %v828 = vadd.f32 %v635, %v827
      %v829 = vpop.f32.mrf.mxu0
      %v830 = vpop.f32.mrf.mxu0
      %v831 = vadd.f32 %v638, %v830
      %v832 = vpop.f32.mrf.mxu0
      %833 = vmatprep.mubr.bf16.mxu0 0
      %834 = vmatmul.mubr.bf16.gmra.mxu0 %v695
      %v835 = vpop.f32.mrf.mxu0
      %v836 = vadd.f32 %v643, %v835
      %v837 = vpop.f32.mrf.mxu0
      %v838 = vpop.f32.mrf.mxu0
      %v839 = vadd.f32 %v646, %v838
      %v840 = vpop.f32.mrf.mxu0
      %841 = vmatprep.mubr.bf16.mxu0 0
      %842 = vmatmul.mubr.bf16.gmra.mxu0 %v696
      %v843 = vpop.f32.mrf.mxu0
      %v844 = vadd.f32 %v651, %v843
      %v845 = vpop.f32.mrf.mxu0
      %v846 = vpop.f32.mrf.mxu0
      %v847 = vadd.f32 %v654, %v846
      %v848 = vpop.f32.mrf.mxu0
      %849 = vdwg.mxu0
      %vm858 = vcmask 1042432
      %vm859 = vcmask 1046532
      %vm860 = vmor %vm858, %vm859
      %v861 = vrot.slane %v222, 5
      %v862 = vrot.slane %v861, 4
      %v863 = vrot.slane %v223, 5
      %v864 = vsel %vm860, %v862, %v863
      %v865 = vrot.slane %v863, 4
      %v866 = vrot.slane %v224, 5
      %v867 = vsel %vm860, %v865, %v866
      %v868 = vrot.slane %v225, 5
      %v869 = vrot.slane %v868, 4
      %v870 = vrot.slane %v226, 5
      %v871 = vsel %vm860, %v869, %v870
      %v872 = vrot.slane %v870, 4
      %v873 = vrot.slane %v227, 5
      %v874 = vsel %vm860, %v872, %v873
      %v875 = vrot.slane %v228, 5
      %v876 = vrot.slane %v875, 4
      %v877 = vrot.slane %v229, 5
      %v878 = vsel %vm860, %v876, %v877
      %v879 = vrot.slane %v877, 4
      %v880 = vrot.slane %v230, 5
      %v881 = vsel %vm860, %v879, %v880
      %v882 = vrot.slane %v231, 5
      %v883 = vrot.slane %v882, 4
      %v884 = vrot.slane %v232, 5
      %v885 = vsel %vm860, %v883, %v884
      %v886 = vrot.slane %v884, 4
      %v887 = vrot.slane %v233, 5
      %v888 = vsel %vm860, %v886, %v887
      %v889 = vrot.slane %v234, 5
      %v890 = vrot.slane %v889, 4
      %v891 = vrot.slane %v235, 5
      %v892 = vsel %vm860, %v890, %v891
      %v893 = vrot.slane %v891, 4
      %v894 = vrot.slane %v236, 5
      %v895 = vsel %vm860, %v893, %v894
      %v896 = vrot.slane %v237, 5
      %v897 = vrot.slane %v896, 4
      %v898 = vrot.slane %v238, 5
      %v899 = vsel %vm860, %v897, %v898
      %v900 = vrot.slane %v898, 4
      %v901 = vrot.slane %v239, 5
      %v902 = vsel %vm860, %v900, %v901
      %v903 = vrot.slane %v240, 5
      %v904 = vrot.slane %v903, 4
      %v905 = vrot.slane %v241, 5
      %v906 = vsel %vm860, %v904, %v905
      %v907 = vrot.slane %v905, 4
      %v908 = vrot.slane %v242, 5
      %v909 = vsel %vm860, %v907, %v908
      %v910 = vrot.slane %v243, 5
      %v911 = vrot.slane %v910, 4
      %v912 = vrot.slane %v244, 5
      %v913 = vsel %vm860, %v911, %v912
      %v914 = vrot.slane %v912, 4
      %v915 = vrot.slane %v245, 5
      %v916 = vsel %vm860, %v914, %v915
      %s917 = scalar_lea.vmem %s1, 128
      %v918 = vld [vmem:[%s917] sm:$0xf]
      %v919 = vld [vmem:[%s917 + $0x4] sm:$0xf]
      %v920 = vld [vmem:[%s917 + $0x8] sm:$0xf]
      %v921 = vld [vmem:[%s917 + $0xc] sm:$0xf]
      %v922 = vld [vmem:[%s917 + $0x10] sm:$0xf]
      %v923 = vld [vmem:[%s917 + $0x14] sm:$0xf]
      %v924 = vld [vmem:[%s917 + $0x18] sm:$0xf]
      %v925 = vld [vmem:[%s917 + $0x1c] sm:$0xf]
      %v926 = vld [vmem:[%s917 + $0x20] sm:$0xf]
      %v927 = vld [vmem:[%s917 + $0x24] sm:$0xf]
      %v928 = vld [vmem:[%s917 + $0x28] sm:$0xf]
      %v929 = vld [vmem:[%s917 + $0x2c] sm:$0xf]
      %v930 = vld [vmem:[%s917 + $0x30] sm:$0xf]
      %v931 = vld [vmem:[%s917 + $0x34] sm:$0xf]
      %v932 = vld [vmem:[%s917 + $0x38] sm:$0xf]
      %v933 = vld [vmem:[%s917 + $0x3c] sm:$0xf]
      %v934 = vunpack.c.l.b16 %v864
      %v935 = vunpack.c.l.b16 %v867
      %v936 = vunpack.c.l.b16 %v871
      %v937 = vunpack.c.l.b16 %v874
      %v938 = vunpack.c.l.b16 %v878
      %v939 = vunpack.c.l.b16 %v881
      %v940 = vunpack.c.l.b16 %v885
      %v941 = vunpack.c.l.b16 %v888
      %v942 = vunpack.c.l.b16 %v892
      %v943 = vunpack.c.l.b16 %v895
      %v944 = vunpack.c.l.b16 %v899
      %v945 = vunpack.c.l.b16 %v902
      %v946 = vunpack.c.l.b16 %v906
      %v947 = vunpack.c.l.b16 %v909
      %v948 = vunpack.c.l.b16 %v913
      %v949 = vunpack.c.l.b16 %v916
      %v950 = vpack.c.b16 %v935, %v934
      %v951 = vpack.c.b16 %v937, %v936
      %v952 = vpack.c.b16 %v939, %v938
      %v953 = vpack.c.b16 %v941, %v940
      %v954 = vpack.c.b16 %v943, %v942
      %v955 = vpack.c.b16 %v945, %v944
      %v956 = vpack.c.b16 %v947, %v946
      %v957 = vpack.c.b16 %v949, %v948
      %v982 = vunpack.c.l.b16 %v918
      %v983 = vunpack.c.l.b16 %v919
      %v984 = vunpack.c.l.b16 %v920
      %v985 = vunpack.c.l.b16 %v921
      %v986 = vunpack.c.l.b16 %v922
      %v987 = vunpack.c.l.b16 %v923
      %v988 = vunpack.c.l.b16 %v924
      %v989 = vunpack.c.l.b16 %v925
      %v990 = vunpack.c.l.b16 %v926
      %v991 = vunpack.c.l.b16 %v927
      %v992 = vunpack.c.l.b16 %v928
      %v993 = vunpack.c.l.b16 %v929
      %v994 = vunpack.c.l.b16 %v930
      %v995 = vunpack.c.l.b16 %v931
      %v996 = vunpack.c.l.b16 %v932
      %v997 = vunpack.c.l.b16 %v933
      %v998 = vpack.c.b16 %v983, %v982
      %v999 = vpack.c.b16 %v985, %v984
      %v1000 = vpack.c.b16 %v987, %v986
      %v1001 = vpack.c.b16 %v989, %v988
      %v1002 = vpack.c.b16 %v991, %v990
      %v1003 = vpack.c.b16 %v993, %v992
      %v1004 = vpack.c.b16 %v995, %v994
      %v1005 = vpack.c.b16 %v997, %v996
      %1014 = vmatprep.subr.bf16.mxu0 0
      %1015 = vmatpush1.bf16.msra.mxu0 %v1005
      %1016 = vmatprep.subr.bf16.mxu0 0
      %1017 = vmatpush1.bf16.msra.mxu0 %v1004
      %1018 = vmatprep.subr.bf16.mxu0 0
      %1019 = vmatpush1.bf16.msra.mxu0 %v1003
      %1020 = vmatprep.subr.bf16.mxu0 0
      %1021 = vmatpush1.bf16.msra.mxu0 %v1002
      %1022 = vmatprep.subr.bf16.mxu0 0
      %1023 = vmatpush1.bf16.msra.mxu0 %v1001
      %1024 = vmatprep.subr.bf16.mxu0 0
      %1025 = vmatpush1.bf16.msra.mxu0 %v1000
      %1026 = vmatprep.subr.bf16.mxu0 0
      %1027 = vmatpush1.bf16.msra.mxu0 %v999
      %1028 = vmatprep.subr.bf16.mxu0 0
      %1029 = vmatpush1.bf16.msra.mxu0 %v998
      %1030 = vmatprep.subr.bf16.mxu0 0
      %1031 = vmatpush2.bf16.msra.mxu0 0
      %1032 = vmatprep.subr.bf16.mxu0 0
      %1033 = vmatpush2.bf16.msra.mxu0 0
      %1034 = vmatprep.subr.bf16.mxu0 0
      %1035 = vmatpush2.bf16.msra.mxu0 0
      %1036 = vmatprep.subr.bf16.mxu0 0
      %1037 = vmatpush2.bf16.msra.mxu0 0
      %1038 = vmatprep.subr.bf16.mxu0 0
      %1039 = vmatpush2.bf16.msra.mxu0 0
      %1040 = vmatprep.subr.bf16.mxu0 0
      %1041 = vmatpush2.bf16.msra.mxu0 0
      %1042 = vmatprep.subr.bf16.mxu0 0
      %1043 = vmatpush2.bf16.msra.mxu0 0
      %1044 = vmatprep.subr.bf16.mxu0 0
      %1045 = vmatpush2.bf16.msra.mxu0 0
      %1046 = vmatprep.mubr.bf16.mxu0 0
      %1047 = vmatmul.mubr.bf16.gmra.mxu0 %v950
      %v1048 = vpop.f32.mrf.mxu0
      %v1049 = vadd.f32 0.0, %v1048
      %v1050 = vpop.f32.mrf.mxu0
      %v1051 = vpop.f32.mrf.mxu0
      %v1052 = vadd.f32 0.0, %v1051
      %v1053 = vpop.f32.mrf.mxu0
      %1054 = vmatprep.mubr.bf16.mxu0 0
      %1055 = vmatmul.mubr.bf16.gmra.mxu0 %v951
      %v1056 = vpop.f32.mrf.mxu0
      %v1057 = vadd.f32 0.0, %v1056
      %v1058 = vpop.f32.mrf.mxu0
      %v1059 = vpop.f32.mrf.mxu0
      %v1060 = vadd.f32 0.0, %v1059
      %v1061 = vpop.f32.mrf.mxu0
      %1062 = vmatprep.mubr.bf16.mxu0 0
      %1063 = vmatmul.mubr.bf16.gmra.mxu0 %v952
      %v1064 = vpop.f32.mrf.mxu0
      %v1065 = vadd.f32 0.0, %v1064
      %v1066 = vpop.f32.mrf.mxu0
      %v1067 = vpop.f32.mrf.mxu0
      %v1068 = vadd.f32 0.0, %v1067
      %v1069 = vpop.f32.mrf.mxu0
      %1070 = vmatprep.mubr.bf16.mxu0 0
      %1071 = vmatmul.mubr.bf16.gmra.mxu0 %v953
      %v1072 = vpop.f32.mrf.mxu0
      %v1073 = vadd.f32 0.0, %v1072
      %v1074 = vpop.f32.mrf.mxu0
      %v1075 = vpop.f32.mrf.mxu0
      %v1076 = vadd.f32 0.0, %v1075
      %v1077 = vpop.f32.mrf.mxu0
      %1078 = vmatprep.mubr.bf16.mxu0 0
      %1079 = vmatmul.mubr.bf16.gmra.mxu0 %v954
      %v1080 = vpop.f32.mrf.mxu0
      %v1081 = vadd.f32 0.0, %v1080
      %v1082 = vpop.f32.mrf.mxu0
      %v1083 = vpop.f32.mrf.mxu0
      %v1084 = vadd.f32 0.0, %v1083
      %v1085 = vpop.f32.mrf.mxu0
      %1086 = vmatprep.mubr.bf16.mxu0 0
      %1087 = vmatmul.mubr.bf16.gmra.mxu0 %v955
      %v1088 = vpop.f32.mrf.mxu0
      %v1089 = vadd.f32 0.0, %v1088
      %v1090 = vpop.f32.mrf.mxu0
      %v1091 = vpop.f32.mrf.mxu0
      %v1092 = vadd.f32 0.0, %v1091
      %v1093 = vpop.f32.mrf.mxu0
      %1094 = vmatprep.mubr.bf16.mxu0 0
      %1095 = vmatmul.mubr.bf16.gmra.mxu0 %v956
      %v1096 = vpop.f32.mrf.mxu0
      %v1097 = vadd.f32 0.0, %v1096
      %v1098 = vpop.f32.mrf.mxu0
      %v1099 = vpop.f32.mrf.mxu0
      %v1100 = vadd.f32 0.0, %v1099
      %v1101 = vpop.f32.mrf.mxu0
      %1102 = vmatprep.mubr.bf16.mxu0 0
      %1103 = vmatmul.mubr.bf16.gmra.mxu0 %v957
      %v1104 = vpop.f32.mrf.mxu0
      %v1105 = vadd.f32 0.0, %v1104
      %v1106 = vpop.f32.mrf.mxu0
      %v1107 = vpop.f32.mrf.mxu0
      %v1108 = vadd.f32 0.0, %v1107
      %v1109 = vpop.f32.mrf.mxu0
      %1110 = vdwg.mxu0
      %v1111 = vadd.f32 %v788, %v1049
      %v1112 = vadd.f32 %v791, %v1052
      %v1113 = vadd.f32 %v796, %v1057
      %v1114 = vadd.f32 %v799, %v1060
      %v1115 = vadd.f32 %v804, %v1065
      %v1116 = vadd.f32 %v807, %v1068
      %v1117 = vadd.f32 %v812, %v1073
      %v1118 = vadd.f32 %v815, %v1076
      %v1119 = vadd.f32 %v820, %v1081
      %v1120 = vadd.f32 %v823, %v1084
      %v1121 = vadd.f32 %v828, %v1089
      %v1122 = vadd.f32 %v831, %v1092
      %v1123 = vadd.f32 %v836, %v1097
      %v1124 = vadd.f32 %v839, %v1100
      %v1125 = vadd.f32 %v844, %v1105
      %v1126 = vadd.f32 %v847, %v1108
      %s1127 = scalar_lea.vmem %s1, 192
      %v1128 = vld [vmem:[%s1127] sm:$0xf]
      %v1129 = vld [vmem:[%s1127 + $0x4] sm:$0xf]
      %v1130 = vld [vmem:[%s1127 + $0x8] sm:$0xf]
      %v1131 = vld [vmem:[%s1127 + $0xc] sm:$0xf]
      %v1132 = vld [vmem:[%s1127 + $0x10] sm:$0xf]
      %v1133 = vld [vmem:[%s1127 + $0x14] sm:$0xf]
      %v1134 = vld [vmem:[%s1127 + $0x18] sm:$0xf]
      %v1135 = vld [vmem:[%s1127 + $0x1c] sm:$0xf]
      %v1136 = vld [vmem:[%s1127 + $0x20] sm:$0xf]
      %v1137 = vld [vmem:[%s1127 + $0x24] sm:$0xf]
      %v1138 = vld [vmem:[%s1127 + $0x28] sm:$0xf]
      %v1139 = vld [vmem:[%s1127 + $0x2c] sm:$0xf]
      %v1140 = vld [vmem:[%s1127 + $0x30] sm:$0xf]
      %v1141 = vld [vmem:[%s1127 + $0x34] sm:$0xf]
      %v1142 = vld [vmem:[%s1127 + $0x38] sm:$0xf]
      %v1143 = vld [vmem:[%s1127 + $0x3c] sm:$0xf]
      %v1146 = vunpack.c.l.b16 %v246
      %v1147 = vunpack.c.l.b16 %v247
      %v1148 = vpack.c.b16 %v1147, %v1146
      %v1166 = vunpack.c.l.b16 %v1128
      %v1167 = vunpack.c.l.b16 %v1129
      %v1168 = vunpack.c.l.b16 %v1130
      %v1169 = vunpack.c.l.b16 %v1131
      %v1170 = vunpack.c.l.b16 %v1132
      %v1171 = vunpack.c.l.b16 %v1133
      %v1172 = vunpack.c.l.b16 %v1134
      %v1173 = vunpack.c.l.b16 %v1135
      %v1174 = vunpack.c.l.b16 %v1136
      %v1175 = vunpack.c.l.b16 %v1137
      %v1176 = vunpack.c.l.b16 %v1138
      %v1177 = vunpack.c.l.b16 %v1139
      %v1178 = vunpack.c.l.b16 %v1140
      %v1179 = vunpack.c.l.b16 %v1141
      %v1180 = vunpack.c.l.b16 %v1142
      %v1181 = vunpack.c.l.b16 %v1143
      %v1182 = vpack.c.b16 %v1167, %v1166
      %v1183 = vpack.c.b16 %v1169, %v1168
      %v1184 = vpack.c.b16 %v1171, %v1170
      %v1185 = vpack.c.b16 %v1173, %v1172
      %v1186 = vpack.c.b16 %v1175, %v1174
      %v1187 = vpack.c.b16 %v1177, %v1176
      %v1188 = vpack.c.b16 %v1179, %v1178
      %v1189 = vpack.c.b16 %v1181, %v1180
      %1198 = vmatprep.subr.bf16.mxu0 0
      %1199 = vmatpush1.bf16.msra.mxu0 %v1189
      %1200 = vmatprep.subr.bf16.mxu0 0
      %1201 = vmatpush1.bf16.msra.mxu0 %v1188
      %1202 = vmatprep.subr.bf16.mxu0 0
      %1203 = vmatpush1.bf16.msra.mxu0 %v1187
      %1204 = vmatprep.subr.bf16.mxu0 0
      %1205 = vmatpush1.bf16.msra.mxu0 %v1186
      %1206 = vmatprep.subr.bf16.mxu0 0
      %1207 = vmatpush1.bf16.msra.mxu0 %v1185
      %1208 = vmatprep.subr.bf16.mxu0 0
      %1209 = vmatpush1.bf16.msra.mxu0 %v1184
      %1210 = vmatprep.subr.bf16.mxu0 0
      %1211 = vmatpush1.bf16.msra.mxu0 %v1183
      %1212 = vmatprep.subr.bf16.mxu0 0
      %1213 = vmatpush1.bf16.msra.mxu0 %v1182
      %1214 = vmatprep.subr.bf16.mxu0 0
      %1215 = vmatpush2.bf16.msra.mxu0 0
      %1216 = vmatprep.subr.bf16.mxu0 0
      %1217 = vmatpush2.bf16.msra.mxu0 0
      %1218 = vmatprep.subr.bf16.mxu0 0
      %1219 = vmatpush2.bf16.msra.mxu0 0
      %1220 = vmatprep.subr.bf16.mxu0 0
      %1221 = vmatpush2.bf16.msra.mxu0 0
      %1222 = vmatprep.subr.bf16.mxu0 0
      %1223 = vmatpush2.bf16.msra.mxu0 0
      %1224 = vmatprep.subr.bf16.mxu0 0
      %1225 = vmatpush2.bf16.msra.mxu0 0
      %1226 = vmatprep.subr.bf16.mxu0 0
      %1227 = vmatpush2.bf16.msra.mxu0 0
      %1228 = vmatprep.subr.bf16.mxu0 0
      %1229 = vmatpush2.bf16.msra.mxu0 0
      %1230 = vmatprep.mubr.bf16.mxu0 0
      %1231 = vmatmul.mubr.bf16.gmra.mxu0 %v690
      %v1232 = vpop.f32.mrf.mxu0
      %v1233 = vadd.f32 0.0, %v1232
      %v1234 = vpop.f32.mrf.mxu0
      %v1235 = vpop.f32.mrf.mxu0
      %v1236 = vadd.f32 0.0, %v1235
      %v1237 = vpop.f32.mrf.mxu0
      %1238 = vmatprep.mubr.bf16.mxu0 0
      %1239 = vmatmul.mubr.bf16.gmra.mxu0 %v691
      %v1240 = vpop.f32.mrf.mxu0
      %v1241 = vadd.f32 0.0, %v1240
      %v1242 = vpop.f32.mrf.mxu0
      %v1243 = vpop.f32.mrf.mxu0
      %v1244 = vadd.f32 0.0, %v1243
      %v1245 = vpop.f32.mrf.mxu0
      %1246 = vmatprep.mubr.bf16.mxu0 0
      %1247 = vmatmul.mubr.bf16.gmra.mxu0 %v692
      %v1248 = vpop.f32.mrf.mxu0
      %v1249 = vadd.f32 0.0, %v1248
      %v1250 = vpop.f32.mrf.mxu0
      %v1251 = vpop.f32.mrf.mxu0
      %v1252 = vadd.f32 0.0, %v1251
      %v1253 = vpop.f32.mrf.mxu0
      %1254 = vmatprep.mubr.bf16.mxu0 0
      %1255 = vmatmul.mubr.bf16.gmra.mxu0 %v693
      %v1256 = vpop.f32.mrf.mxu0
      %v1257 = vadd.f32 0.0, %v1256
      %v1258 = vpop.f32.mrf.mxu0
      %v1259 = vpop.f32.mrf.mxu0
      %v1260 = vadd.f32 0.0, %v1259
      %v1261 = vpop.f32.mrf.mxu0
      %1262 = vmatprep.mubr.bf16.mxu0 0
      %1263 = vmatmul.mubr.bf16.gmra.mxu0 %v694
      %v1264 = vpop.f32.mrf.mxu0
      %v1265 = vadd.f32 0.0, %v1264
      %v1266 = vpop.f32.mrf.mxu0
      %v1267 = vpop.f32.mrf.mxu0
      %v1268 = vadd.f32 0.0, %v1267
      %v1269 = vpop.f32.mrf.mxu0
      %1270 = vmatprep.mubr.bf16.mxu0 0
      %1271 = vmatmul.mubr.bf16.gmra.mxu0 %v695
      %v1272 = vpop.f32.mrf.mxu0
      %v1273 = vadd.f32 0.0, %v1272
      %v1274 = vpop.f32.mrf.mxu0
      %v1275 = vpop.f32.mrf.mxu0
      %v1276 = vadd.f32 0.0, %v1275
      %v1277 = vpop.f32.mrf.mxu0
      %1278 = vmatprep.mubr.bf16.mxu0 0
      %1279 = vmatmul.mubr.bf16.gmra.mxu0 %v696
      %v1280 = vpop.f32.mrf.mxu0
      %v1281 = vadd.f32 0.0, %v1280
      %v1282 = vpop.f32.mrf.mxu0
      %v1283 = vpop.f32.mrf.mxu0
      %v1284 = vadd.f32 0.0, %v1283
      %v1285 = vpop.f32.mrf.mxu0
      %1286 = vmatprep.mubr.bf16.mxu0 0
      %1287 = vmatmul.mubr.bf16.gmra.mxu0 %v1148
      %v1288 = vpop.f32.mrf.mxu0
      %v1289 = vadd.f32 0.0, %v1288
      %v1290 = vpop.f32.mrf.mxu0
      %v1291 = vpop.f32.mrf.mxu0
      %v1292 = vadd.f32 0.0, %v1291
      %v1293 = vpop.f32.mrf.mxu0
      %1294 = vdwg.mxu0
      %v1295 = vadd.f32 %v1111, %v1233
      %v1296 = vadd.f32 %v1112, %v1236
      %v1297 = vadd.f32 %v1113, %v1241
      %v1298 = vadd.f32 %v1114, %v1244
      %v1299 = vadd.f32 %v1115, %v1249
      %v1300 = vadd.f32 %v1116, %v1252
      %v1301 = vadd.f32 %v1117, %v1257
      %v1302 = vadd.f32 %v1118, %v1260
      %v1303 = vadd.f32 %v1119, %v1265
      %v1304 = vadd.f32 %v1120, %v1268
      %v1305 = vadd.f32 %v1121, %v1273
      %v1306 = vadd.f32 %v1122, %v1276
      %v1307 = vadd.f32 %v1123, %v1281
      %v1308 = vadd.f32 %v1124, %v1284
      %v1309 = vadd.f32 %v1125, %v1289
      %v1310 = vadd.f32 %v1126, %v1292
      %v1312 = vshrl.u32 %v246, 16
      %v1314 = vrot.slane %v1312, 4
      %v1315 = vshll.u32 %v246, 16
      %v1317 = vrot.slane %v1315, 5
      %v1318 = vor.u32 %v1314, %v1317
      %v1319 = vrot.slane %v1318, 4
      %v1321 = vshll.u32 %v247, 16
      %v1323 = vrot.slane %v1321, 5
      %v1324 = vsel %vm270, %v1319, %v1323
      %v1325 = vshrl.u32 %v247, 16
      %v1327 = vrot.slane %v1325, 4
      %v1328 = vor.u32 %v1327, %v1323
      %v1329 = vrot.slane %v1328, 4
      %v1331 = vshll.u32 %v248, 16
      %v1333 = vrot.slane %v1331, 5
      %v1334 = vsel %vm270, %v1329, %v1333
      %s1335 = scalar_lea.vmem %s1, 256
      %v1336 = vld [vmem:[%s1335] sm:$0xf]
      %v1337 = vld [vmem:[%s1335 + $0x4] sm:$0xf]
      %v1338 = vld [vmem:[%s1335 + $0x8] sm:$0xf]
      %v1339 = vld [vmem:[%s1335 + $0xc] sm:$0xf]
      %v1340 = vld [vmem:[%s1335 + $0x10] sm:$0xf]
      %v1341 = vld [vmem:[%s1335 + $0x14] sm:$0xf]
      %v1342 = vld [vmem:[%s1335 + $0x18] sm:$0xf]
      %v1343 = vld [vmem:[%s1335 + $0x1c] sm:$0xf]
      %v1344 = vld [vmem:[%s1335 + $0x20] sm:$0xf]
      %v1345 = vld [vmem:[%s1335 + $0x24] sm:$0xf]
      %v1346 = vld [vmem:[%s1335 + $0x28] sm:$0xf]
      %v1347 = vld [vmem:[%s1335 + $0x2c] sm:$0xf]
      %v1348 = vld [vmem:[%s1335 + $0x30] sm:$0xf]
      %v1349 = vld [vmem:[%s1335 + $0x34] sm:$0xf]
      %v1350 = vld [vmem:[%s1335 + $0x38] sm:$0xf]
      %v1351 = vld [vmem:[%s1335 + $0x3c] sm:$0xf]
      %v1352 = vunpack.c.l.b16 %v1324
      %v1353 = vunpack.c.l.b16 %v1334
      %v1354 = vpack.c.b16 %v1353, %v1352
      %v1372 = vunpack.c.l.b16 %v1336
      %v1373 = vunpack.c.l.b16 %v1337
      %v1374 = vunpack.c.l.b16 %v1338
      %v1375 = vunpack.c.l.b16 %v1339
      %v1376 = vunpack.c.l.b16 %v1340
      %v1377 = vunpack.c.l.b16 %v1341
      %v1378 = vunpack.c.l.b16 %v1342
      %v1379 = vunpack.c.l.b16 %v1343
      %v1380 = vunpack.c.l.b16 %v1344
      %v1381 = vunpack.c.l.b16 %v1345
      %v1382 = vunpack.c.l.b16 %v1346
      %v1383 = vunpack.c.l.b16 %v1347
      %v1384 = vunpack.c.l.b16 %v1348
      %v1385 = vunpack.c.l.b16 %v1349
      %v1386 = vunpack.c.l.b16 %v1350
      %v1387 = vunpack.c.l.b16 %v1351
      %v1388 = vpack.c.b16 %v1373, %v1372
      %v1389 = vpack.c.b16 %v1375, %v1374
      %v1390 = vpack.c.b16 %v1377, %v1376
      %v1391 = vpack.c.b16 %v1379, %v1378
      %v1392 = vpack.c.b16 %v1381, %v1380
      %v1393 = vpack.c.b16 %v1383, %v1382
      %v1394 = vpack.c.b16 %v1385, %v1384
      %v1395 = vpack.c.b16 %v1387, %v1386
      %1404 = vmatprep.subr.bf16.mxu0 0
      %1405 = vmatpush1.bf16.msra.mxu0 %v1395
      %1406 = vmatprep.subr.bf16.mxu0 0
      %1407 = vmatpush1.bf16.msra.mxu0 %v1394
      %1408 = vmatprep.subr.bf16.mxu0 0
      %1409 = vmatpush1.bf16.msra.mxu0 %v1393
      %1410 = vmatprep.subr.bf16.mxu0 0
      %1411 = vmatpush1.bf16.msra.mxu0 %v1392
      %1412 = vmatprep.subr.bf16.mxu0 0
      %1413 = vmatpush1.bf16.msra.mxu0 %v1391
      %1414 = vmatprep.subr.bf16.mxu0 0
      %1415 = vmatpush1.bf16.msra.mxu0 %v1390
      %1416 = vmatprep.subr.bf16.mxu0 0
      %1417 = vmatpush1.bf16.msra.mxu0 %v1389
      %1418 = vmatprep.subr.bf16.mxu0 0
      %1419 = vmatpush1.bf16.msra.mxu0 %v1388
      %1420 = vmatprep.subr.bf16.mxu0 0
      %1421 = vmatpush2.bf16.msra.mxu0 0
      %1422 = vmatprep.subr.bf16.mxu0 0
      %1423 = vmatpush2.bf16.msra.mxu0 0
      %1424 = vmatprep.subr.bf16.mxu0 0
      %1425 = vmatpush2.bf16.msra.mxu0 0
      %1426 = vmatprep.subr.bf16.mxu0 0
      %1427 = vmatpush2.bf16.msra.mxu0 0
      %1428 = vmatprep.subr.bf16.mxu0 0
      %1429 = vmatpush2.bf16.msra.mxu0 0
      %1430 = vmatprep.subr.bf16.mxu0 0
      %1431 = vmatpush2.bf16.msra.mxu0 0
      %1432 = vmatprep.subr.bf16.mxu0 0
      %1433 = vmatpush2.bf16.msra.mxu0 0
      %1434 = vmatprep.subr.bf16.mxu0 0
      %1435 = vmatpush2.bf16.msra.mxu0 0
      %1436 = vmatprep.mubr.bf16.mxu0 0
      %1437 = vmatmul.mubr.bf16.gmra.mxu0 %v497
      %v1438 = vpop.f32.mrf.mxu0
      %v1439 = vadd.f32 0.0, %v1438
      %v1440 = vpop.f32.mrf.mxu0
      %v1441 = vpop.f32.mrf.mxu0
      %v1442 = vadd.f32 0.0, %v1441
      %v1443 = vpop.f32.mrf.mxu0
      %1444 = vmatprep.mubr.bf16.mxu0 0
      %1445 = vmatmul.mubr.bf16.gmra.mxu0 %v498
      %v1446 = vpop.f32.mrf.mxu0
      %v1447 = vadd.f32 0.0, %v1446
      %v1448 = vpop.f32.mrf.mxu0
      %v1449 = vpop.f32.mrf.mxu0
      %v1450 = vadd.f32 0.0, %v1449
      %v1451 = vpop.f32.mrf.mxu0
      %1452 = vmatprep.mubr.bf16.mxu0 0
      %1453 = vmatmul.mubr.bf16.gmra.mxu0 %v499
      %v1454 = vpop.f32.mrf.mxu0
      %v1455 = vadd.f32 0.0, %v1454
      %v1456 = vpop.f32.mrf.mxu0
      %v1457 = vpop.f32.mrf.mxu0
      %v1458 = vadd.f32 0.0, %v1457
      %v1459 = vpop.f32.mrf.mxu0
      %1460 = vmatprep.mubr.bf16.mxu0 0
      %1461 = vmatmul.mubr.bf16.gmra.mxu0 %v500
      %v1462 = vpop.f32.mrf.mxu0
      %v1463 = vadd.f32 0.0, %v1462
      %v1464 = vpop.f32.mrf.mxu0
      %v1465 = vpop.f32.mrf.mxu0
      %v1466 = vadd.f32 0.0, %v1465
      %v1467 = vpop.f32.mrf.mxu0
      %1468 = vmatprep.mubr.bf16.mxu0 0
      %1469 = vmatmul.mubr.bf16.gmra.mxu0 %v501
      %v1470 = vpop.f32.mrf.mxu0
      %v1471 = vadd.f32 0.0, %v1470
      %v1472 = vpop.f32.mrf.mxu0
      %v1473 = vpop.f32.mrf.mxu0
      %v1474 = vadd.f32 0.0, %v1473
      %v1475 = vpop.f32.mrf.mxu0
      %1476 = vmatprep.mubr.bf16.mxu0 0
      %1477 = vmatmul.mubr.bf16.gmra.mxu0 %v502
      %v1478 = vpop.f32.mrf.mxu0
      %v1479 = vadd.f32 0.0, %v1478
      %v1480 = vpop.f32.mrf.mxu0
      %v1481 = vpop.f32.mrf.mxu0
      %v1482 = vadd.f32 0.0, %v1481
      %v1483 = vpop.f32.mrf.mxu0
      %1484 = vmatprep.mubr.bf16.mxu0 0
      %1485 = vmatmul.mubr.bf16.gmra.mxu0 %v503
      %v1486 = vpop.f32.mrf.mxu0
      %v1487 = vadd.f32 0.0, %v1486
      %v1488 = vpop.f32.mrf.mxu0
      %v1489 = vpop.f32.mrf.mxu0
      %v1490 = vadd.f32 0.0, %v1489
      %v1491 = vpop.f32.mrf.mxu0
      %1492 = vmatprep.mubr.bf16.mxu0 0
      %1493 = vmatmul.mubr.bf16.gmra.mxu0 %v1354
      %v1494 = vpop.f32.mrf.mxu0
      %v1495 = vadd.f32 0.0, %v1494
      %v1496 = vpop.f32.mrf.mxu0
      %v1497 = vpop.f32.mrf.mxu0
      %v1498 = vadd.f32 0.0, %v1497
      %v1499 = vpop.f32.mrf.mxu0
      %1500 = vdwg.mxu0
      %v1501 = vadd.f32 %v1295, %v1439
      %v1502 = vadd.f32 %v1296, %v1442
      %v1503 = vadd.f32 %v1297, %v1447
      %v1504 = vadd.f32 %v1298, %v1450
      %v1505 = vadd.f32 %v1299, %v1455
      %v1506 = vadd.f32 %v1300, %v1458
      %v1507 = vadd.f32 %v1301, %v1463
      %v1508 = vadd.f32 %v1302, %v1466
      %v1509 = vadd.f32 %v1303, %v1471
      %v1510 = vadd.f32 %v1304, %v1474
      %v1511 = vadd.f32 %v1305, %v1479
      %v1512 = vadd.f32 %v1306, %v1482
      %v1513 = vadd.f32 %v1307, %v1487
      %v1514 = vadd.f32 %v1308, %v1490
      %v1515 = vadd.f32 %v1309, %v1495
      %v1516 = vadd.f32 %v1310, %v1498
      %v1518 = vrot.slane %v246, 5
      %v1519 = vrot.slane %v1518, 4
      %v1520 = vrot.slane %v247, 5
      %v1521 = vsel %vm860, %v1519, %v1520
      %v1522 = vrot.slane %v1520, 4
      %v1523 = vrot.slane %v248, 5
      %v1524 = vsel %vm860, %v1522, %v1523
      %s1525 = scalar_lea.vmem %s1, 320
      %v1526 = vld [vmem:[%s1525] sm:$0xf]
      %v1527 = vld [vmem:[%s1525 + $0x4] sm:$0xf]
      %v1528 = vld [vmem:[%s1525 + $0x8] sm:$0xf]
      %v1529 = vld [vmem:[%s1525 + $0xc] sm:$0xf]
      %v1530 = vld [vmem:[%s1525 + $0x10] sm:$0xf]
      %v1531 = vld [vmem:[%s1525 + $0x14] sm:$0xf]
      %v1532 = vld [vmem:[%s1525 + $0x18] sm:$0xf]
      %v1533 = vld [vmem:[%s1525 + $0x1c] sm:$0xf]
      %v1534 = vld [vmem:[%s1525 + $0x20] sm:$0xf]
      %v1535 = vld [vmem:[%s1525 + $0x24] sm:$0xf]
      %v1536 = vld [vmem:[%s1525 + $0x28] sm:$0xf]
      %v1537 = vld [vmem:[%s1525 + $0x2c] sm:$0xf]
      %v1538 = vld [vmem:[%s1525 + $0x30] sm:$0xf]
      %v1539 = vld [vmem:[%s1525 + $0x34] sm:$0xf]
      %v1540 = vld [vmem:[%s1525 + $0x38] sm:$0xf]
      %v1541 = vld [vmem:[%s1525 + $0x3c] sm:$0xf]
      %v1542 = vunpack.c.l.b16 %v1521
      %v1543 = vunpack.c.l.b16 %v1524
      %v1544 = vpack.c.b16 %v1543, %v1542
      %v1562 = vunpack.c.l.b16 %v1526
      %v1563 = vunpack.c.l.b16 %v1527
      %v1564 = vunpack.c.l.b16 %v1528
      %v1565 = vunpack.c.l.b16 %v1529
      %v1566 = vunpack.c.l.b16 %v1530
      %v1567 = vunpack.c.l.b16 %v1531
      %v1568 = vunpack.c.l.b16 %v1532
      %v1569 = vunpack.c.l.b16 %v1533
      %v1570 = vunpack.c.l.b16 %v1534
      %v1571 = vunpack.c.l.b16 %v1535
      %v1572 = vunpack.c.l.b16 %v1536
      %v1573 = vunpack.c.l.b16 %v1537
      %v1574 = vunpack.c.l.b16 %v1538
      %v1575 = vunpack.c.l.b16 %v1539
      %v1576 = vunpack.c.l.b16 %v1540
      %v1577 = vunpack.c.l.b16 %v1541
      %v1578 = vpack.c.b16 %v1563, %v1562
      %v1579 = vpack.c.b16 %v1565, %v1564
      %v1580 = vpack.c.b16 %v1567, %v1566
      %v1581 = vpack.c.b16 %v1569, %v1568
      %v1582 = vpack.c.b16 %v1571, %v1570
      %v1583 = vpack.c.b16 %v1573, %v1572
      %v1584 = vpack.c.b16 %v1575, %v1574
      %v1585 = vpack.c.b16 %v1577, %v1576
      %1594 = vmatprep.subr.bf16.mxu0 0
      %1595 = vmatpush1.bf16.msra.mxu0 %v1585
      %1596 = vmatprep.subr.bf16.mxu0 0
      %1597 = vmatpush1.bf16.msra.mxu0 %v1584
      %1598 = vmatprep.subr.bf16.mxu0 0
      %1599 = vmatpush1.bf16.msra.mxu0 %v1583
      %1600 = vmatprep.subr.bf16.mxu0 0
      %1601 = vmatpush1.bf16.msra.mxu0 %v1582
      %1602 = vmatprep.subr.bf16.mxu0 0
      %1603 = vmatpush1.bf16.msra.mxu0 %v1581
      %1604 = vmatprep.subr.bf16.mxu0 0
      %1605 = vmatpush1.bf16.msra.mxu0 %v1580
      %1606 = vmatprep.subr.bf16.mxu0 0
      %1607 = vmatpush1.bf16.msra.mxu0 %v1579
      %1608 = vmatprep.subr.bf16.mxu0 0
      %1609 = vmatpush1.bf16.msra.mxu0 %v1578
      %1610 = vmatprep.subr.bf16.mxu0 0
      %1611 = vmatpush2.bf16.msra.mxu0 0
      %1612 = vmatprep.subr.bf16.mxu0 0
      %1613 = vmatpush2.bf16.msra.mxu0 0
      %1614 = vmatprep.subr.bf16.mxu0 0
      %1615 = vmatpush2.bf16.msra.mxu0 0
      %1616 = vmatprep.subr.bf16.mxu0 0
      %1617 = vmatpush2.bf16.msra.mxu0 0
      %1618 = vmatprep.subr.bf16.mxu0 0
      %1619 = vmatpush2.bf16.msra.mxu0 0
      %1620 = vmatprep.subr.bf16.mxu0 0
      %1621 = vmatpush2.bf16.msra.mxu0 0
      %1622 = vmatprep.subr.bf16.mxu0 0
      %1623 = vmatpush2.bf16.msra.mxu0 0
      %1624 = vmatprep.subr.bf16.mxu0 0
      %1625 = vmatpush2.bf16.msra.mxu0 0
      %1626 = vmatprep.mubr.bf16.mxu0 0
      %1627 = vmatmul.mubr.bf16.gmra.mxu0 %v951
      %v1628 = vpop.f32.mrf.mxu0
      %v1629 = vadd.f32 0.0, %v1628
      %v1630 = vpop.f32.mrf.mxu0
      %v1631 = vpop.f32.mrf.mxu0
      %v1632 = vadd.f32 0.0, %v1631
      %v1633 = vpop.f32.mrf.mxu0
      %1634 = vmatprep.mubr.bf16.mxu0 0
      %1635 = vmatmul.mubr.bf16.gmra.mxu0 %v952
      %v1636 = vpop.f32.mrf.mxu0
      %v1637 = vadd.f32 0.0, %v1636
      %v1638 = vpop.f32.mrf.mxu0
      %v1639 = vpop.f32.mrf.mxu0
      %v1640 = vadd.f32 0.0, %v1639
      %v1641 = vpop.f32.mrf.mxu0
      %1642 = vmatprep.mubr.bf16.mxu0 0
      %1643 = vmatmul.mubr.bf16.gmra.mxu0 %v953
      %v1644 = vpop.f32.mrf.mxu0
      %v1645 = vadd.f32 0.0, %v1644
      %v1646 = vpop.f32.mrf.mxu0
      %v1647 = vpop.f32.mrf.mxu0
      %v1648 = vadd.f32 0.0, %v1647
      %v1649 = vpop.f32.mrf.mxu0
      %1650 = vmatprep.mubr.bf16.mxu0 0
      %1651 = vmatmul.mubr.bf16.gmra.mxu0 %v954
      %v1652 = vpop.f32.mrf.mxu0
      %v1653 = vadd.f32 0.0, %v1652
      %v1654 = vpop.f32.mrf.mxu0
      %v1655 = vpop.f32.mrf.mxu0
      %v1656 = vadd.f32 0.0, %v1655
      %v1657 = vpop.f32.mrf.mxu0
      %1658 = vmatprep.mubr.bf16.mxu0 0
      %1659 = vmatmul.mubr.bf16.gmra.mxu0 %v955
      %v1660 = vpop.f32.mrf.mxu0
      %v1661 = vadd.f32 0.0, %v1660
      %v1662 = vpop.f32.mrf.mxu0
      %v1663 = vpop.f32.mrf.mxu0
      %v1664 = vadd.f32 0.0, %v1663
      %v1665 = vpop.f32.mrf.mxu0
      %1666 = vmatprep.mubr.bf16.mxu0 0
      %1667 = vmatmul.mubr.bf16.gmra.mxu0 %v956
      %v1668 = vpop.f32.mrf.mxu0
      %v1669 = vadd.f32 0.0, %v1668
      %v1670 = vpop.f32.mrf.mxu0
      %v1671 = vpop.f32.mrf.mxu0
      %v1672 = vadd.f32 0.0, %v1671
      %v1673 = vpop.f32.mrf.mxu0
      %1674 = vmatprep.mubr.bf16.mxu0 0
      %1675 = vmatmul.mubr.bf16.gmra.mxu0 %v957
      %v1676 = vpop.f32.mrf.mxu0
      %v1677 = vadd.f32 0.0, %v1676
      %v1678 = vpop.f32.mrf.mxu0
      %v1679 = vpop.f32.mrf.mxu0
      %v1680 = vadd.f32 0.0, %v1679
      %v1681 = vpop.f32.mrf.mxu0
      %1682 = vmatprep.mubr.bf16.mxu0 0
      %1683 = vmatmul.mubr.bf16.gmra.mxu0 %v1544
      %v1684 = vpop.f32.mrf.mxu0
      %v1685 = vadd.f32 0.0, %v1684
      %v1686 = vpop.f32.mrf.mxu0
      %v1687 = vpop.f32.mrf.mxu0
      %v1688 = vadd.f32 0.0, %v1687
      %v1689 = vpop.f32.mrf.mxu0
      %1690 = vdwg.mxu0
      %v1691 = vadd.f32 %v1501, %v1629
      %v1692 = vadd.f32 %v1502, %v1632
      %v1693 = vadd.f32 %v1503, %v1637
      %v1694 = vadd.f32 %v1504, %v1640
      %v1695 = vadd.f32 %v1505, %v1645
      %v1696 = vadd.f32 %v1506, %v1648
      %v1697 = vadd.f32 %v1507, %v1653
      %v1698 = vadd.f32 %v1508, %v1656
      %v1699 = vadd.f32 %v1509, %v1661
      %v1700 = vadd.f32 %v1510, %v1664
      %v1701 = vadd.f32 %v1511, %v1669
      %v1702 = vadd.f32 %v1512, %v1672
      %v1703 = vadd.f32 %v1513, %v1677
      %v1704 = vadd.f32 %v1514, %v1680
      %v1705 = vadd.f32 %v1515, %v1685
      %v1706 = vadd.f32 %v1516, %v1688
      %s1707 = scalar_lea.vmem %s1, 384
      %v1708 = vld [vmem:[%s1707] sm:$0xf]
      %v1709 = vld [vmem:[%s1707 + $0x4] sm:$0xf]
      %v1710 = vld [vmem:[%s1707 + $0x8] sm:$0xf]
      %v1711 = vld [vmem:[%s1707 + $0xc] sm:$0xf]
      %v1712 = vld [vmem:[%s1707 + $0x10] sm:$0xf]
      %v1713 = vld [vmem:[%s1707 + $0x14] sm:$0xf]
      %v1714 = vld [vmem:[%s1707 + $0x18] sm:$0xf]
      %v1715 = vld [vmem:[%s1707 + $0x1c] sm:$0xf]
      %v1716 = vld [vmem:[%s1707 + $0x20] sm:$0xf]
      %v1717 = vld [vmem:[%s1707 + $0x24] sm:$0xf]
      %v1718 = vld [vmem:[%s1707 + $0x28] sm:$0xf]
      %v1719 = vld [vmem:[%s1707 + $0x2c] sm:$0xf]
      %v1720 = vld [vmem:[%s1707 + $0x30] sm:$0xf]
      %v1721 = vld [vmem:[%s1707 + $0x34] sm:$0xf]
      %v1722 = vld [vmem:[%s1707 + $0x38] sm:$0xf]
      %v1723 = vld [vmem:[%s1707 + $0x3c] sm:$0xf]
      %v1726 = vunpack.c.l.b16 %v249
      %v1727 = vunpack.c.l.b16 %v250
      %v1728 = vpack.c.b16 %v1727, %v1726
      %v1746 = vunpack.c.l.b16 %v1708
      %v1747 = vunpack.c.l.b16 %v1709
      %v1748 = vunpack.c.l.b16 %v1710
      %v1749 = vunpack.c.l.b16 %v1711
      %v1750 = vunpack.c.l.b16 %v1712
      %v1751 = vunpack.c.l.b16 %v1713
      %v1752 = vunpack.c.l.b16 %v1714
      %v1753 = vunpack.c.l.b16 %v1715
      %v1754 = vunpack.c.l.b16 %v1716
      %v1755 = vunpack.c.l.b16 %v1717
      %v1756 = vunpack.c.l.b16 %v1718
      %v1757 = vunpack.c.l.b16 %v1719
      %v1758 = vunpack.c.l.b16 %v1720
      %v1759 = vunpack.c.l.b16 %v1721
      %v1760 = vunpack.c.l.b16 %v1722
      %v1761 = vunpack.c.l.b16 %v1723
      %v1762 = vpack.c.b16 %v1747, %v1746
      %v1763 = vpack.c.b16 %v1749, %v1748
      %v1764 = vpack.c.b16 %v1751, %v1750
      %v1765 = vpack.c.b16 %v1753, %v1752
      %v1766 = vpack.c.b16 %v1755, %v1754
      %v1767 = vpack.c.b16 %v1757, %v1756
      %v1768 = vpack.c.b16 %v1759, %v1758
      %v1769 = vpack.c.b16 %v1761, %v1760
      %1778 = vmatprep.subr.bf16.mxu0 0
      %1779 = vmatpush1.bf16.msra.mxu0 %v1769
      %1780 = vmatprep.subr.bf16.mxu0 0
      %1781 = vmatpush1.bf16.msra.mxu0 %v1768
      %1782 = vmatprep.subr.bf16.mxu0 0
      %1783 = vmatpush1.bf16.msra.mxu0 %v1767
      %1784 = vmatprep.subr.bf16.mxu0 0
      %1785 = vmatpush1.bf16.msra.mxu0 %v1766
      %1786 = vmatprep.subr.bf16.mxu0 0
      %1787 = vmatpush1.bf16.msra.mxu0 %v1765
      %1788 = vmatprep.subr.bf16.mxu0 0
      %1789 = vmatpush1.bf16.msra.mxu0 %v1764
      %1790 = vmatprep.subr.bf16.mxu0 0
      %1791 = vmatpush1.bf16.msra.mxu0 %v1763
      %1792 = vmatprep.subr.bf16.mxu0 0
      %1793 = vmatpush1.bf16.msra.mxu0 %v1762
      %1794 = vmatprep.subr.bf16.mxu0 0
      %1795 = vmatpush2.bf16.msra.mxu0 0
      %1796 = vmatprep.subr.bf16.mxu0 0
      %1797 = vmatpush2.bf16.msra.mxu0 0
      %1798 = vmatprep.subr.bf16.mxu0 0
      %1799 = vmatpush2.bf16.msra.mxu0 0
      %1800 = vmatprep.subr.bf16.mxu0 0
      %1801 = vmatpush2.bf16.msra.mxu0 0
      %1802 = vmatprep.subr.bf16.mxu0 0
      %1803 = vmatpush2.bf16.msra.mxu0 0
      %1804 = vmatprep.subr.bf16.mxu0 0
      %1805 = vmatpush2.bf16.msra.mxu0 0
      %1806 = vmatprep.subr.bf16.mxu0 0
      %1807 = vmatpush2.bf16.msra.mxu0 0
      %1808 = vmatprep.subr.bf16.mxu0 0
      %1809 = vmatpush2.bf16.msra.mxu0 0
      %1810 = vmatprep.mubr.bf16.mxu0 0
      %1811 = vmatmul.mubr.bf16.gmra.mxu0 %v691
      %v1812 = vpop.f32.mrf.mxu0
      %v1813 = vadd.f32 0.0, %v1812
      %v1814 = vpop.f32.mrf.mxu0
      %v1815 = vpop.f32.mrf.mxu0
      %v1816 = vadd.f32 0.0, %v1815
      %v1817 = vpop.f32.mrf.mxu0
      %1818 = vmatprep.mubr.bf16.mxu0 0
      %1819 = vmatmul.mubr.bf16.gmra.mxu0 %v692
      %v1820 = vpop.f32.mrf.mxu0
      %v1821 = vadd.f32 0.0, %v1820
      %v1822 = vpop.f32.mrf.mxu0
      %v1823 = vpop.f32.mrf.mxu0
      %v1824 = vadd.f32 0.0, %v1823
      %v1825 = vpop.f32.mrf.mxu0
      %1826 = vmatprep.mubr.bf16.mxu0 0
      %1827 = vmatmul.mubr.bf16.gmra.mxu0 %v693
      %v1828 = vpop.f32.mrf.mxu0
      %v1829 = vadd.f32 0.0, %v1828
      %v1830 = vpop.f32.mrf.mxu0
      %v1831 = vpop.f32.mrf.mxu0
      %v1832 = vadd.f32 0.0, %v1831
      %v1833 = vpop.f32.mrf.mxu0
      %1834 = vmatprep.mubr.bf16.mxu0 0
      %1835 = vmatmul.mubr.bf16.gmra.mxu0 %v694
      %v1836 = vpop.f32.mrf.mxu0
      %v1837 = vadd.f32 0.0, %v1836
      %v1838 = vpop.f32.mrf.mxu0
      %v1839 = vpop.f32.mrf.mxu0
      %v1840 = vadd.f32 0.0, %v1839
      %v1841 = vpop.f32.mrf.mxu0
      %1842 = vmatprep.mubr.bf16.mxu0 0
      %1843 = vmatmul.mubr.bf16.gmra.mxu0 %v695
      %v1844 = vpop.f32.mrf.mxu0
      %v1845 = vadd.f32 0.0, %v1844
      %v1846 = vpop.f32.mrf.mxu0
      %v1847 = vpop.f32.mrf.mxu0
      %v1848 = vadd.f32 0.0, %v1847
      %v1849 = vpop.f32.mrf.mxu0
      %1850 = vmatprep.mubr.bf16.mxu0 0
      %1851 = vmatmul.mubr.bf16.gmra.mxu0 %v696
      %v1852 = vpop.f32.mrf.mxu0
      %v1853 = vadd.f32 0.0, %v1852
      %v1854 = vpop.f32.mrf.mxu0
      %v1855 = vpop.f32.mrf.mxu0
      %v1856 = vadd.f32 0.0, %v1855
      %v1857 = vpop.f32.mrf.mxu0
      %1858 = vmatprep.mubr.bf16.mxu0 0
      %1859 = vmatmul.mubr.bf16.gmra.mxu0 %v1148
      %v1860 = vpop.f32.mrf.mxu0
      %v1861 = vadd.f32 0.0, %v1860
      %v1862 = vpop.f32.mrf.mxu0
      %v1863 = vpop.f32.mrf.mxu0
      %v1864 = vadd.f32 0.0, %v1863
      %v1865 = vpop.f32.mrf.mxu0
      %1866 = vmatprep.mubr.bf16.mxu0 0
      %1867 = vmatmul.mubr.bf16.gmra.mxu0 %v1728
      %v1868 = vpop.f32.mrf.mxu0
      %v1869 = vadd.f32 0.0, %v1868
      %v1870 = vpop.f32.mrf.mxu0
      %v1871 = vpop.f32.mrf.mxu0
      %v1872 = vadd.f32 0.0, %v1871
      %v1873 = vpop.f32.mrf.mxu0
      %1874 = vdwg.mxu0
      %v1875 = vadd.f32 %v1691, %v1813
      %v1876 = vadd.f32 %v1692, %v1816
      %v1877 = vadd.f32 %v1693, %v1821
      %v1878 = vadd.f32 %v1694, %v1824
      %v1879 = vadd.f32 %v1695, %v1829
      %v1880 = vadd.f32 %v1696, %v1832
      %v1881 = vadd.f32 %v1697, %v1837
      %v1882 = vadd.f32 %v1698, %v1840
      %v1883 = vadd.f32 %v1699, %v1845
      %v1884 = vadd.f32 %v1700, %v1848
      %v1885 = vadd.f32 %v1701, %v1853
      %v1886 = vadd.f32 %v1702, %v1856
      %v1887 = vadd.f32 %v1703, %v1861
      %v1888 = vadd.f32 %v1704, %v1864
      %v1889 = vadd.f32 %v1705, %v1869
      %v1890 = vadd.f32 %v1706, %v1872
      %v1892 = vshrl.u32 %v249, 16
      %v1894 = vrot.slane %v1892, 4
      %v1895 = vshll.u32 %v249, 16
      %v1897 = vrot.slane %v1895, 5
      %v1898 = vor.u32 %v1894, %v1897
      %v1899 = vrot.slane %v1898, 4
      %v1901 = vshll.u32 %v250, 16
      %v1903 = vrot.slane %v1901, 5
      %v1904 = vsel %vm270, %v1899, %v1903
      %v1905 = vshrl.u32 %v250, 16
      %v1907 = vrot.slane %v1905, 4
      %v1908 = vor.u32 %v1907, %v1903
      %v1909 = vrot.slane %v1908, 4
      %v1911 = vshll.u32 %v251, 16
      %v1913 = vrot.slane %v1911, 5
      %v1914 = vsel %vm270, %v1909, %v1913
      %s1915 = scalar_lea.vmem %s1, 448
      %v1916 = vld [vmem:[%s1915] sm:$0xf]
      %v1917 = vld [vmem:[%s1915 + $0x4] sm:$0xf]
      %v1918 = vld [vmem:[%s1915 + $0x8] sm:$0xf]
      %v1919 = vld [vmem:[%s1915 + $0xc] sm:$0xf]
      %v1920 = vld [vmem:[%s1915 + $0x10] sm:$0xf]
      %v1921 = vld [vmem:[%s1915 + $0x14] sm:$0xf]
      %v1922 = vld [vmem:[%s1915 + $0x18] sm:$0xf]
      %v1923 = vld [vmem:[%s1915 + $0x1c] sm:$0xf]
      %v1924 = vld [vmem:[%s1915 + $0x20] sm:$0xf]
      %v1925 = vld [vmem:[%s1915 + $0x24] sm:$0xf]
      %v1926 = vld [vmem:[%s1915 + $0x28] sm:$0xf]
      %v1927 = vld [vmem:[%s1915 + $0x2c] sm:$0xf]
      %v1928 = vld [vmem:[%s1915 + $0x30] sm:$0xf]
      %v1929 = vld [vmem:[%s1915 + $0x34] sm:$0xf]
      %v1930 = vld [vmem:[%s1915 + $0x38] sm:$0xf]
      %v1931 = vld [vmem:[%s1915 + $0x3c] sm:$0xf]
      %v1932 = vunpack.c.l.b16 %v1904
      %v1933 = vunpack.c.l.b16 %v1914
      %v1934 = vpack.c.b16 %v1933, %v1932
      %v1952 = vunpack.c.l.b16 %v1916
      %v1953 = vunpack.c.l.b16 %v1917
      %v1954 = vunpack.c.l.b16 %v1918
      %v1955 = vunpack.c.l.b16 %v1919
      %v1956 = vunpack.c.l.b16 %v1920
      %v1957 = vunpack.c.l.b16 %v1921
      %v1958 = vunpack.c.l.b16 %v1922
      %v1959 = vunpack.c.l.b16 %v1923
      %v1960 = vunpack.c.l.b16 %v1924
      %v1961 = vunpack.c.l.b16 %v1925
      %v1962 = vunpack.c.l.b16 %v1926
      %v1963 = vunpack.c.l.b16 %v1927
      %v1964 = vunpack.c.l.b16 %v1928
      %v1965 = vunpack.c.l.b16 %v1929
      %v1966 = vunpack.c.l.b16 %v1930
      %v1967 = vunpack.c.l.b16 %v1931
      %v1968 = vpack.c.b16 %v1953, %v1952
      %v1969 = vpack.c.b16 %v1955, %v1954
      %v1970 = vpack.c.b16 %v1957, %v1956
      %v1971 = vpack.c.b16 %v1959, %v1958
      %v1972 = vpack.c.b16 %v1961, %v1960
      %v1973 = vpack.c.b16 %v1963, %v1962
      %v1974 = vpack.c.b16 %v1965, %v1964
      %v1975 = vpack.c.b16 %v1967, %v1966
      %1984 = vmatprep.subr.bf16.mxu0 0
      %1985 = vmatpush1.bf16.msra.mxu0 %v1975
      %1986 = vmatprep.subr.bf16.mxu0 0
      %1987 = vmatpush1.bf16.msra.mxu0 %v1974
      %1988 = vmatprep.subr.bf16.mxu0 0
      %1989 = vmatpush1.bf16.msra.mxu0 %v1973
      %1990 = vmatprep.subr.bf16.mxu0 0
      %1991 = vmatpush1.bf16.msra.mxu0 %v1972
      %1992 = vmatprep.subr.bf16.mxu0 0
      %1993 = vmatpush1.bf16.msra.mxu0 %v1971
      %1994 = vmatprep.subr.bf16.mxu0 0
      %1995 = vmatpush1.bf16.msra.mxu0 %v1970
      %1996 = vmatprep.subr.bf16.mxu0 0
      %1997 = vmatpush1.bf16.msra.mxu0 %v1969
      %1998 = vmatprep.subr.bf16.mxu0 0
      %1999 = vmatpush1.bf16.msra.mxu0 %v1968
      %2000 = vmatprep.subr.bf16.mxu0 0
      %2001 = vmatpush2.bf16.msra.mxu0 0
      %2002 = vmatprep.subr.bf16.mxu0 0
      %2003 = vmatpush2.bf16.msra.mxu0 0
      %2004 = vmatprep.subr.bf16.mxu0 0
      %2005 = vmatpush2.bf16.msra.mxu0 0
      %2006 = vmatprep.subr.bf16.mxu0 0
      %2007 = vmatpush2.bf16.msra.mxu0 0
      %2008 = vmatprep.subr.bf16.mxu0 0
      %2009 = vmatpush2.bf16.msra.mxu0 0
      %2010 = vmatprep.subr.bf16.mxu0 0
      %2011 = vmatpush2.bf16.msra.mxu0 0
      %2012 = vmatprep.subr.bf16.mxu0 0
      %2013 = vmatpush2.bf16.msra.mxu0 0
      %2014 = vmatprep.subr.bf16.mxu0 0
      %2015 = vmatpush2.bf16.msra.mxu0 0
      %2016 = vmatprep.mubr.bf16.mxu0 0
      %2017 = vmatmul.mubr.bf16.gmra.mxu0 %v498
      %v2018 = vpop.f32.mrf.mxu0
      %v2019 = vadd.f32 0.0, %v2018
      %v2020 = vpop.f32.mrf.mxu0
      %v2021 = vpop.f32.mrf.mxu0
      %v2022 = vadd.f32 0.0, %v2021
      %v2023 = vpop.f32.mrf.mxu0
      %2024 = vmatprep.mubr.bf16.mxu0 0
      %2025 = vmatmul.mubr.bf16.gmra.mxu0 %v499
      %v2026 = vpop.f32.mrf.mxu0
      %v2027 = vadd.f32 0.0, %v2026
      %v2028 = vpop.f32.mrf.mxu0
      %v2029 = vpop.f32.mrf.mxu0
      %v2030 = vadd.f32 0.0, %v2029
      %v2031 = vpop.f32.mrf.mxu0
      %2032 = vmatprep.mubr.bf16.mxu0 0
      %2033 = vmatmul.mubr.bf16.gmra.mxu0 %v500
      %v2034 = vpop.f32.mrf.mxu0
      %v2035 = vadd.f32 0.0, %v2034
      %v2036 = vpop.f32.mrf.mxu0
      %v2037 = vpop.f32.mrf.mxu0
      %v2038 = vadd.f32 0.0, %v2037
      %v2039 = vpop.f32.mrf.mxu0
      %2040 = vmatprep.mubr.bf16.mxu0 0
      %2041 = vmatmul.mubr.bf16.gmra.mxu0 %v501
      %v2042 = vpop.f32.mrf.mxu0
      %v2043 = vadd.f32 0.0, %v2042
      %v2044 = vpop.f32.mrf.mxu0
      %v2045 = vpop.f32.mrf.mxu0
      %v2046 = vadd.f32 0.0, %v2045
      %v2047 = vpop.f32.mrf.mxu0
      %2048 = vmatprep.mubr.bf16.mxu0 0
      %2049 = vmatmul.mubr.bf16.gmra.mxu0 %v502
      %v2050 = vpop.f32.mrf.mxu0
      %v2051 = vadd.f32 0.0, %v2050
      %v2052 = vpop.f32.mrf.mxu0
      %v2053 = vpop.f32.mrf.mxu0
      %v2054 = vadd.f32 0.0, %v2053
      %v2055 = vpop.f32.mrf.mxu0
      %2056 = vmatprep.mubr.bf16.mxu0 0
      %2057 = vmatmul.mubr.bf16.gmra.mxu0 %v503
      %v2058 = vpop.f32.mrf.mxu0
      %v2059 = vadd.f32 0.0, %v2058
      %v2060 = vpop.f32.mrf.mxu0
      %v2061 = vpop.f32.mrf.mxu0
      %v2062 = vadd.f32 0.0, %v2061
      %v2063 = vpop.f32.mrf.mxu0
      %2064 = vmatprep.mubr.bf16.mxu0 0
      %2065 = vmatmul.mubr.bf16.gmra.mxu0 %v1354
      %v2066 = vpop.f32.mrf.mxu0
      %v2067 = vadd.f32 0.0, %v2066
      %v2068 = vpop.f32.mrf.mxu0
      %v2069 = vpop.f32.mrf.mxu0
      %v2070 = vadd.f32 0.0, %v2069
      %v2071 = vpop.f32.mrf.mxu0
      %2072 = vmatprep.mubr.bf16.mxu0 0
      %2073 = vmatmul.mubr.bf16.gmra.mxu0 %v1934
      %v2074 = vpop.f32.mrf.mxu0
      %v2075 = vadd.f32 0.0, %v2074
      %v2076 = vpop.f32.mrf.mxu0
      %v2077 = vpop.f32.mrf.mxu0
      %v2078 = vadd.f32 0.0, %v2077
      %v2079 = vpop.f32.mrf.mxu0
      %2080 = vdwg.mxu0
      %v2081 = vadd.f32 %v1875, %v2019
      %v2082 = vadd.f32 %v1876, %v2022
      %v2083 = vadd.f32 %v1877, %v2027
      %v2084 = vadd.f32 %v1878, %v2030
      %v2085 = vadd.f32 %v1879, %v2035
      %v2086 = vadd.f32 %v1880, %v2038
      %v2087 = vadd.f32 %v1881, %v2043
      %v2088 = vadd.f32 %v1882, %v2046
      %v2089 = vadd.f32 %v1883, %v2051
      %v2090 = vadd.f32 %v1884, %v2054
      %v2091 = vadd.f32 %v1885, %v2059
      %v2092 = vadd.f32 %v1886, %v2062
      %v2093 = vadd.f32 %v1887, %v2067
      %v2094 = vadd.f32 %v1888, %v2070
      %v2095 = vadd.f32 %v1889, %v2075
      %v2096 = vadd.f32 %v1890, %v2078
      %v2098 = vrot.slane %v249, 5
      %v2099 = vrot.slane %v2098, 4
      %v2100 = vrot.slane %v250, 5
      %v2101 = vsel %vm860, %v2099, %v2100
      %v2102 = vrot.slane %v2100, 4
      %v2103 = vrot.slane %v251, 5
      %v2104 = vsel %vm860, %v2102, %v2103
      %s2105 = scalar_lea.vmem %s1, 512
      %v2106 = vld [vmem:[%s2105] sm:$0xf]
      %v2107 = vld [vmem:[%s2105 + $0x4] sm:$0xf]
      %v2108 = vld [vmem:[%s2105 + $0x8] sm:$0xf]
      %v2109 = vld [vmem:[%s2105 + $0xc] sm:$0xf]
      %v2110 = vld [vmem:[%s2105 + $0x10] sm:$0xf]
      %v2111 = vld [vmem:[%s2105 + $0x14] sm:$0xf]
      %v2112 = vld [vmem:[%s2105 + $0x18] sm:$0xf]
      %v2113 = vld [vmem:[%s2105 + $0x1c] sm:$0xf]
      %v2114 = vld [vmem:[%s2105 + $0x20] sm:$0xf]
      %v2115 = vld [vmem:[%s2105 + $0x24] sm:$0xf]
      %v2116 = vld [vmem:[%s2105 + $0x28] sm:$0xf]
      %v2117 = vld [vmem:[%s2105 + $0x2c] sm:$0xf]
      %v2118 = vld [vmem:[%s2105 + $0x30] sm:$0xf]
      %v2119 = vld [vmem:[%s2105 + $0x34] sm:$0xf]
      %v2120 = vld [vmem:[%s2105 + $0x38] sm:$0xf]
      %v2121 = vld [vmem:[%s2105 + $0x3c] sm:$0xf]
      %v2122 = vunpack.c.l.b16 %v2101
      %v2123 = vunpack.c.l.b16 %v2104
      %v2124 = vpack.c.b16 %v2123, %v2122
      %v2142 = vunpack.c.l.b16 %v2106
      %v2143 = vunpack.c.l.b16 %v2107
      %v2144 = vunpack.c.l.b16 %v2108
      %v2145 = vunpack.c.l.b16 %v2109
      %v2146 = vunpack.c.l.b16 %v2110
      %v2147 = vunpack.c.l.b16 %v2111
      %v2148 = vunpack.c.l.b16 %v2112
      %v2149 = vunpack.c.l.b16 %v2113
      %v2150 = vunpack.c.l.b16 %v2114
      %v2151 = vunpack.c.l.b16 %v2115
      %v2152 = vunpack.c.l.b16 %v2116
      %v2153 = vunpack.c.l.b16 %v2117
      %v2154 = vunpack.c.l.b16 %v2118
      %v2155 = vunpack.c.l.b16 %v2119
      %v2156 = vunpack.c.l.b16 %v2120
      %v2157 = vunpack.c.l.b16 %v2121
      %v2158 = vpack.c.b16 %v2143, %v2142
      %v2159 = vpack.c.b16 %v2145, %v2144
      %v2160 = vpack.c.b16 %v2147, %v2146
      %v2161 = vpack.c.b16 %v2149, %v2148
      %v2162 = vpack.c.b16 %v2151, %v2150
      %v2163 = vpack.c.b16 %v2153, %v2152
      %v2164 = vpack.c.b16 %v2155, %v2154
      %v2165 = vpack.c.b16 %v2157, %v2156
      %2174 = vmatprep.subr.bf16.mxu0 0
      %2175 = vmatpush1.bf16.msra.mxu0 %v2165
      %2176 = vmatprep.subr.bf16.mxu0 0
      %2177 = vmatpush1.bf16.msra.mxu0 %v2164
      %2178 = vmatprep.subr.bf16.mxu0 0
      %2179 = vmatpush1.bf16.msra.mxu0 %v2163
      %2180 = vmatprep.subr.bf16.mxu0 0
      %2181 = vmatpush1.bf16.msra.mxu0 %v2162
      %2182 = vmatprep.subr.bf16.mxu0 0
      %2183 = vmatpush1.bf16.msra.mxu0 %v2161
      %2184 = vmatprep.subr.bf16.mxu0 0
      %2185 = vmatpush1.bf16.msra.mxu0 %v2160
      %2186 = vmatprep.subr.bf16.mxu0 0
      %2187 = vmatpush1.bf16.msra.mxu0 %v2159
      %2188 = vmatprep.subr.bf16.mxu0 0
      %2189 = vmatpush1.bf16.msra.mxu0 %v2158
      %2190 = vmatprep.subr.bf16.mxu0 0
      %2191 = vmatpush2.bf16.msra.mxu0 0
      %2192 = vmatprep.subr.bf16.mxu0 0
      %2193 = vmatpush2.bf16.msra.mxu0 0
      %2194 = vmatprep.subr.bf16.mxu0 0
      %2195 = vmatpush2.bf16.msra.mxu0 0
      %2196 = vmatprep.subr.bf16.mxu0 0
      %2197 = vmatpush2.bf16.msra.mxu0 0
      %2198 = vmatprep.subr.bf16.mxu0 0
      %2199 = vmatpush2.bf16.msra.mxu0 0
      %2200 = vmatprep.subr.bf16.mxu0 0
      %2201 = vmatpush2.bf16.msra.mxu0 0
      %2202 = vmatprep.subr.bf16.mxu0 0
      %2203 = vmatpush2.bf16.msra.mxu0 0
      %2204 = vmatprep.subr.bf16.mxu0 0
      %2205 = vmatpush2.bf16.msra.mxu0 0
      %2206 = vmatprep.mubr.bf16.mxu0 0
      %2207 = vmatmul.mubr.bf16.gmra.mxu0 %v952
      %v2208 = vpop.f32.mrf.mxu0
      %v2209 = vadd.f32 0.0, %v2208
      %v2210 = vpop.f32.mrf.mxu0
      %v2211 = vpop.f32.mrf.mxu0
      %v2212 = vadd.f32 0.0, %v2211
      %v2213 = vpop.f32.mrf.mxu0
      %2214 = vmatprep.mubr.bf16.mxu0 0
      %2215 = vmatmul.mubr.bf16.gmra.mxu0 %v953
      %v2216 = vpop.f32.mrf.mxu0
      %v2217 = vadd.f32 0.0, %v2216
      %v2218 = vpop.f32.mrf.mxu0
      %v2219 = vpop.f32.mrf.mxu0
      %v2220 = vadd.f32 0.0, %v2219
      %v2221 = vpop.f32.mrf.mxu0
      %2222 = vmatprep.mubr.bf16.mxu0 0
      %2223 = vmatmul.mubr.bf16.gmra.mxu0 %v954
      %v2224 = vpop.f32.mrf.mxu0
      %v2225 = vadd.f32 0.0, %v2224
      %v2226 = vpop.f32.mrf.mxu0
      %v2227 = vpop.f32.mrf.mxu0
      %v2228 = vadd.f32 0.0, %v2227
      %v2229 = vpop.f32.mrf.mxu0
      %2230 = vmatprep.mubr.bf16.mxu0 0
      %2231 = vmatmul.mubr.bf16.gmra.mxu0 %v955
      %v2232 = vpop.f32.mrf.mxu0
      %v2233 = vadd.f32 0.0, %v2232
      %v2234 = vpop.f32.mrf.mxu0
      %v2235 = vpop.f32.mrf.mxu0
      %v2236 = vadd.f32 0.0, %v2235
      %v2237 = vpop.f32.mrf.mxu0
      %2238 = vmatprep.mubr.bf16.mxu0 0
      %2239 = vmatmul.mubr.bf16.gmra.mxu0 %v956
      %v2240 = vpop.f32.mrf.mxu0
      %v2241 = vadd.f32 0.0, %v2240
      %v2242 = vpop.f32.mrf.mxu0
      %v2243 = vpop.f32.mrf.mxu0
      %v2244 = vadd.f32 0.0, %v2243
      %v2245 = vpop.f32.mrf.mxu0
      %2246 = vmatprep.mubr.bf16.mxu0 0
      %2247 = vmatmul.mubr.bf16.gmra.mxu0 %v957
      %v2248 = vpop.f32.mrf.mxu0
      %v2249 = vadd.f32 0.0, %v2248
      %v2250 = vpop.f32.mrf.mxu0
      %v2251 = vpop.f32.mrf.mxu0
      %v2252 = vadd.f32 0.0, %v2251
      %v2253 = vpop.f32.mrf.mxu0
      %2254 = vmatprep.mubr.bf16.mxu0 0
      %2255 = vmatmul.mubr.bf16.gmra.mxu0 %v1544
      %v2256 = vpop.f32.mrf.mxu0
      %v2257 = vadd.f32 0.0, %v2256
      %v2258 = vpop.f32.mrf.mxu0
      %v2259 = vpop.f32.mrf.mxu0
      %v2260 = vadd.f32 0.0, %v2259
      %v2261 = vpop.f32.mrf.mxu0
      %2262 = vmatprep.mubr.bf16.mxu0 0
      %2263 = vmatmul.mubr.bf16.gmra.mxu0 %v2124
      %v2264 = vpop.f32.mrf.mxu0
      %v2265 = vadd.f32 0.0, %v2264
      %v2266 = vpop.f32.mrf.mxu0
      %v2267 = vpop.f32.mrf.mxu0
      %v2268 = vadd.f32 0.0, %v2267
      %v2269 = vpop.f32.mrf.mxu0
      %2270 = vdwg.mxu0
      %v2271 = vadd.f32 %v2081, %v2209
      %v2272 = vadd.f32 %v2082, %v2212
      %v2273 = vadd.f32 %v2083, %v2217
      %v2274 = vadd.f32 %v2084, %v2220
      %v2275 = vadd.f32 %v2085, %v2225
      %v2276 = vadd.f32 %v2086, %v2228
      %v2277 = vadd.f32 %v2087, %v2233
      %v2278 = vadd.f32 %v2088, %v2236
      %v2279 = vadd.f32 %v2089, %v2241
      %v2280 = vadd.f32 %v2090, %v2244
      %v2281 = vadd.f32 %v2091, %v2249
      %v2282 = vadd.f32 %v2092, %v2252
      %v2283 = vadd.f32 %v2093, %v2257
      %v2284 = vadd.f32 %v2094, %v2260
      %v2285 = vadd.f32 %v2095, %v2265
      %v2286 = vadd.f32 %v2096, %v2268
      %2287 = vst [vmem:[%s207] sm:$0xff] %v2271
      %2288 = vst [vmem:[%s207 + $0x8] sm:$0xff] %v2272
      %2289 = vst [vmem:[%s207 + $0x10] sm:$0xff] %v2273
      %2290 = vst [vmem:[%s207 + $0x18] sm:$0xff] %v2274
      %2291 = vst [vmem:[%s207 + $0x20] sm:$0xff] %v2275
      %2292 = vst [vmem:[%s207 + $0x28] sm:$0xff] %v2276
      %2293 = vst [vmem:[%s207 + $0x30] sm:$0xff] %v2277
      %2294 = vst [vmem:[%s207 + $0x38] sm:$0xff] %v2278
      %2295 = vst [vmem:[%s207 + $0x40] sm:$0xff] %v2279
      %2296 = vst [vmem:[%s207 + $0x48] sm:$0xff] %v2280
      %2297 = vst [vmem:[%s207 + $0x50] sm:$0xff] %v2281
      %2298 = vst [vmem:[%s207 + $0x58] sm:$0xff] %v2282
      %2299 = vst [vmem:[%s207 + $0x60] sm:$0xff] %v2283
      %2300 = vst [vmem:[%s207 + $0x68] sm:$0xff] %v2284
      %2301 = vst [vmem:[%s207 + $0x70] sm:$0xff] %v2285
      %2302 = vst [vmem:[%s207 + $0x78] sm:$0xff] %v2286
      %v2303 = vadd.f32 %v2271, %v2272
      %v2304 = vadd.f32 %v2303, %v2273
      %v2305 = vadd.f32 %v2304, %v2274
      %v2306 = vadd.f32 %v2305, %v2275
      %v2307 = vadd.f32 %v2306, %v2276
      %v2308 = vadd.f32 %v2307, %v2277
      %v2309 = vadd.f32 %v2308, %v2278
      %v2310 = vadd.f32 %v2309, %v2279
      %v2311 = vadd.f32 %v2310, %v2280
      %v2312 = vadd.f32 %v2311, %v2281
      %v2313 = vadd.f32 %v2312, %v2282
      %v2314 = vadd.f32 %v2313, %v2283
      %v2315 = vadd.f32 %v2314, %v2284
      %v2316 = vadd.f32 %v2315, %v2285
      %v2317 = vadd.f32 %v2316, %v2286
      %v2318 = vrot.slane %v2317, 4
      %v2319 = vadd.f32 %v2317, %v2318
      %v2320 = vrot.slane %v2319, 2
      %v2321 = vadd.f32 %v2319, %v2320
      %v2322 = vrot.slane %v2321, 1
      %v2323 = vadd.f32 %v2321, %v2322
      %2324 = vst [vmem:[%s216] sm:$0x1] %v2323
      %v2325 = vmul.f32 %v2271, %v2271
      %v2326 = vmul.f32 %v2272, %v2272
      %v2327 = vmul.f32 %v2273, %v2273
      %v2328 = vmul.f32 %v2274, %v2274
      %v2329 = vmul.f32 %v2275, %v2275
      %v2330 = vmul.f32 %v2276, %v2276
      %v2331 = vmul.f32 %v2277, %v2277
      %v2332 = vmul.f32 %v2278, %v2278
      %v2333 = vmul.f32 %v2279, %v2279
      %v2334 = vmul.f32 %v2280, %v2280
      %v2335 = vmul.f32 %v2281, %v2281
      %v2336 = vmul.f32 %v2282, %v2282
      %v2337 = vmul.f32 %v2283, %v2283
      %v2338 = vmul.f32 %v2284, %v2284
      %v2339 = vmul.f32 %v2285, %v2285
      %v2340 = vmul.f32 %v2286, %v2286
      %v2341 = vadd.f32 %v2325, %v2326
      %v2342 = vadd.f32 %v2341, %v2327
      %v2343 = vadd.f32 %v2342, %v2328
      %v2344 = vadd.f32 %v2343, %v2329
      %v2345 = vadd.f32 %v2344, %v2330
      %v2346 = vadd.f32 %v2345, %v2331
      %v2347 = vadd.f32 %v2346, %v2332
      %v2348 = vadd.f32 %v2347, %v2333
      %v2349 = vadd.f32 %v2348, %v2334
      %v2350 = vadd.f32 %v2349, %v2335
      %v2351 = vadd.f32 %v2350, %v2336
      %v2352 = vadd.f32 %v2351, %v2337
      %v2353 = vadd.f32 %v2352, %v2338
      %v2354 = vadd.f32 %v2353, %v2339
      %v2355 = vadd.f32 %v2354, %v2340
      %v2356 = vrot.slane %v2355, 4
      %v2357 = vadd.f32 %v2355, %v2356
      %v2358 = vrot.slane %v2357, 2
      %v2359 = vadd.f32 %v2357, %v2358
      %v2360 = vrot.slane %v2359, 1
      %v2361 = vadd.f32 %v2359, %v2360
      %2362 = vst [vmem:[%s216 + $0x1] sm:$0x1] %v2361
      %s2363 = smul.u32 8, %s20
      %p2364 = scmp.lt.s32.totalorder %s19, 1
      %s2365 = scalar_select %p2364, %s19, 1
      %p2366 = scmp.lt.s32.totalorder %s2363, 15
      %s2367 = scalar_select %p2366, %s2363, 15
      %s2368 = smul.addr %s2367, 2
      %s2369 = smul.addr %s2365, 32
      %s2370 = sadd.s32 %s2368, %s2369
      %s2371 = smul.addr %s2370, 8
      %s2372 = scalar_lea.vmem %s2, %s2371
      %p2373 = scmp.lt.s32.totalorder %s19, 1
      %s2374 = scalar_select %p2373, %s19, 1
      %p2375 = scmp.lt.s32.totalorder %s20, 1
      %s2376 = scalar_select %p2375, %s20, 1
      %s2377 = smul.addr %s2374, 2
      %s2378 = sadd.s32 %s2376, %s2377
      %s2379 = smul.addr %s2378, 2
      %s2380 = scalar_lea.vmem %s3, %s2379
      // Predicated region
      $region29: #{double_conv.6} parent=27 // pred_check
        %p2381 = pneg %p94
      $region30: #{double_conv.6} parent=27 // pred_check_branch
        %2383 = sbr.rel (%p2381) target = $region32
      $region31: #{double_conv.6} parent=27 // pred_region
        %s2384 = smul.u32 8, %s20
      $region32: #{double_conv.6} parent=27 // pred_fallthru
        _
      // Predicated region
      $region33: #{double_conv.6} parent=27 // pred_check
        %p2385 = pneg %p122
      $region34: #{double_conv.6} parent=27 // pred_check_branch
        %2387 = sbr.rel (%p2385) target = $region36
      $region35: #{double_conv.6} parent=27 // pred_region
        _
      $region36: #{double_conv.6} parent=27 // pred_fallthru
        _
    $region28: #{double_conv.6} parent=5 // pred_fallthru
      _
    %p2388 = scmp.le.s32.totalorder 2, %s10
    // Predicated region
    $region37: #{double_conv.6} parent=5 // pred_check
      %p2389 = pneg %p2388
    $region38: #{double_conv.6} parent=5 // pred_check_branch
      %2391 = sbr.rel (%p2389) target = $region40
    $region39: #{double_conv.6} parent=5 // pred_region
      %s2392 = ssub.s32 %s10, 2
      // Predicated region
      $region41: #{double_conv.6} parent=39 // pred_check
        %p2393 = pneg %p100
      $region42: #{double_conv.6} parent=39 // pred_check_branch
        %2395 = sbr.rel (%p2393) target = $region44
      $region43: #{double_conv.6} parent=39 // pred_region
        %s2396 = smul.u32 8, %s22
        %p2397 = scmp.lt.s32.totalorder %s21, 1
        %s2398 = scalar_select %p2397, %s21, 1
        %p2399 = scmp.lt.s32.totalorder %s2396, 15
        %s2400 = scalar_select %p2399, %s2396, 15
        %s2401 = smul.addr %s2400, 2
        %s2402 = smul.addr %s2398, 32
        %s2403 = sadd.s32 %s2401, %s2402
        %s2404 = smul.addr %s2403, 8
        %s2405 = scalar_lea.vmem %s2, %s2404
      $region44: #{double_conv.6} parent=39 // pred_fallthru
        _
      // Predicated region
      $region45: #{double_conv.6} parent=39 // pred_check
        %p2406 = pneg %p128
      $region46: #{double_conv.6} parent=39 // pred_check_branch
        %2408 = sbr.rel (%p2406) target = $region48
      $region47: #{double_conv.6} parent=39 // pred_region
        %p2409 = scmp.lt.s32.totalorder %s21, 1
        %s2410 = scalar_select %p2409, %s21, 1
        %p2411 = scmp.lt.s32.totalorder %s22, 1
        %s2412 = scalar_select %p2411, %s22, 1
        %s2413 = smul.addr %s2410, 2
        %s2414 = sadd.s32 %s2412, %s2413
        %s2415 = smul.addr %s2414, 2
        %s2416 = scalar_lea.vmem %s3, %s2415
      $region48: #{double_conv.6} parent=39 // pred_fallthru
        _
    $region40: #{double_conv.6} parent=5 // pred_fallthru
      _
  $region6: #{double_conv.6} parent=0 // loop_footer
    %s14 = sadd.s32 1, %s10
  $region7: #{double_conv.6} parent=0 // loop_footer_branch
    %9 = sbr.rel target = $region3
  $region8: #{double_conv.6} parent=0 // loop_exit
    _

</llo_original>
